<compile_context>
chip_gen: v7x
topology: tpu7x:2x2x1
jax: 0.10.0
libtpu: 0.0.40
codegen_flags: <defaults>
</compile_context>

<pallas_src>
import functools

import jax
import jax.numpy as jnp
import numpy as np
from jax.experimental import pallas as pl
from jax.experimental.pallas import tpu as pltpu


def _round_up(x, m):
    return ((x + m - 1) // m) * m


def _pick_batch_tile(batch):
    """Batch tile (sublane-aligned) and padded batch; >=2 blocks when possible."""
    bp8 = _round_up(max(batch, 1), 8)
    if bp8 <= 8:
        return 8, 8
    bt = min(256, _round_up((bp8 + 1) // 2, 8))   # >=2 blocks -> both v7x cores
    bp = _round_up(bp8, bt)
    return bt, bp


def _gate_consts(H):
    """Per-lane affine constants mapping tanh(gates) -> activated gates.

    Gate layout along lanes is [i | f | g | o], each of width H.  The 0.5
    pre-scale of the tanh-based sigmoid is folded into the weights at pack
    time, so here: sigmoid lanes -> 0.5*t + 0.5, tanh (g) lanes -> t.
    """
    lane = jax.lax.broadcasted_iota(jnp.int32, (1, 4 * H), 1)
    is_g = (lane >= 2 * H) & (lane < 3 * H)
    post_m = jnp.where(is_g, jnp.float32(1.0), jnp.float32(0.5))
    post_a = jnp.where(is_g, jnp.float32(0.0), jnp.float32(0.5))
    return post_m, post_a


# --------------------------------------------------------------------------- #
# Kernel A: one LSTM layer (all layers except the top one).                    #
# Grid = (batch_blocks, seq_chunks); h/c persist in VMEM scratch across the    #
# "arbitrary" sequence-chunk axis.  Output is bf16.                            #
# --------------------------------------------------------------------------- #
def _lstm_layer_kernel(x_ref, w_ih_ref, w_hh_ref, b_ref,      # inputs
                       out_ref,                               # output (bf16)
                       h_scr, c_scr, xp_scr,                  # scratch
                       *, unroll):
    Tc, BT, Din = x_ref.shape
    H = h_scr.shape[1]
    G = 4 * H

    @pl.when(pl.program_id(1) == 0)
    def _init():
        h_scr[...] = jnp.zeros_like(h_scr)
        c_scr[...] = jnp.zeros_like(c_scr)

    # Hoisted input projection for the whole chunk: one big MXU matmul
    # (bf16 operands, f32 accumulation); bias folded in here (not per step).
    xp = jnp.dot(x_ref[...].reshape(Tc * BT, Din).astype(jnp.bfloat16),
                 w_ih_ref[...], preferred_element_type=jnp.float32)
    xp_scr[...] = (xp + b_ref[...]).reshape(Tc, BT, G)

    post_m, post_a = _gate_consts(H)

    def step(t, carry):
        h, c = carry
        gates = xp_scr[t] + jnp.dot(h.astype(jnp.bfloat16), w_hh_ref[...],
                                    preferred_element_type=jnp.float32)
        # Single tanh pass over the packed (BT, 4H) gates; per-lane affine
        # turns the sigmoid lanes into 0.5*tanh(0.5*a)+0.5 == sigmoid(a).
        acts = jnp.tanh(gates) * post_m + post_a
        i_g = acts[:, 0:H]
        f_g = acts[:, H:2 * H]
        g_g = acts[:, 2 * H:3 * H]
        o_g = acts[:, 3 * H:4 * H]
        c_new = f_g * c + i_g * g_g
        h_new = o_g * jnp.tanh(c_new)
        out_ref[t] = h_new.astype(out_ref.dtype)
        return h_new, c_new

    h, c = jax.lax.fori_loop(0, Tc, step, (h_scr[...], c_scr[...]),
                             unroll=unroll)
    h_scr[...] = h
    c_scr[...] = c


# --------------------------------------------------------------------------- #
# Kernel B: top LSTM layer fused with the attention (online softmax over the   #
# sequence) and the final Linear.  Output is only (B, K).                      #
# --------------------------------------------------------------------------- #
def _lstm_attn_fc_kernel(x_ref, w_ih_ref, w_hh_ref, b_ref,
                         attw_ref, fcw_ref, fcb_ref,
                         y_ref,
                         h_scr, c_scr, m_scr, l_scr, acc_scr, xp_scr,
                         *, seq_len, unroll):
    Tc, BT, Din = x_ref.shape
    H = h_scr.shape[1]
    G = 4 * H
    s_idx = pl.program_id(1)

    @pl.when(s_idx == 0)
    def _init():
        h_scr[...] = jnp.zeros_like(h_scr)
        c_scr[...] = jnp.zeros_like(c_scr)
        m_scr[...] = jnp.full_like(m_scr, -1e30)
        l_scr[...] = jnp.zeros_like(l_scr)
        acc_scr[...] = jnp.zeros_like(acc_scr)

    xp = jnp.dot(x_ref[...].reshape(Tc * BT, Din).astype(jnp.bfloat16),
                 w_ih_ref[...], preferred_element_type=jnp.float32)
    xp_scr[...] = (xp + b_ref[...]).reshape(Tc, BT, G)

    post_m, post_a = _gate_consts(H)
    att_w = attw_ref[...]                                     # (1, H) f32
    t0 = s_idx * Tc

    def step(t, carry):
        h, c, m, l, acc = carry
        gates = xp_scr[t] + jnp.dot(h.astype(jnp.bfloat16), w_hh_ref[...],
                                    preferred_element_type=jnp.float32)
        acts = jnp.tanh(gates) * post_m + post_a
        i_g = acts[:, 0:H]
        f_g = acts[:, H:2 * H]
        g_g = acts[:, 2 * H:3 * H]
        o_g = acts[:, 3 * H:4 * H]
        c = f_g * c + i_g * g_g
        h = o_g * jnp.tanh(c)

        # Online-softmax attention update: score_b = <tanh(h_b), att_w>.
        score = jnp.sum(jnp.tanh(h) * att_w, axis=1, keepdims=True)   # (BT,1)
        valid = (t0 + t) < seq_len                # mask zero-padded timesteps
        score = jnp.where(valid, score, jnp.float32(-1e30))
        m_new = jnp.maximum(m, score)
        alpha = jnp.exp(m - m_new)
        p = jnp.exp(score - m_new)
        l = alpha * l + p
        acc = alpha * acc + p * h
        return h, c, m_new, l, acc

    carry0 = (h_scr[...], c_scr[...], m_scr[...], l_scr[...], acc_scr[...])
    h, c, m, l, acc = jax.lax.fori_loop(0, Tc, step, carry0, unroll=unroll)
    h_scr[...] = h
    c_scr[...] = c
    m_scr[...] = m
    l_scr[...] = l
    acc_scr[...] = acc

    @pl.when(s_idx == pl.num_programs(1) - 1)
    def _finalize():
        new_h = jnp.tanh(acc_scr[...] *
                         pl.reciprocal(l_scr[...], approx=True))       # (BT,H)
        y = (jnp.dot(new_h.astype(jnp.bfloat16), fcw_ref[...],
                     preferred_element_type=jnp.float32)
             + fcb_ref[...])
        y_ref[...] = y.astype(y_ref.dtype)


# --------------------------------------------------------------------------- #
# pallas_call wrappers                                                         #
# --------------------------------------------------------------------------- #
def _lstm_layer(x_tm, w_ih, w_hh, b, *, Tc, BT, unroll, vmem_limit):
    S_pad, Bp, Din = x_tm.shape
    H = w_hh.shape[0]
    G = 4 * H
    grid = (Bp // BT, S_pad // Tc)
    kernel = functools.partial(_lstm_layer_kernel, unroll=unroll)
    return pl.pallas_call(
        kernel,
        out_shape=jax.ShapeDtypeStruct((S_pad, Bp, H), jnp.bfloat16),
        grid_spec=pltpu.PrefetchScalarGridSpec(
            num_scalar_prefetch=0,
            grid=grid,
            in_specs=[
                pl.BlockSpec((Tc, BT, Din), lambda bi, si: (si, bi, 0)),
                pl.BlockSpec((Din, G), lambda bi, si: (0, 0)),
                pl.BlockSpec((H, G), lambda bi, si: (0, 0)),
                pl.BlockSpec((1, G), lambda bi, si: (0, 0)),
            ],
            out_specs=pl.BlockSpec((Tc, BT, H), lambda bi, si: (si, bi, 0)),
            scratch_shapes=[
                pltpu.VMEM((BT, H), jnp.float32),      # h (persists over seq)
                pltpu.VMEM((BT, H), jnp.float32),      # c (persists over seq)
                pltpu.VMEM((Tc, BT, G), jnp.float32),  # hoisted x-projection
            ],
        ),
        compiler_params=pltpu.CompilerParams(
            dimension_semantics=("parallel", "arbitrary"),
            vmem_limit_bytes=vmem_limit,
        ),
    )(x_tm, w_ih, w_hh, b)


def _lstm_attn_fc(x_tm, w_ih, w_hh, b, att_w, fc_w, fc_b, *,
                  Tc, BT, seq_len, unroll, vmem_limit):
    S_pad, Bp, Din = x_tm.shape
    H = w_hh.shape[0]
    G = 4 * H
    K = fc_w.shape[1]
    grid = (Bp // BT, S_pad // Tc)
    kernel = functools.partial(_lstm_attn_fc_kernel, seq_len=seq_len,
                               unroll=unroll)
    return pl.pallas_call(
        kernel,
        out_shape=jax.ShapeDtypeStruct((Bp, K), jnp.float32),
        grid_spec=pltpu.PrefetchScalarGridSpec(
            num_scalar_prefetch=0,
            grid=grid,
            in_specs=[
                pl.BlockSpec((Tc, BT, Din), lambda bi, si: (si, bi, 0)),
                pl.BlockSpec((Din, G), lambda bi, si: (0, 0)),
                pl.BlockSpec((H, G), lambda bi, si: (0, 0)),
                pl.BlockSpec((1, G), lambda bi, si: (0, 0)),
                pl.BlockSpec((1, H), lambda bi, si: (0, 0)),
                pl.BlockSpec((H, K), lambda bi, si: (0, 0)),
                pl.BlockSpec((1, K), lambda bi, si: (0, 0)),
            ],
            out_specs=pl.BlockSpec((BT, K), lambda bi, si: (bi, 0)),
            scratch_shapes=[
                pltpu.VMEM((BT, H), jnp.float32),      # h
                pltpu.VMEM((BT, H), jnp.float32),      # c
                pltpu.VMEM((BT, 1), jnp.float32),      # online-softmax max
                pltpu.VMEM((BT, 1), jnp.float32),      # online-softmax sum
                pltpu.VMEM((BT, H), jnp.float32),      # weighted-sum acc
                pltpu.VMEM((Tc, BT, G), jnp.float32),  # hoisted x-projection
            ],
        ),
        compiler_params=pltpu.CompilerParams(
            dimension_semantics=("parallel", "arbitrary"),
            vmem_limit_bytes=vmem_limit,
        ),
    )(x_tm, w_ih, w_hh, b, att_w, fc_w, fc_b)


# --------------------------------------------------------------------------- #
# Full model forward (matches Trainable_Att.forward)                           #
# --------------------------------------------------------------------------- #
@functools.partial(jax.jit, static_argnames=("num_keys", "seq_chunk"))
def trainable_att_forward(x, packed, *, num_keys, seq_chunk=128):
    """x: (B, S, input_size) float32 — PyTorch batch_first convention."""
    B, S, _ = x.shape
    BT, Bp = _pick_batch_tile(B)
    Tc = min(S, seq_chunk)                  # sequence chunk (VMEM-budgeted)
    S_pad = _round_up(S, Tc)
    unroll = Tc if Tc <= 16 else (8 if BT < 128 else 4)
    vmem_limit = 40 * 1024 * 1024           # safe on v5e/v6e (128 MiB) & v7x (64 MiB)

    # One layout transform: batch-major -> time-major, bf16, pad batch & seq.
    x_tm = jnp.transpose(x.astype(jnp.bfloat16), (1, 0, 2))      # (S, B, Din)
    x_tm = jnp.pad(x_tm, ((0, S_pad - S), (0, Bp - B), (0, 0)))

    h = x_tm
    layers = packed["lstm"]
    y = None
    for li, (w_ih, w_hh, b) in enumerate(layers):
        if li < len(layers) - 1:
            h = _lstm_layer(h, w_ih, w_hh, b, Tc=Tc, BT=BT,
                            unroll=unroll, vmem_limit=vmem_limit)
        else:
            y = _lstm_attn_fc(h, w_ih, w_hh, b,
                              packed["att_w"], packed["fc_w"], packed["fc_b"],
                              Tc=Tc, BT=BT, seq_len=S,
                              unroll=unroll, vmem_limit=vmem_limit)
    return y[:B, :num_keys]


# --------------------------------------------------------------------------- #
# Parameters: PyTorch-layout reference params + packed kernel params           #
# --------------------------------------------------------------------------- #
def init_reference_params(key, input_size, hidden_size, num_layers, num_keys):
    """PyTorch layout: LSTM weight_ih (4H, Din), weight_hh (4H, H), gate order i,f,g,o."""
    k = 1.0 / np.sqrt(hidden_size)
    params = {"lstm": []}
    for layer in range(num_layers):
        din = input_size if layer == 0 else hidden_size
        key, k1, k2, k3, k4 = jax.random.split(key, 5)
        w_ih = jax.random.uniform(k1, (4 * hidden_size, din), jnp.float32, -k, k)
        w_hh = jax.random.uniform(k2, (4 * hidden_size, hidden_size), jnp.float32, -k, k)
        b_ih = jax.random.uniform(k3, (4 * hidden_size,), jnp.float32, -k, k)
        b_hh = jax.random.uniform(k4, (4 * hidden_size,), jnp.float32, -k, k)
        params["lstm"].append((w_ih, w_hh, b_ih, b_hh))
    key, k5, k6, k7 = jax.random.split(key, 4)
    params["fc_w"] = jax.random.uniform(k5, (num_keys, hidden_size), jnp.float32, -k, k)
    params["fc_b"] = jax.random.uniform(k6, (num_keys,), jnp.float32, -k, k)
    params["att_w"] = jax.random.normal(k7, (hidden_size,), jnp.float32)
    return params


def pack_params(ref_params, input_size, hidden_size, num_keys):
    """Transpose to (in, out), keep natural H width (packed gates), cast to bf16.

    The 0.5 pre-scale of the tanh-based sigmoid is folded into the i/f/o gate
    rows of W_ih, W_hh and the bias (exact in bf16: power-of-two scaling).
    """
    H = hidden_size
    packed = {"lstm": []}
    for (w_ih, w_hh, b_ih, b_hh) in ref_params["lstm"]:
        w_ih_np = np.asarray(w_ih, np.float32)                 # (4H, din)
        w_hh_np = np.asarray(w_hh, np.float32)                 # (4H, H)
        b_np = (np.asarray(b_ih) + np.asarray(b_hh)).astype(np.float32)
        scale = np.full((4 * H, 1), 0.5, np.float32)
        scale[2 * H:3 * H] = 1.0                               # g gate unscaled
        w_ih_s = (w_ih_np * scale).T                           # (din, 4H)
        w_hh_s = (w_hh_np * scale).T                           # (H, 4H)
        b_s = (b_np * scale[:, 0])[None, :]                    # (1, 4H)
        packed["lstm"].append((jnp.asarray(w_ih_s, dtype=jnp.bfloat16),
                               jnp.asarray(w_hh_s, dtype=jnp.bfloat16),
                               jnp.asarray(b_s, dtype=jnp.float32)))
    packed["att_w"] = jnp.asarray(np.asarray(ref_params["att_w"])[None, :],
                                  dtype=jnp.float32)                   # (1, H)
    packed["fc_w"] = jnp.asarray(np.asarray(ref_params["fc_w"]).T,
                                 dtype=jnp.bfloat16)                   # (H, K)
    packed["fc_b"] = jnp.asarray(np.asarray(ref_params["fc_b"])[None, :],
                                 dtype=jnp.float32)                    # (1, K)
    return packed


# --------------------------------------------------------------------------- #
# Pure-JAX reference (exactly the PyTorch Trainable_Att semantics, f32)        #
# --------------------------------------------------------------------------- #
def trainable_att_reference(x, ref_params):
    B, S, _ = x.shape
    layer_in = x.astype(jnp.float32)
    for (w_ih, w_hh, b_ih, b_hh) in ref_params["lstm"]:
        H = w_hh.shape[1]
        h = jnp.zeros((B, H), jnp.float32)
        c = jnp.zeros((B, H), jnp.float32)
        outs = []
        for t in range(S):
            gates = layer_in[:, t, :] @ w_ih.T + h @ w_hh.T + b_ih + b_hh
            i = jax.nn.sigmoid(gates[:, 0 * H:1 * H])
            f = jax.nn.sigmoid(gates[:, 1 * H:2 * H])
            g = jnp.tanh(gates[:, 2 * H:3 * H])
            o = jax.nn.sigmoid(gates[:, 3 * H:4 * H])
            c = f * c + i * g
            h = o * jnp.tanh(c)
            outs.append(h)
        layer_in = jnp.stack(outs, axis=1)                     # (B, S, H)
    scores = jnp.einsum("bsh,h->bs", jnp.tanh(layer_in), ref_params["att_w"])
    w = jax.nn.softmax(scores, axis=1)
    new_h = jnp.tanh(jnp.einsum("bsh,bs->bh", layer_in, w))
    return new_h @ ref_params["fc_w"].T + ref_params["fc_b"]


if __name__ == "__main__":
    input_size, hidden_size, num_layers, num_keys = 8, 32, 2, 16

    key = jax.random.PRNGKey(0)
    key, pkey, xkey, x2key = jax.random.split(key, 4)
    ref_params = init_reference_params(pkey, input_size, hidden_size,
                                       num_layers, num_keys)
    packed = pack_params(ref_params, input_size, hidden_size, num_keys)

    # Case 1: canonical small shapes (single sequence chunk, single batch block)
    batch, seq = 2, 8
    x = jax.random.normal(xkey, (batch, seq, input_size), jnp.float32)
    y = jax.block_until_ready(trainable_att_forward(x, packed, num_keys=num_keys))
    y_ref = trainable_att_reference(x, ref_params)
    np.testing.assert_allclose(np.asarray(y), np.asarray(y_ref),
                               rtol=2.5e-2, atol=2.5e-2)  # bf16-matmul tolerance
    assert y.shape == (batch, num_keys)

    # Case 2: ragged shapes -> exercises batch padding, multi-chunk sequence
    # pipelining and the online-softmax masking of padded timesteps.
    batch2, seq2 = 3, 13
    x2 = jax.random.normal(x2key, (batch2, seq2, input_size), jnp.float32)
    y2 = jax.block_until_ready(
        trainable_att_forward(x2, packed, num_keys=num_keys, seq_chunk=8))
    y2_ref = trainable_att_reference(x2, ref_params)
    np.testing.assert_allclose(np.asarray(y2), np.asarray(y2_ref),
                               rtol=2.5e-2, atol=2.5e-2)

    print("KERNEL_OK")
</pallas_src>

<mosaic_0001>
module attributes {stable_mosaic.version = 11 : i64} {
  func.func @_lstm_layer_kernel(%arg0: i32, %arg1: i32, %arg2: memref<8x8x8xbf16, #tpu.memory_space<vmem>>, %arg3: memref<8x128xbf16, #tpu.memory_space<vmem>>, %arg4: memref<32x128xbf16, #tpu.memory_space<vmem>>, %arg5: memref<1x128xf32, #tpu.memory_space<vmem>>, %arg6: memref<8x8x32xbf16, #tpu.memory_space<vmem>>, %arg7: memref<8x32xf32, #tpu.memory_space<vmem>>, %arg8: memref<8x32xf32, #tpu.memory_space<vmem>>, %arg9: memref<8x8x128xf32, #tpu.memory_space<vmem>>) attributes {dimension_semantics = [#tpu.dimension_semantics<parallel>, #tpu.dimension_semantics<arbitrary>], iteration_bounds = array<i64: 1, 1>, scalar_prefetch = 0 : i64, scratch_operands = 3 : i64, tpu.core_type = #tpu.core_type<tc>, window_params = [{transform_indices = @transform_0, window_bounds = array<i64: 8, 8, 8>}, {pipeline_mode = #tpu.pipeline_mode<synchronous>, transform_indices = @transform_1, window_bounds = array<i64: 8, 128>}, {pipeline_mode = #tpu.pipeline_mode<synchronous>, transform_indices = @transform_2, window_bounds = array<i64: 32, 128>}, {pipeline_mode = #tpu.pipeline_mode<synchronous>, transform_indices = @transform_3, window_bounds = array<i64: 1, 128>}, {transform_indices = @transform_4, window_bounds = array<i64: 8, 8, 32>}]} {
    %c0_i32 = arith.constant 0 : i32
    %0 = arith.cmpi eq, %arg1, %c0_i32 : i32
    %1 = arith.extui %0 : i1 to i32
    %c0_i32_0 = arith.constant 0 : i32
    %2 = arith.cmpi ne, %1, %c0_i32_0 : i32
    scf.if %2 {
      %cst_79 = arith.constant 0.000000e+00 : f32
      %236 = vector.broadcast %cst_79 : f32 to vector<8x32xf32>
      %c0_80 = arith.constant 0 : index
      %c0_81 = arith.constant 0 : index
      %237 = vector.load %arg7[%c0_80, %c0_81] : memref<8x32xf32, #tpu.memory_space<vmem>>, vector<8x32xf32>
      tpu.vector_store %arg7[%c0_80, %c0_81], %236 {strides = array<i32>} : memref<8x32xf32, #tpu.memory_space<vmem>>, vector<8x32xf32>,
      %cst_82 = arith.constant 0.000000e+00 : f32
      %238 = vector.broadcast %cst_82 : f32 to vector<8x32xf32>
      %c0_83 = arith.constant 0 : index
      %c0_84 = arith.constant 0 : index
      %239 = vector.load %arg8[%c0_83, %c0_84] : memref<8x32xf32, #tpu.memory_space<vmem>>, vector<8x32xf32>
      tpu.vector_store %arg8[%c0_83, %c0_84], %238 {strides = array<i32>} : memref<8x32xf32, #tpu.memory_space<vmem>>, vector<8x32xf32>,
    } else {
    }
    %c0 = arith.constant 0 : index
    %c0_1 = arith.constant 0 : index
    %c0_2 = arith.constant 0 : index
    %3 = vector.load %arg2[%c0, %c0_1, %c0_2] : memref<8x8x8xbf16, #tpu.memory_space<vmem>>, vector<8x8x8xbf16>
    %4 = vector.shape_cast %3 : vector<8x8x8xbf16> to vector<64x8xbf16>
    %c0_3 = arith.constant 0 : index
    %c0_4 = arith.constant 0 : index
    %5 = vector.load %arg3[%c0_3, %c0_4] : memref<8x128xbf16, #tpu.memory_space<vmem>>, vector<8x128xbf16>
    %cst = arith.constant dense<0.000000e+00> : vector<64x128xf32>
    %6 = tpu.matmul %4, %5, %cst {dimension_numbers = #tpu.dot_dimension_numbers<[1], [0], [0], [1], [0, 0, 1, 1], [], []>} : vector<64x8xbf16>, vector<8x128xbf16>, vector<64x128xf32> -> vector<64x128xf32>
    %c0_5 = arith.constant 0 : index
    %c0_6 = arith.constant 0 : index
    %7 = vector.load %arg5[%c0_5, %c0_6] : memref<1x128xf32, #tpu.memory_space<vmem>>, vector<1x128xf32>
    %8 = vector.broadcast %7 : vector<1x128xf32> to vector<64x128xf32>
    %9 = arith.addf %6, %8 : vector<64x128xf32>
    %10 = vector.shape_cast %9 : vector<64x128xf32> to vector<8x8x128xf32>
    %c0_7 = arith.constant 0 : index
    %c0_8 = arith.constant 0 : index
    %c0_9 = arith.constant 0 : index
    %11 = vector.load %arg9[%c0_7, %c0_8, %c0_9] : memref<8x8x128xf32, #tpu.memory_space<vmem>>, vector<8x8x128xf32>
    tpu.vector_store %arg9[%c0_7, %c0_8, %c0_9], %10 {strides = array<i32>} : memref<8x8x128xf32, #tpu.memory_space<vmem>>, vector<8x8x128xf32>,
    %12 = tpu.iota {dimensions = array<i32: 1>} : vector<1x128xi32>
    %c64_i32 = arith.constant 64 : i32
    %13 = vector.broadcast %c64_i32 : i32 to vector<1x128xi32>
    %14 = arith.cmpi sge, %12, %13 : vector<1x128xi32>
    %c96_i32 = arith.constant 96 : i32
    %15 = vector.broadcast %c96_i32 : i32 to vector<1x128xi32>
    %16 = arith.cmpi slt, %12, %15 : vector<1x128xi32>
    %17 = arith.andi %14, %16 : vector<1x128xi1>
    %cst_10 = arith.constant 1.000000e+00 : f32
    %cst_11 = arith.constant 5.000000e-01 : f32
    %18 = vector.broadcast %cst_10 : f32 to vector<1x128xf32>
    %19 = vector.broadcast %cst_11 : f32 to vector<1x128xf32>
    %20 = arith.select %17, %18, %19 : vector<1x128xi1>, vector<1x128xf32>
    %cst_12 = arith.constant 0.000000e+00 : f32
    %cst_13 = arith.constant 5.000000e-01 : f32
    %21 = vector.broadcast %cst_12 : f32 to vector<1x128xf32>
    %22 = vector.broadcast %cst_13 : f32 to vector<1x128xf32>
    %23 = arith.select %17, %21, %22 : vector<1x128xi1>, vector<1x128xf32>
    %c0_14 = arith.constant 0 : index
    %c0_15 = arith.constant 0 : index
    %24 = vector.load %arg7[%c0_14, %c0_15] : memref<8x32xf32, #tpu.memory_space<vmem>>, vector<8x32xf32>
    %c0_16 = arith.constant 0 : index
    %c0_17 = arith.constant 0 : index
    %25 = vector.load %arg8[%c0_16, %c0_17] : memref<8x32xf32, #tpu.memory_space<vmem>>, vector<8x32xf32>
    %c0_i32_18 = arith.constant 0 : i32
    %26 = arith.index_cast %c0_i32_18 : i32 to index
    %c0_19 = arith.constant 0 : index
    %c0_20 = arith.constant 0 : index
    %27 = vector.load %arg9[%26, %c0_19, %c0_20] : memref<8x8x128xf32, #tpu.memory_space<vmem>>, vector<1x8x128xf32>
    %28 = vector.shape_cast %27 : vector<1x8x128xf32> to vector<8x128xf32>
    %29 = arith.truncf %24 : vector<8x32xf32> to vector<8x32xbf16>
    %c0_21 = arith.constant 0 : index
    %c0_22 = arith.constant 0 : index
    %30 = vector.load %arg4[%c0_21, %c0_22] : memref<32x128xbf16, #tpu.memory_space<vmem>>, vector<32x128xbf16>
    %cst_23 = arith.constant dense<0.000000e+00> : vector<8x128xf32>
    %31 = tpu.matmul %29, %30, %cst_23 {dimension_numbers = #tpu.dot_dimension_numbers<[1], [0], [0], [1], [0, 0, 1, 1], [], []>} : vector<8x32xbf16>, vector<32x128xbf16>, vector<8x128xf32> -> vector<8x128xf32>
    %32 = arith.addf %28, %31 : vector<8x128xf32>
    %33 = math.tanh %32 : vector<8x128xf32>
    %34 = vector.broadcast %20 : vector<1x128xf32> to vector<8x128xf32>
    %35 = arith.mulf %33, %34 : vector<8x128xf32>
    %36 = vector.broadcast %23 : vector<1x128xf32> to vector<8x128xf32>
    %37 = arith.addf %35, %36 : vector<8x128xf32>
    %38 = vector.extract_strided_slice %37 {offsets = [0, 0], sizes = [8, 32], strides = [1, 1]} : vector<8x128xf32> to vector<8x32xf32>
    %39 = vector.extract_strided_slice %37 {offsets = [0, 32], sizes = [8, 32], strides = [1, 1]} : vector<8x128xf32> to vector<8x32xf32>
    %40 = vector.extract_strided_slice %37 {offsets = [0, 64], sizes = [8, 32], strides = [1, 1]} : vector<8x128xf32> to vector<8x32xf32>
    %41 = vector.extract_strided_slice %37 {offsets = [0, 96], sizes = [8, 32], strides = [1, 1]} : vector<8x128xf32> to vector<8x32xf32>
    %42 = arith.mulf %39, %25 : vector<8x32xf32>
    %43 = arith.mulf %38, %40 : vector<8x32xf32>
    %44 = arith.addf %42, %43 : vector<8x32xf32>
    %45 = math.tanh %44 : vector<8x32xf32>
    %46 = arith.mulf %41, %45 : vector<8x32xf32>
    %47 = arith.truncf %46 : vector<8x32xf32> to vector<8x32xbf16>
    %48 = arith.index_cast %c0_i32_18 : i32 to index
    %c0_24 = arith.constant 0 : index
    %c0_25 = arith.constant 0 : index
    %49 = vector.load %arg6[%48, %c0_24, %c0_25] : memref<8x8x32xbf16, #tpu.memory_space<vmem>>, vector<1x8x32xbf16>
    %50 = vector.shape_cast %49 : vector<1x8x32xbf16> to vector<8x32xbf16>
    %51 = vector.shape_cast %47 : vector<8x32xbf16> to vector<1x8x32xbf16>
    tpu.vector_store %arg6[%48, %c0_24, %c0_25], %51 {strides = array<i32>} : memref<8x8x32xbf16, #tpu.memory_space<vmem>>, vector<1x8x32xbf16>,
    %c1_i32 = arith.constant 1 : i32
    %52 = arith.index_cast %c1_i32 : i32 to index
    %c0_26 = arith.constant 0 : index
    %c0_27 = arith.constant 0 : index
    %53 = vector.load %arg9[%52, %c0_26, %c0_27] : memref<8x8x128xf32, #tpu.memory_space<vmem>>, vector<1x8x128xf32>
    %54 = vector.shape_cast %53 : vector<1x8x128xf32> to vector<8x128xf32>
    %55 = arith.truncf %46 : vector<8x32xf32> to vector<8x32xbf16>
    %c0_28 = arith.constant 0 : index
    %c0_29 = arith.constant 0 : index
    %56 = vector.load %arg4[%c0_28, %c0_29] : memref<32x128xbf16, #tpu.memory_space<vmem>>, vector<32x128xbf16>
    %cst_30 = arith.constant dense<0.000000e+00> : vector<8x128xf32>
    %57 = tpu.matmul %55, %56, %cst_30 {dimension_numbers = #tpu.dot_dimension_numbers<[1], [0], [0], [1], [0, 0, 1, 1], [], []>} : vector<8x32xbf16>, vector<32x128xbf16>, vector<8x128xf32> -> vector<8x128xf32>
    %58 = arith.addf %54, %57 : vector<8x128xf32>
    %59 = math.tanh %58 : vector<8x128xf32>
    %60 = vector.broadcast %20 : vector<1x128xf32> to vector<8x128xf32>
    %61 = arith.mulf %59, %60 : vector<8x128xf32>
    %62 = vector.broadcast %23 : vector<1x128xf32> to vector<8x128xf32>
    %63 = arith.addf %61, %62 : vector<8x128xf32>
    %64 = vector.extract_strided_slice %63 {offsets = [0, 0], sizes = [8, 32], strides = [1, 1]} : vector<8x128xf32> to vector<8x32xf32>
    %65 = vector.extract_strided_slice %63 {offsets = [0, 32], sizes = [8, 32], strides = [1, 1]} : vector<8x128xf32> to vector<8x32xf32>
    %66 = vector.extract_strided_slice %63 {offsets = [0, 64], sizes = [8, 32], strides = [1, 1]} : vector<8x128xf32> to vector<8x32xf32>
    %67 = vector.extract_strided_slice %63 {offsets = [0, 96], sizes = [8, 32], strides = [1, 1]} : vector<8x128xf32> to vector<8x32xf32>
    %68 = arith.mulf %65, %44 : vector<8x32xf32>
    %69 = arith.mulf %64, %66 : vector<8x32xf32>
    %70 = arith.addf %68, %69 : vector<8x32xf32>
    %71 = math.tanh %70 : vector<8x32xf32>
    %72 = arith.mulf %67, %71 : vector<8x32xf32>
    %73 = arith.truncf %72 : vector<8x32xf32> to vector<8x32xbf16>
    %74 = arith.index_cast %c1_i32 : i32 to index
    %c0_31 = arith.constant 0 : index
    %c0_32 = arith.constant 0 : index
    %75 = vector.load %arg6[%74, %c0_31, %c0_32] : memref<8x8x32xbf16, #tpu.memory_space<vmem>>, vector<1x8x32xbf16>
    %76 = vector.shape_cast %75 : vector<1x8x32xbf16> to vector<8x32xbf16>
    %77 = vector.shape_cast %73 : vector<8x32xbf16> to vector<1x8x32xbf16>
    tpu.vector_store %arg6[%74, %c0_31, %c0_32], %77 {strides = array<i32>} : memref<8x8x32xbf16, #tpu.memory_space<vmem>>, vector<1x8x32xbf16>,
    %c2_i32 = arith.constant 2 : i32
    %78 = arith.index_cast %c2_i32 : i32 to index
    %c0_33 = arith.constant 0 : index
    %c0_34 = arith.constant 0 : index
    %79 = vector.load %arg9[%78, %c0_33, %c0_34] : memref<8x8x128xf32, #tpu.memory_space<vmem>>, vector<1x8x128xf32>
    %80 = vector.shape_cast %79 : vector<1x8x128xf32> to vector<8x128xf32>
    %81 = arith.truncf %72 : vector<8x32xf32> to vector<8x32xbf16>
    %c0_35 = arith.constant 0 : index
    %c0_36 = arith.constant 0 : index
    %82 = vector.load %arg4[%c0_35, %c0_36] : memref<32x128xbf16, #tpu.memory_space<vmem>>, vector<32x128xbf16>
    %cst_37 = arith.constant dense<0.000000e+00> : vector<8x128xf32>
    %83 = tpu.matmul %81, %82, %cst_37 {dimension_numbers = #tpu.dot_dimension_numbers<[1], [0], [0], [1], [0, 0, 1, 1], [], []>} : vector<8x32xbf16>, vector<32x128xbf16>, vector<8x128xf32> -> vector<8x128xf32>
    %84 = arith.addf %80, %83 : vector<8x128xf32>
    %85 = math.tanh %84 : vector<8x128xf32>
    %86 = vector.broadcast %20 : vector<1x128xf32> to vector<8x128xf32>
    %87 = arith.mulf %85, %86 : vector<8x128xf32>
    %88 = vector.broadcast %23 : vector<1x128xf32> to vector<8x128xf32>
    %89 = arith.addf %87, %88 : vector<8x128xf32>
    %90 = vector.extract_strided_slice %89 {offsets = [0, 0], sizes = [8, 32], strides = [1, 1]} : vector<8x128xf32> to vector<8x32xf32>
    %91 = vector.extract_strided_slice %89 {offsets = [0, 32], sizes = [8, 32], strides = [1, 1]} : vector<8x128xf32> to vector<8x32xf32>
    %92 = vector.extract_strided_slice %89 {offsets = [0, 64], sizes = [8, 32], strides = [1, 1]} : vector<8x128xf32> to vector<8x32xf32>
    %93 = vector.extract_strided_slice %89 {offsets = [0, 96], sizes = [8, 32], strides = [1, 1]} : vector<8x128xf32> to vector<8x32xf32>
    %94 = arith.mulf %91, %70 : vector<8x32xf32>
    %95 = arith.mulf %90, %92 : vector<8x32xf32>
    %96 = arith.addf %94, %95 : vector<8x32xf32>
    %97 = math.tanh %96 : vector<8x32xf32>
    %98 = arith.mulf %93, %97 : vector<8x32xf32>
    %99 = arith.truncf %98 : vector<8x32xf32> to vector<8x32xbf16>
    %100 = arith.index_cast %c2_i32 : i32 to index
    %c0_38 = arith.constant 0 : index
    %c0_39 = arith.constant 0 : index
    %101 = vector.load %arg6[%100, %c0_38, %c0_39] : memref<8x8x32xbf16, #tpu.memory_space<vmem>>, vector<1x8x32xbf16>
    %102 = vector.shape_cast %101 : vector<1x8x32xbf16> to vector<8x32xbf16>
    %103 = vector.shape_cast %99 : vector<8x32xbf16> to vector<1x8x32xbf16>
    tpu.vector_store %arg6[%100, %c0_38, %c0_39], %103 {strides = array<i32>} : memref<8x8x32xbf16, #tpu.memory_space<vmem>>, vector<1x8x32xbf16>,
    %c3_i32 = arith.constant 3 : i32
    %104 = arith.index_cast %c3_i32 : i32 to index
    %c0_40 = arith.constant 0 : index
    %c0_41 = arith.constant 0 : index
    %105 = vector.load %arg9[%104, %c0_40, %c0_41] : memref<8x8x128xf32, #tpu.memory_space<vmem>>, vector<1x8x128xf32>
    %106 = vector.shape_cast %105 : vector<1x8x128xf32> to vector<8x128xf32>
    %107 = arith.truncf %98 : vector<8x32xf32> to vector<8x32xbf16>
    %c0_42 = arith.constant 0 : index
    %c0_43 = arith.constant 0 : index
    %108 = vector.load %arg4[%c0_42, %c0_43] : memref<32x128xbf16, #tpu.memory_space<vmem>>, vector<32x128xbf16>
    %cst_44 = arith.constant dense<0.000000e+00> : vector<8x128xf32>
    %109 = tpu.matmul %107, %108, %cst_44 {dimension_numbers = #tpu.dot_dimension_numbers<[1], [0], [0], [1], [0, 0, 1, 1], [], []>} : vector<8x32xbf16>, vector<32x128xbf16>, vector<8x128xf32> -> vector<8x128xf32>
    %110 = arith.addf %106, %109 : vector<8x128xf32>
    %111 = math.tanh %110 : vector<8x128xf32>
    %112 = vector.broadcast %20 : vector<1x128xf32> to vector<8x128xf32>
    %113 = arith.mulf %111, %112 : vector<8x128xf32>
    %114 = vector.broadcast %23 : vector<1x128xf32> to vector<8x128xf32>
    %115 = arith.addf %113, %114 : vector<8x128xf32>
    %116 = vector.extract_strided_slice %115 {offsets = [0, 0], sizes = [8, 32], strides = [1, 1]} : vector<8x128xf32> to vector<8x32xf32>
    %117 = vector.extract_strided_slice %115 {offsets = [0, 32], sizes = [8, 32], strides = [1, 1]} : vector<8x128xf32> to vector<8x32xf32>
    %118 = vector.extract_strided_slice %115 {offsets = [0, 64], sizes = [8, 32], strides = [1, 1]} : vector<8x128xf32> to vector<8x32xf32>
    %119 = vector.extract_strided_slice %115 {offsets = [0, 96], sizes = [8, 32], strides = [1, 1]} : vector<8x128xf32> to vector<8x32xf32>
    %120 = arith.mulf %117, %96 : vector<8x32xf32>
    %121 = arith.mulf %116, %118 : vector<8x32xf32>
    %122 = arith.addf %120, %121 : vector<8x32xf32>
    %123 = math.tanh %122 : vector<8x32xf32>
    %124 = arith.mulf %119, %123 : vector<8x32xf32>
    %125 = arith.truncf %124 : vector<8x32xf32> to vector<8x32xbf16>
    %126 = arith.index_cast %c3_i32 : i32 to index
    %c0_45 = arith.constant 0 : index
    %c0_46 = arith.constant 0 : index
    %127 = vector.load %arg6[%126, %c0_45, %c0_46] : memref<8x8x32xbf16, #tpu.memory_space<vmem>>, vector<1x8x32xbf16>
    %128 = vector.shape_cast %127 : vector<1x8x32xbf16> to vector<8x32xbf16>
    %129 = vector.shape_cast %125 : vector<8x32xbf16> to vector<1x8x32xbf16>
    tpu.vector_store %arg6[%126, %c0_45, %c0_46], %129 {strides = array<i32>} : memref<8x8x32xbf16, #tpu.memory_space<vmem>>, vector<1x8x32xbf16>,
    %c4_i32 = arith.constant 4 : i32
    %130 = arith.index_cast %c4_i32 : i32 to index
    %c0_47 = arith.constant 0 : index
    %c0_48 = arith.constant 0 : index
    %131 = vector.load %arg9[%130, %c0_47, %c0_48] : memref<8x8x128xf32, #tpu.memory_space<vmem>>, vector<1x8x128xf32>
    %132 = vector.shape_cast %131 : vector<1x8x128xf32> to vector<8x128xf32>
    %133 = arith.truncf %124 : vector<8x32xf32> to vector<8x32xbf16>
    %c0_49 = arith.constant 0 : index
    %c0_50 = arith.constant 0 : index
    %134 = vector.load %arg4[%c0_49, %c0_50] : memref<32x128xbf16, #tpu.memory_space<vmem>>, vector<32x128xbf16>
    %cst_51 = arith.constant dense<0.000000e+00> : vector<8x128xf32>
    %135 = tpu.matmul %133, %134, %cst_51 {dimension_numbers = #tpu.dot_dimension_numbers<[1], [0], [0], [1], [0, 0, 1, 1], [], []>} : vector<8x32xbf16>, vector<32x128xbf16>, vector<8x128xf32> -> vector<8x128xf32>
    %136 = arith.addf %132, %135 : vector<8x128xf32>
    %137 = math.tanh %136 : vector<8x128xf32>
    %138 = vector.broadcast %20 : vector<1x128xf32> to vector<8x128xf32>
    %139 = arith.mulf %137, %138 : vector<8x128xf32>
    %140 = vector.broadcast %23 : vector<1x128xf32> to vector<8x128xf32>
    %141 = arith.addf %139, %140 : vector<8x128xf32>
    %142 = vector.extract_strided_slice %141 {offsets = [0, 0], sizes = [8, 32], strides = [1, 1]} : vector<8x128xf32> to vector<8x32xf32>
    %143 = vector.extract_strided_slice %141 {offsets = [0, 32], sizes = [8, 32], strides = [1, 1]} : vector<8x128xf32> to vector<8x32xf32>
    %144 = vector.extract_strided_slice %141 {offsets = [0, 64], sizes = [8, 32], strides = [1, 1]} : vector<8x128xf32> to vector<8x32xf32>
    %145 = vector.extract_strided_slice %141 {offsets = [0, 96], sizes = [8, 32], strides = [1, 1]} : vector<8x128xf32> to vector<8x32xf32>
    %146 = arith.mulf %143, %122 : vector<8x32xf32>
    %147 = arith.mulf %142, %144 : vector<8x32xf32>
    %148 = arith.addf %146, %147 : vector<8x32xf32>
    %149 = math.tanh %148 : vector<8x32xf32>
    %150 = arith.mulf %145, %149 : vector<8x32xf32>
    %151 = arith.truncf %150 : vector<8x32xf32> to vector<8x32xbf16>
    %152 = arith.index_cast %c4_i32 : i32 to index
    %c0_52 = arith.constant 0 : index
    %c0_53 = arith.constant 0 : index
    %153 = vector.load %arg6[%152, %c0_52, %c0_53] : memref<8x8x32xbf16, #tpu.memory_space<vmem>>, vector<1x8x32xbf16>
    %154 = vector.shape_cast %153 : vector<1x8x32xbf16> to vector<8x32xbf16>
    %155 = vector.shape_cast %151 : vector<8x32xbf16> to vector<1x8x32xbf16>
    tpu.vector_store %arg6[%152, %c0_52, %c0_53], %155 {strides = array<i32>} : memref<8x8x32xbf16, #tpu.memory_space<vmem>>, vector<1x8x32xbf16>,
    %c5_i32 = arith.constant 5 : i32
    %156 = arith.index_cast %c5_i32 : i32 to index
    %c0_54 = arith.constant 0 : index
    %c0_55 = arith.constant 0 : index
    %157 = vector.load %arg9[%156, %c0_54, %c0_55] : memref<8x8x128xf32, #tpu.memory_space<vmem>>, vector<1x8x128xf32>
    %158 = vector.shape_cast %157 : vector<1x8x128xf32> to vector<8x128xf32>
    %159 = arith.truncf %150 : vector<8x32xf32> to vector<8x32xbf16>
    %c0_56 = arith.constant 0 : index
    %c0_57 = arith.constant 0 : index
    %160 = vector.load %arg4[%c0_56, %c0_57] : memref<32x128xbf16, #tpu.memory_space<vmem>>, vector<32x128xbf16>
    %cst_58 = arith.constant dense<0.000000e+00> : vector<8x128xf32>
    %161 = tpu.matmul %159, %160, %cst_58 {dimension_numbers = #tpu.dot_dimension_numbers<[1], [0], [0], [1], [0, 0, 1, 1], [], []>} : vector<8x32xbf16>, vector<32x128xbf16>, vector<8x128xf32> -> vector<8x128xf32>
    %162 = arith.addf %158, %161 : vector<8x128xf32>
    %163 = math.tanh %162 : vector<8x128xf32>
    %164 = vector.broadcast %20 : vector<1x128xf32> to vector<8x128xf32>
    %165 = arith.mulf %163, %164 : vector<8x128xf32>
    %166 = vector.broadcast %23 : vector<1x128xf32> to vector<8x128xf32>
    %167 = arith.addf %165, %166 : vector<8x128xf32>
    %168 = vector.extract_strided_slice %167 {offsets = [0, 0], sizes = [8, 32], strides = [1, 1]} : vector<8x128xf32> to vector<8x32xf32>
    %169 = vector.extract_strided_slice %167 {offsets = [0, 32], sizes = [8, 32], strides = [1, 1]} : vector<8x128xf32> to vector<8x32xf32>
    %170 = vector.extract_strided_slice %167 {offsets = [0, 64], sizes = [8, 32], strides = [1, 1]} : vector<8x128xf32> to vector<8x32xf32>
    %171 = vector.extract_strided_slice %167 {offsets = [0, 96], sizes = [8, 32], strides = [1, 1]} : vector<8x128xf32> to vector<8x32xf32>
    %172 = arith.mulf %169, %148 : vector<8x32xf32>
    %173 = arith.mulf %168, %170 : vector<8x32xf32>
    %174 = arith.addf %172, %173 : vector<8x32xf32>
    %175 = math.tanh %174 : vector<8x32xf32>
    %176 = arith.mulf %171, %175 : vector<8x32xf32>
    %177 = arith.truncf %176 : vector<8x32xf32> to vector<8x32xbf16>
    %178 = arith.index_cast %c5_i32 : i32 to index
    %c0_59 = arith.constant 0 : index
    %c0_60 = arith.constant 0 : index
    %179 = vector.load %arg6[%178, %c0_59, %c0_60] : memref<8x8x32xbf16, #tpu.memory_space<vmem>>, vector<1x8x32xbf16>
    %180 = vector.shape_cast %179 : vector<1x8x32xbf16> to vector<8x32xbf16>
    %181 = vector.shape_cast %177 : vector<8x32xbf16> to vector<1x8x32xbf16>
    tpu.vector_store %arg6[%178, %c0_59, %c0_60], %181 {strides = array<i32>} : memref<8x8x32xbf16, #tpu.memory_space<vmem>>, vector<1x8x32xbf16>,
    %c6_i32 = arith.constant 6 : i32
    %182 = arith.index_cast %c6_i32 : i32 to index
    %c0_61 = arith.constant 0 : index
    %c0_62 = arith.constant 0 : index
    %183 = vector.load %arg9[%182, %c0_61, %c0_62] : memref<8x8x128xf32, #tpu.memory_space<vmem>>, vector<1x8x128xf32>
    %184 = vector.shape_cast %183 : vector<1x8x128xf32> to vector<8x128xf32>
    %185 = arith.truncf %176 : vector<8x32xf32> to vector<8x32xbf16>
    %c0_63 = arith.constant 0 : index
    %c0_64 = arith.constant 0 : index
    %186 = vector.load %arg4[%c0_63, %c0_64] : memref<32x128xbf16, #tpu.memory_space<vmem>>, vector<32x128xbf16>
    %cst_65 = arith.constant dense<0.000000e+00> : vector<8x128xf32>
    %187 = tpu.matmul %185, %186, %cst_65 {dimension_numbers = #tpu.dot_dimension_numbers<[1], [0], [0], [1], [0, 0, 1, 1], [], []>} : vector<8x32xbf16>, vector<32x128xbf16>, vector<8x128xf32> -> vector<8x128xf32>
    %188 = arith.addf %184, %187 : vector<8x128xf32>
    %189 = math.tanh %188 : vector<8x128xf32>
    %190 = vector.broadcast %20 : vector<1x128xf32> to vector<8x128xf32>
    %191 = arith.mulf %189, %190 : vector<8x128xf32>
    %192 = vector.broadcast %23 : vector<1x128xf32> to vector<8x128xf32>
    %193 = arith.addf %191, %192 : vector<8x128xf32>
    %194 = vector.extract_strided_slice %193 {offsets = [0, 0], sizes = [8, 32], strides = [1, 1]} : vector<8x128xf32> to vector<8x32xf32>
    %195 = vector.extract_strided_slice %193 {offsets = [0, 32], sizes = [8, 32], strides = [1, 1]} : vector<8x128xf32> to vector<8x32xf32>
    %196 = vector.extract_strided_slice %193 {offsets = [0, 64], sizes = [8, 32], strides = [1, 1]} : vector<8x128xf32> to vector<8x32xf32>
    %197 = vector.extract_strided_slice %193 {offsets = [0, 96], sizes = [8, 32], strides = [1, 1]} : vector<8x128xf32> to vector<8x32xf32>
    %198 = arith.mulf %195, %174 : vector<8x32xf32>
    %199 = arith.mulf %194, %196 : vector<8x32xf32>
    %200 = arith.addf %198, %199 : vector<8x32xf32>
    %201 = math.tanh %200 : vector<8x32xf32>
    %202 = arith.mulf %197, %201 : vector<8x32xf32>
    %203 = arith.truncf %202 : vector<8x32xf32> to vector<8x32xbf16>
    %204 = arith.index_cast %c6_i32 : i32 to index
    %c0_66 = arith.constant 0 : index
    %c0_67 = arith.constant 0 : index
    %205 = vector.load %arg6[%204, %c0_66, %c0_67] : memref<8x8x32xbf16, #tpu.memory_space<vmem>>, vector<1x8x32xbf16>
    %206 = vector.shape_cast %205 : vector<1x8x32xbf16> to vector<8x32xbf16>
    %207 = vector.shape_cast %203 : vector<8x32xbf16> to vector<1x8x32xbf16>
    tpu.vector_store %arg6[%204, %c0_66, %c0_67], %207 {strides = array<i32>} : memref<8x8x32xbf16, #tpu.memory_space<vmem>>, vector<1x8x32xbf16>,
    %c7_i32 = arith.constant 7 : i32
    %208 = arith.index_cast %c7_i32 : i32 to index
    %c0_68 = arith.constant 0 : index
    %c0_69 = arith.constant 0 : index
    %209 = vector.load %arg9[%208, %c0_68, %c0_69] : memref<8x8x128xf32, #tpu.memory_space<vmem>>, vector<1x8x128xf32>
    %210 = vector.shape_cast %209 : vector<1x8x128xf32> to vector<8x128xf32>
    %211 = arith.truncf %202 : vector<8x32xf32> to vector<8x32xbf16>
    %c0_70 = arith.constant 0 : index
    %c0_71 = arith.constant 0 : index
    %212 = vector.load %arg4[%c0_70, %c0_71] : memref<32x128xbf16, #tpu.memory_space<vmem>>, vector<32x128xbf16>
    %cst_72 = arith.constant dense<0.000000e+00> : vector<8x128xf32>
    %213 = tpu.matmul %211, %212, %cst_72 {dimension_numbers = #tpu.dot_dimension_numbers<[1], [0], [0], [1], [0, 0, 1, 1], [], []>} : vector<8x32xbf16>, vector<32x128xbf16>, vector<8x128xf32> -> vector<8x128xf32>
    %214 = arith.addf %210, %213 : vector<8x128xf32>
    %215 = math.tanh %214 : vector<8x128xf32>
    %216 = vector.broadcast %20 : vector<1x128xf32> to vector<8x128xf32>
    %217 = arith.mulf %215, %216 : vector<8x128xf32>
    %218 = vector.broadcast %23 : vector<1x128xf32> to vector<8x128xf32>
    %219 = arith.addf %217, %218 : vector<8x128xf32>
    %220 = vector.extract_strided_slice %219 {offsets = [0, 0], sizes = [8, 32], strides = [1, 1]} : vector<8x128xf32> to vector<8x32xf32>
    %221 = vector.extract_strided_slice %219 {offsets = [0, 32], sizes = [8, 32], strides = [1, 1]} : vector<8x128xf32> to vector<8x32xf32>
    %222 = vector.extract_strided_slice %219 {offsets = [0, 64], sizes = [8, 32], strides = [1, 1]} : vector<8x128xf32> to vector<8x32xf32>
    %223 = vector.extract_strided_slice %219 {offsets = [0, 96], sizes = [8, 32], strides = [1, 1]} : vector<8x128xf32> to vector<8x32xf32>
    %224 = arith.mulf %221, %200 : vector<8x32xf32>
    %225 = arith.mulf %220, %222 : vector<8x32xf32>
    %226 = arith.addf %224, %225 : vector<8x32xf32>
    %227 = math.tanh %226 : vector<8x32xf32>
    %228 = arith.mulf %223, %227 : vector<8x32xf32>
    %229 = arith.truncf %228 : vector<8x32xf32> to vector<8x32xbf16>
    %230 = arith.index_cast %c7_i32 : i32 to index
    %c0_73 = arith.constant 0 : index
    %c0_74 = arith.constant 0 : index
    %231 = vector.load %arg6[%230, %c0_73, %c0_74] : memref<8x8x32xbf16, #tpu.memory_space<vmem>>, vector<1x8x32xbf16>
    %232 = vector.shape_cast %231 : vector<1x8x32xbf16> to vector<8x32xbf16>
    %233 = vector.shape_cast %229 : vector<8x32xbf16> to vector<1x8x32xbf16>
    tpu.vector_store %arg6[%230, %c0_73, %c0_74], %233 {strides = array<i32>} : memref<8x8x32xbf16, #tpu.memory_space<vmem>>, vector<1x8x32xbf16>,
    %c8_i32 = arith.constant 8 : i32
    %c0_75 = arith.constant 0 : index
    %c0_76 = arith.constant 0 : index
    %234 = vector.load %arg7[%c0_75, %c0_76] : memref<8x32xf32, #tpu.memory_space<vmem>>, vector<8x32xf32>
    tpu.vector_store %arg7[%c0_75, %c0_76], %228 {strides = array<i32>} : memref<8x32xf32, #tpu.memory_space<vmem>>, vector<8x32xf32>,
    %c0_77 = arith.constant 0 : index
    %c0_78 = arith.constant 0 : index
    %235 = vector.load %arg8[%c0_77, %c0_78] : memref<8x32xf32, #tpu.memory_space<vmem>>, vector<8x32xf32>
    tpu.vector_store %arg8[%c0_77, %c0_78], %226 {strides = array<i32>} : memref<8x32xf32, #tpu.memory_space<vmem>>, vector<8x32xf32>,
    return
  }
  func.func @transform_0(%arg0: i32, %arg1: i32) -> (i32, i32, i32) {
    %c0_i32 = arith.constant 0 : i32
    %c0_i32_0 = arith.constant 0 : i32
    return %arg1, %arg0, %c0_i32 : i32, i32, i32
  }
  func.func @transform_1(%arg0: i32, %arg1: i32) -> (i32, i32) {
    %c0_i32 = arith.constant 0 : i32
    %c0_i32_0 = arith.constant 0 : i32
    %c0_i32_1 = arith.constant 0 : i32
    return %c0_i32, %c0_i32_0 : i32, i32
  }
  func.func @transform_2(%arg0: i32, %arg1: i32) -> (i32, i32) {
    %c0_i32 = arith.constant 0 : i32
    %c0_i32_0 = arith.constant 0 : i32
    %c0_i32_1 = arith.constant 0 : i32
    return %c0_i32, %c0_i32_0 : i32, i32
  }
  func.func @transform_3(%arg0: i32, %arg1: i32) -> (i32, i32) {
    %c0_i32 = arith.constant 0 : i32
    %c0_i32_0 = arith.constant 0 : i32
    %c0_i32_1 = arith.constant 0 : i32
    return %c0_i32, %c0_i32_0 : i32, i32
  }
  func.func @transform_4(%arg0: i32, %arg1: i32) -> (i32, i32, i32) {
    %c0_i32 = arith.constant 0 : i32
    %c0_i32_0 = arith.constant 0 : i32
    return %arg1, %arg0, %c0_i32 : i32, i32, i32
  }
}

module attributes {stable_mosaic.version = 11 : i64} {
  func.func @_lstm_attn_fc_kernel(%arg0: i32, %arg1: i32, %arg2: memref<8x8x32xbf16, #tpu.memory_space<vmem>>, %arg3: memref<32x128xbf16, #tpu.memory_space<vmem>>, %arg4: memref<32x128xbf16, #tpu.memory_space<vmem>>, %arg5: memref<1x128xf32, #tpu.memory_space<vmem>>, %arg6: memref<1x32xf32, #tpu.memory_space<vmem>>, %arg7: memref<32x16xbf16, #tpu.memory_space<vmem>>, %arg8: memref<1x16xf32, #tpu.memory_space<vmem>>, %arg9: memref<8x16xf32, #tpu.memory_space<vmem>>, %arg10: memref<8x32xf32, #tpu.memory_space<vmem>>, %arg11: memref<8x32xf32, #tpu.memory_space<vmem>>, %arg12: memref<8x1xf32, #tpu.memory_space<vmem>>, %arg13: memref<8x1xf32, #tpu.memory_space<vmem>>, %arg14: memref<8x32xf32, #tpu.memory_space<vmem>>, %arg15: memref<8x8x128xf32, #tpu.memory_space<vmem>>) attributes {dimension_semantics = [#tpu.dimension_semantics<parallel>, #tpu.dimension_semantics<arbitrary>], iteration_bounds = array<i64: 1, 1>, scalar_prefetch = 0 : i64, scratch_operands = 6 : i64, tpu.core_type = #tpu.core_type<tc>, window_params = [{transform_indices = @transform_0, window_bounds = array<i64: 8, 8, 32>}, {pipeline_mode = #tpu.pipeline_mode<synchronous>, transform_indices = @transform_1, window_bounds = array<i64: 32, 128>}, {pipeline_mode = #tpu.pipeline_mode<synchronous>, transform_indices = @transform_2, window_bounds = array<i64: 32, 128>}, {pipeline_mode = #tpu.pipeline_mode<synchronous>, transform_indices = @transform_3, window_bounds = array<i64: 1, 128>}, {pipeline_mode = #tpu.pipeline_mode<synchronous>, transform_indices = @transform_4, window_bounds = array<i64: 1, 32>}, {pipeline_mode = #tpu.pipeline_mode<synchronous>, transform_indices = @transform_5, window_bounds = array<i64: 32, 16>}, {pipeline_mode = #tpu.pipeline_mode<synchronous>, transform_indices = @transform_6, window_bounds = array<i64: 1, 16>}, {transform_indices = @transform_7, window_bounds = array<i64: 8, 16>}]} {
    %c0_i32 = arith.constant 0 : i32
    %0 = arith.cmpi eq, %arg1, %c0_i32 : i32
    %1 = arith.extui %0 : i1 to i32
    %c0_i32_0 = arith.constant 0 : i32
    %2 = arith.cmpi ne, %1, %c0_i32_0 : i32
    scf.if %2 {
      %cst_104 = arith.constant 0.000000e+00 : f32
      %375 = vector.broadcast %cst_104 : f32 to vector<8x32xf32>
      %c0_105 = arith.constant 0 : index
      %c0_106 = arith.constant 0 : index
      %376 = vector.load %arg10[%c0_105, %c0_106] : memref<8x32xf32, #tpu.memory_space<vmem>>, vector<8x32xf32>
      tpu.vector_store %arg10[%c0_105, %c0_106], %375 {strides = array<i32>} : memref<8x32xf32, #tpu.memory_space<vmem>>, vector<8x32xf32>,
      %cst_107 = arith.constant 0.000000e+00 : f32
      %377 = vector.broadcast %cst_107 : f32 to vector<8x32xf32>
      %c0_108 = arith.constant 0 : index
      %c0_109 = arith.constant 0 : index
      %378 = vector.load %arg11[%c0_108, %c0_109] : memref<8x32xf32, #tpu.memory_space<vmem>>, vector<8x32xf32>
      tpu.vector_store %arg11[%c0_108, %c0_109], %377 {strides = array<i32>} : memref<8x32xf32, #tpu.memory_space<vmem>>, vector<8x32xf32>,
      %cst_110 = arith.constant -1.000000e+30 : f32
      %379 = vector.broadcast %cst_110 : f32 to vector<8x1xf32>
      %c0_111 = arith.constant 0 : index
      %c0_112 = arith.constant 0 : index
      %380 = vector.load %arg12[%c0_111, %c0_112] : memref<8x1xf32, #tpu.memory_space<vmem>>, vector<8x1xf32>
      tpu.vector_store %arg12[%c0_111, %c0_112], %379 {strides = array<i32>} : memref<8x1xf32, #tpu.memory_space<vmem>>, vector<8x1xf32>,
      %cst_113 = arith.constant 0.000000e+00 : f32
      %381 = vector.broadcast %cst_113 : f32 to vector<8x1xf32>
      %c0_114 = arith.constant 0 : index
      %c0_115 = arith.constant 0 : index
      %382 = vector.load %arg13[%c0_114, %c0_115] : memref<8x1xf32, #tpu.memory_space<vmem>>, vector<8x1xf32>
      tpu.vector_store %arg13[%c0_114, %c0_115], %381 {strides = array<i32>} : memref<8x1xf32, #tpu.memory_space<vmem>>, vector<8x1xf32>,
      %cst_116 = arith.constant 0.000000e+00 : f32
      %383 = vector.broadcast %cst_116 : f32 to vector<8x32xf32>
      %c0_117 = arith.constant 0 : index
      %c0_118 = arith.constant 0 : index
      %384 = vector.load %arg14[%c0_117, %c0_118] : memref<8x32xf32, #tpu.memory_space<vmem>>, vector<8x32xf32>
      tpu.vector_store %arg14[%c0_117, %c0_118], %383 {strides = array<i32>} : memref<8x32xf32, #tpu.memory_space<vmem>>, vector<8x32xf32>,
    } else {
    }
    %c0 = arith.constant 0 : index
    %c0_1 = arith.constant 0 : index
    %c0_2 = arith.constant 0 : index
    %3 = vector.load %arg2[%c0, %c0_1, %c0_2] : memref<8x8x32xbf16, #tpu.memory_space<vmem>>, vector<8x8x32xbf16>
    %4 = vector.shape_cast %3 : vector<8x8x32xbf16> to vector<64x32xbf16>
    %c0_3 = arith.constant 0 : index
    %c0_4 = arith.constant 0 : index
    %5 = vector.load %arg3[%c0_3, %c0_4] : memref<32x128xbf16, #tpu.memory_space<vmem>>, vector<32x128xbf16>
    %cst = arith.constant dense<0.000000e+00> : vector<64x128xf32>
    %6 = tpu.matmul %4, %5, %cst {dimension_numbers = #tpu.dot_dimension_numbers<[1], [0], [0], [1], [0, 0, 1, 1], [], []>} : vector<64x32xbf16>, vector<32x128xbf16>, vector<64x128xf32> -> vector<64x128xf32>
    %c0_5 = arith.constant 0 : index
    %c0_6 = arith.constant 0 : index
    %7 = vector.load %arg5[%c0_5, %c0_6] : memref<1x128xf32, #tpu.memory_space<vmem>>, vector<1x128xf32>
    %8 = vector.broadcast %7 : vector<1x128xf32> to vector<64x128xf32>
    %9 = arith.addf %6, %8 : vector<64x128xf32>
    %10 = vector.shape_cast %9 : vector<64x128xf32> to vector<8x8x128xf32>
    %c0_7 = arith.constant 0 : index
    %c0_8 = arith.constant 0 : index
    %c0_9 = arith.constant 0 : index
    %11 = vector.load %arg15[%c0_7, %c0_8, %c0_9] : memref<8x8x128xf32, #tpu.memory_space<vmem>>, vector<8x8x128xf32>
    tpu.vector_store %arg15[%c0_7, %c0_8, %c0_9], %10 {strides = array<i32>} : memref<8x8x128xf32, #tpu.memory_space<vmem>>, vector<8x8x128xf32>,
    %12 = tpu.iota {dimensions = array<i32: 1>} : vector<1x128xi32>
    %c64_i32 = arith.constant 64 : i32
    %13 = vector.broadcast %c64_i32 : i32 to vector<1x128xi32>
    %14 = arith.cmpi sge, %12, %13 : vector<1x128xi32>
    %c96_i32 = arith.constant 96 : i32
    %15 = vector.broadcast %c96_i32 : i32 to vector<1x128xi32>
    %16 = arith.cmpi slt, %12, %15 : vector<1x128xi32>
    %17 = arith.andi %14, %16 : vector<1x128xi1>
    %cst_10 = arith.constant 1.000000e+00 : f32
    %cst_11 = arith.constant 5.000000e-01 : f32
    %18 = vector.broadcast %cst_10 : f32 to vector<1x128xf32>
    %19 = vector.broadcast %cst_11 : f32 to vector<1x128xf32>
    %20 = arith.select %17, %18, %19 : vector<1x128xi1>, vector<1x128xf32>
    %cst_12 = arith.constant 0.000000e+00 : f32
    %cst_13 = arith.constant 5.000000e-01 : f32
    %21 = vector.broadcast %cst_12 : f32 to vector<1x128xf32>
    %22 = vector.broadcast %cst_13 : f32 to vector<1x128xf32>
    %23 = arith.select %17, %21, %22 : vector<1x128xi1>, vector<1x128xf32>
    %c0_14 = arith.constant 0 : index
    %c0_15 = arith.constant 0 : index
    %24 = vector.load %arg6[%c0_14, %c0_15] : memref<1x32xf32, #tpu.memory_space<vmem>>, vector<1x32xf32>
    %c8_i32 = arith.constant 8 : i32
    %25 = arith.muli %arg1, %c8_i32 : i32
    %c0_16 = arith.constant 0 : index
    %c0_17 = arith.constant 0 : index
    %26 = vector.load %arg10[%c0_16, %c0_17] : memref<8x32xf32, #tpu.memory_space<vmem>>, vector<8x32xf32>
    %c0_18 = arith.constant 0 : index
    %c0_19 = arith.constant 0 : index
    %27 = vector.load %arg11[%c0_18, %c0_19] : memref<8x32xf32, #tpu.memory_space<vmem>>, vector<8x32xf32>
    %c0_20 = arith.constant 0 : index
    %c0_21 = arith.constant 0 : index
    %28 = vector.load %arg12[%c0_20, %c0_21] : memref<8x1xf32, #tpu.memory_space<vmem>>, vector<8x1xf32>
    %c0_22 = arith.constant 0 : index
    %c0_23 = arith.constant 0 : index
    %29 = vector.load %arg13[%c0_22, %c0_23] : memref<8x1xf32, #tpu.memory_space<vmem>>, vector<8x1xf32>
    %c0_24 = arith.constant 0 : index
    %c0_25 = arith.constant 0 : index
    %30 = vector.load %arg14[%c0_24, %c0_25] : memref<8x32xf32, #tpu.memory_space<vmem>>, vector<8x32xf32>
    %c0_i32_26 = arith.constant 0 : i32
    %31 = arith.index_cast %c0_i32_26 : i32 to index
    %c0_27 = arith.constant 0 : index
    %c0_28 = arith.constant 0 : index
    %32 = vector.load %arg15[%31, %c0_27, %c0_28] : memref<8x8x128xf32, #tpu.memory_space<vmem>>, vector<1x8x128xf32>
    %33 = vector.shape_cast %32 : vector<1x8x128xf32> to vector<8x128xf32>
    %34 = arith.truncf %26 : vector<8x32xf32> to vector<8x32xbf16>
    %c0_29 = arith.constant 0 : index
    %c0_30 = arith.constant 0 : index
    %35 = vector.load %arg4[%c0_29, %c0_30] : memref<32x128xbf16, #tpu.memory_space<vmem>>, vector<32x128xbf16>
    %cst_31 = arith.constant dense<0.000000e+00> : vector<8x128xf32>
    %36 = tpu.matmul %34, %35, %cst_31 {dimension_numbers = #tpu.dot_dimension_numbers<[1], [0], [0], [1], [0, 0, 1, 1], [], []>} : vector<8x32xbf16>, vector<32x128xbf16>, vector<8x128xf32> -> vector<8x128xf32>
    %37 = arith.addf %33, %36 : vector<8x128xf32>
    %38 = math.tanh %37 : vector<8x128xf32>
    %39 = vector.broadcast %20 : vector<1x128xf32> to vector<8x128xf32>
    %40 = arith.mulf %38, %39 : vector<8x128xf32>
    %41 = vector.broadcast %23 : vector<1x128xf32> to vector<8x128xf32>
    %42 = arith.addf %40, %41 : vector<8x128xf32>
    %43 = vector.extract_strided_slice %42 {offsets = [0, 0], sizes = [8, 32], strides = [1, 1]} : vector<8x128xf32> to vector<8x32xf32>
    %44 = vector.extract_strided_slice %42 {offsets = [0, 32], sizes = [8, 32], strides = [1, 1]} : vector<8x128xf32> to vector<8x32xf32>
    %45 = vector.extract_strided_slice %42 {offsets = [0, 64], sizes = [8, 32], strides = [1, 1]} : vector<8x128xf32> to vector<8x32xf32>
    %46 = vector.extract_strided_slice %42 {offsets = [0, 96], sizes = [8, 32], strides = [1, 1]} : vector<8x128xf32> to vector<8x32xf32>
    %47 = arith.mulf %44, %27 : vector<8x32xf32>
    %48 = arith.mulf %43, %45 : vector<8x32xf32>
    %49 = arith.addf %47, %48 : vector<8x32xf32>
    %50 = math.tanh %49 : vector<8x32xf32>
    %51 = arith.mulf %46, %50 : vector<8x32xf32>
    %52 = math.tanh %51 : vector<8x32xf32>
    %53 = vector.broadcast %24 : vector<1x32xf32> to vector<8x32xf32>
    %54 = arith.mulf %52, %53 : vector<8x32xf32>
    %cst_32 = arith.constant dense<0.000000e+00> : vector<8xf32>
    %55 = vector.multi_reduction <add>, %54, %cst_32 [1] : vector<8x32xf32> to vector<8xf32>
    %56 = vector.shape_cast %55 : vector<8xf32> to vector<8x1xf32>
    %57 = arith.addi %25, %c0_i32_26 : i32
    %c8_i32_33 = arith.constant 8 : i32
    %58 = arith.cmpi slt, %57, %c8_i32_33 : i32
    %cst_34 = arith.constant -1.000000e+30 : f32
    %59 = vector.broadcast %cst_34 : f32 to vector<8x1xf32>
    %60 = arith.select %58, %56, %59 : vector<8x1xf32>
    %61 = arith.maximumf %28, %60 : vector<8x1xf32>
    %62 = arith.subf %28, %61 : vector<8x1xf32>
    %63 = math.exp %62 : vector<8x1xf32>
    %64 = arith.subf %60, %61 : vector<8x1xf32>
    %65 = math.exp %64 : vector<8x1xf32>
    %66 = arith.mulf %63, %29 : vector<8x1xf32>
    %67 = arith.addf %66, %65 : vector<8x1xf32>
    %68 = vector.broadcast %63 : vector<8x1xf32> to vector<8x32xf32>
    %69 = arith.mulf %68, %30 : vector<8x32xf32>
    %70 = vector.broadcast %65 : vector<8x1xf32> to vector<8x32xf32>
    %71 = arith.mulf %70, %51 : vector<8x32xf32>
    %72 = arith.addf %69, %71 : vector<8x32xf32>
    %c1_i32 = arith.constant 1 : i32
    %73 = arith.index_cast %c1_i32 : i32 to index
    %c0_35 = arith.constant 0 : index
    %c0_36 = arith.constant 0 : index
    %74 = vector.load %arg15[%73, %c0_35, %c0_36] : memref<8x8x128xf32, #tpu.memory_space<vmem>>, vector<1x8x128xf32>
    %75 = vector.shape_cast %74 : vector<1x8x128xf32> to vector<8x128xf32>
    %76 = arith.truncf %51 : vector<8x32xf32> to vector<8x32xbf16>
    %c0_37 = arith.constant 0 : index
    %c0_38 = arith.constant 0 : index
    %77 = vector.load %arg4[%c0_37, %c0_38] : memref<32x128xbf16, #tpu.memory_space<vmem>>, vector<32x128xbf16>
    %cst_39 = arith.constant dense<0.000000e+00> : vector<8x128xf32>
    %78 = tpu.matmul %76, %77, %cst_39 {dimension_numbers = #tpu.dot_dimension_numbers<[1], [0], [0], [1], [0, 0, 1, 1], [], []>} : vector<8x32xbf16>, vector<32x128xbf16>, vector<8x128xf32> -> vector<8x128xf32>
    %79 = arith.addf %75, %78 : vector<8x128xf32>
    %80 = math.tanh %79 : vector<8x128xf32>
    %81 = vector.broadcast %20 : vector<1x128xf32> to vector<8x128xf32>
    %82 = arith.mulf %80, %81 : vector<8x128xf32>
    %83 = vector.broadcast %23 : vector<1x128xf32> to vector<8x128xf32>
    %84 = arith.addf %82, %83 : vector<8x128xf32>
    %85 = vector.extract_strided_slice %84 {offsets = [0, 0], sizes = [8, 32], strides = [1, 1]} : vector<8x128xf32> to vector<8x32xf32>
    %86 = vector.extract_strided_slice %84 {offsets = [0, 32], sizes = [8, 32], strides = [1, 1]} : vector<8x128xf32> to vector<8x32xf32>
    %87 = vector.extract_strided_slice %84 {offsets = [0, 64], sizes = [8, 32], strides = [1, 1]} : vector<8x128xf32> to vector<8x32xf32>
    %88 = vector.extract_strided_slice %84 {offsets = [0, 96], sizes = [8, 32], strides = [1, 1]} : vector<8x128xf32> to vector<8x32xf32>
    %89 = arith.mulf %86, %49 : vector<8x32xf32>
    %90 = arith.mulf %85, %87 : vector<8x32xf32>
    %91 = arith.addf %89, %90 : vector<8x32xf32>
    %92 = math.tanh %91 : vector<8x32xf32>
    %93 = arith.mulf %88, %92 : vector<8x32xf32>
    %94 = math.tanh %93 : vector<8x32xf32>
    %95 = vector.broadcast %24 : vector<1x32xf32> to vector<8x32xf32>
    %96 = arith.mulf %94, %95 : vector<8x32xf32>
    %cst_40 = arith.constant dense<0.000000e+00> : vector<8xf32>
    %97 = vector.multi_reduction <add>, %96, %cst_40 [1] : vector<8x32xf32> to vector<8xf32>
    %98 = vector.shape_cast %97 : vector<8xf32> to vector<8x1xf32>
    %99 = arith.addi %25, %c1_i32 : i32
    %c8_i32_41 = arith.constant 8 : i32
    %100 = arith.cmpi slt, %99, %c8_i32_41 : i32
    %cst_42 = arith.constant -1.000000e+30 : f32
    %101 = vector.broadcast %cst_42 : f32 to vector<8x1xf32>
    %102 = arith.select %100, %98, %101 : vector<8x1xf32>
    %103 = arith.maximumf %61, %102 : vector<8x1xf32>
    %104 = arith.subf %61, %103 : vector<8x1xf32>
    %105 = math.exp %104 : vector<8x1xf32>
    %106 = arith.subf %102, %103 : vector<8x1xf32>
    %107 = math.exp %106 : vector<8x1xf32>
    %108 = arith.mulf %105, %67 : vector<8x1xf32>
    %109 = arith.addf %108, %107 : vector<8x1xf32>
    %110 = vector.broadcast %105 : vector<8x1xf32> to vector<8x32xf32>
    %111 = arith.mulf %110, %72 : vector<8x32xf32>
    %112 = vector.broadcast %107 : vector<8x1xf32> to vector<8x32xf32>
    %113 = arith.mulf %112, %93 : vector<8x32xf32>
    %114 = arith.addf %111, %113 : vector<8x32xf32>
    %c2_i32 = arith.constant 2 : i32
    %115 = arith.index_cast %c2_i32 : i32 to index
    %c0_43 = arith.constant 0 : index
    %c0_44 = arith.constant 0 : index
    %116 = vector.load %arg15[%115, %c0_43, %c0_44] : memref<8x8x128xf32, #tpu.memory_space<vmem>>, vector<1x8x128xf32>
    %117 = vector.shape_cast %116 : vector<1x8x128xf32> to vector<8x128xf32>
    %118 = arith.truncf %93 : vector<8x32xf32> to vector<8x32xbf16>
    %c0_45 = arith.constant 0 : index
    %c0_46 = arith.constant 0 : index
    %119 = vector.load %arg4[%c0_45, %c0_46] : memref<32x128xbf16, #tpu.memory_space<vmem>>, vector<32x128xbf16>
    %cst_47 = arith.constant dense<0.000000e+00> : vector<8x128xf32>
    %120 = tpu.matmul %118, %119, %cst_47 {dimension_numbers = #tpu.dot_dimension_numbers<[1], [0], [0], [1], [0, 0, 1, 1], [], []>} : vector<8x32xbf16>, vector<32x128xbf16>, vector<8x128xf32> -> vector<8x128xf32>
    %121 = arith.addf %117, %120 : vector<8x128xf32>
    %122 = math.tanh %121 : vector<8x128xf32>
    %123 = vector.broadcast %20 : vector<1x128xf32> to vector<8x128xf32>
    %124 = arith.mulf %122, %123 : vector<8x128xf32>
    %125 = vector.broadcast %23 : vector<1x128xf32> to vector<8x128xf32>
    %126 = arith.addf %124, %125 : vector<8x128xf32>
    %127 = vector.extract_strided_slice %126 {offsets = [0, 0], sizes = [8, 32], strides = [1, 1]} : vector<8x128xf32> to vector<8x32xf32>
    %128 = vector.extract_strided_slice %126 {offsets = [0, 32], sizes = [8, 32], strides = [1, 1]} : vector<8x128xf32> to vector<8x32xf32>
    %129 = vector.extract_strided_slice %126 {offsets = [0, 64], sizes = [8, 32], strides = [1, 1]} : vector<8x128xf32> to vector<8x32xf32>
    %130 = vector.extract_strided_slice %126 {offsets = [0, 96], sizes = [8, 32], strides = [1, 1]} : vector<8x128xf32> to vector<8x32xf32>
    %131 = arith.mulf %128, %91 : vector<8x32xf32>
    %132 = arith.mulf %127, %129 : vector<8x32xf32>
    %133 = arith.addf %131, %132 : vector<8x32xf32>
    %134 = math.tanh %133 : vector<8x32xf32>
    %135 = arith.mulf %130, %134 : vector<8x32xf32>
    %136 = math.tanh %135 : vector<8x32xf32>
    %137 = vector.broadcast %24 : vector<1x32xf32> to vector<8x32xf32>
    %138 = arith.mulf %136, %137 : vector<8x32xf32>
    %cst_48 = arith.constant dense<0.000000e+00> : vector<8xf32>
    %139 = vector.multi_reduction <add>, %138, %cst_48 [1] : vector<8x32xf32> to vector<8xf32>
    %140 = vector.shape_cast %139 : vector<8xf32> to vector<8x1xf32>
    %141 = arith.addi %25, %c2_i32 : i32
    %c8_i32_49 = arith.constant 8 : i32
    %142 = arith.cmpi slt, %141, %c8_i32_49 : i32
    %cst_50 = arith.constant -1.000000e+30 : f32
    %143 = vector.broadcast %cst_50 : f32 to vector<8x1xf32>
    %144 = arith.select %142, %140, %143 : vector<8x1xf32>
    %145 = arith.maximumf %103, %144 : vector<8x1xf32>
    %146 = arith.subf %103, %145 : vector<8x1xf32>
    %147 = math.exp %146 : vector<8x1xf32>
    %148 = arith.subf %144, %145 : vector<8x1xf32>
    %149 = math.exp %148 : vector<8x1xf32>
    %150 = arith.mulf %147, %109 : vector<8x1xf32>
    %151 = arith.addf %150, %149 : vector<8x1xf32>
    %152 = vector.broadcast %147 : vector<8x1xf32> to vector<8x32xf32>
    %153 = arith.mulf %152, %114 : vector<8x32xf32>
    %154 = vector.broadcast %149 : vector<8x1xf32> to vector<8x32xf32>
    %155 = arith.mulf %154, %135 : vector<8x32xf32>
    %156 = arith.addf %153, %155 : vector<8x32xf32>
    %c3_i32 = arith.constant 3 : i32
    %157 = arith.index_cast %c3_i32 : i32 to index
    %c0_51 = arith.constant 0 : index
    %c0_52 = arith.constant 0 : index
    %158 = vector.load %arg15[%157, %c0_51, %c0_52] : memref<8x8x128xf32, #tpu.memory_space<vmem>>, vector<1x8x128xf32>
    %159 = vector.shape_cast %158 : vector<1x8x128xf32> to vector<8x128xf32>
    %160 = arith.truncf %135 : vector<8x32xf32> to vector<8x32xbf16>
    %c0_53 = arith.constant 0 : index
    %c0_54 = arith.constant 0 : index
    %161 = vector.load %arg4[%c0_53, %c0_54] : memref<32x128xbf16, #tpu.memory_space<vmem>>, vector<32x128xbf16>
    %cst_55 = arith.constant dense<0.000000e+00> : vector<8x128xf32>
    %162 = tpu.matmul %160, %161, %cst_55 {dimension_numbers = #tpu.dot_dimension_numbers<[1], [0], [0], [1], [0, 0, 1, 1], [], []>} : vector<8x32xbf16>, vector<32x128xbf16>, vector<8x128xf32> -> vector<8x128xf32>
    %163 = arith.addf %159, %162 : vector<8x128xf32>
    %164 = math.tanh %163 : vector<8x128xf32>
    %165 = vector.broadcast %20 : vector<1x128xf32> to vector<8x128xf32>
    %166 = arith.mulf %164, %165 : vector<8x128xf32>
    %167 = vector.broadcast %23 : vector<1x128xf32> to vector<8x128xf32>
    %168 = arith.addf %166, %167 : vector<8x128xf32>
    %169 = vector.extract_strided_slice %168 {offsets = [0, 0], sizes = [8, 32], strides = [1, 1]} : vector<8x128xf32> to vector<8x32xf32>
    %170 = vector.extract_strided_slice %168 {offsets = [0, 32], sizes = [8, 32], strides = [1, 1]} : vector<8x128xf32> to vector<8x32xf32>
    %171 = vector.extract_strided_slice %168 {offsets = [0, 64], sizes = [8, 32], strides = [1, 1]} : vector<8x128xf32> to vector<8x32xf32>
    %172 = vector.extract_strided_slice %168 {offsets = [0, 96], sizes = [8, 32], strides = [1, 1]} : vector<8x128xf32> to vector<8x32xf32>
    %173 = arith.mulf %170, %133 : vector<8x32xf32>
    %174 = arith.mulf %169, %171 : vector<8x32xf32>
    %175 = arith.addf %173, %174 : vector<8x32xf32>
    %176 = math.tanh %175 : vector<8x32xf32>
    %177 = arith.mulf %172, %176 : vector<8x32xf32>
    %178 = math.tanh %177 : vector<8x32xf32>
    %179 = vector.broadcast %24 : vector<1x32xf32> to vector<8x32xf32>
    %180 = arith.mulf %178, %179 : vector<8x32xf32>
    %cst_56 = arith.constant dense<0.000000e+00> : vector<8xf32>
    %181 = vector.multi_reduction <add>, %180, %cst_56 [1] : vector<8x32xf32> to vector<8xf32>
    %182 = vector.shape_cast %181 : vector<8xf32> to vector<8x1xf32>
    %183 = arith.addi %25, %c3_i32 : i32
    %c8_i32_57 = arith.constant 8 : i32
    %184 = arith.cmpi slt, %183, %c8_i32_57 : i32
    %cst_58 = arith.constant -1.000000e+30 : f32
    %185 = vector.broadcast %cst_58 : f32 to vector<8x1xf32>
    %186 = arith.select %184, %182, %185 : vector<8x1xf32>
    %187 = arith.maximumf %145, %186 : vector<8x1xf32>
    %188 = arith.subf %145, %187 : vector<8x1xf32>
    %189 = math.exp %188 : vector<8x1xf32>
    %190 = arith.subf %186, %187 : vector<8x1xf32>
    %191 = math.exp %190 : vector<8x1xf32>
    %192 = arith.mulf %189, %151 : vector<8x1xf32>
    %193 = arith.addf %192, %191 : vector<8x1xf32>
    %194 = vector.broadcast %189 : vector<8x1xf32> to vector<8x32xf32>
    %195 = arith.mulf %194, %156 : vector<8x32xf32>
    %196 = vector.broadcast %191 : vector<8x1xf32> to vector<8x32xf32>
    %197 = arith.mulf %196, %177 : vector<8x32xf32>
    %198 = arith.addf %195, %197 : vector<8x32xf32>
    %c4_i32 = arith.constant 4 : i32
    %199 = arith.index_cast %c4_i32 : i32 to index
    %c0_59 = arith.constant 0 : index
    %c0_60 = arith.constant 0 : index
    %200 = vector.load %arg15[%199, %c0_59, %c0_60] : memref<8x8x128xf32, #tpu.memory_space<vmem>>, vector<1x8x128xf32>
    %201 = vector.shape_cast %200 : vector<1x8x128xf32> to vector<8x128xf32>
    %202 = arith.truncf %177 : vector<8x32xf32> to vector<8x32xbf16>
    %c0_61 = arith.constant 0 : index
    %c0_62 = arith.constant 0 : index
    %203 = vector.load %arg4[%c0_61, %c0_62] : memref<32x128xbf16, #tpu.memory_space<vmem>>, vector<32x128xbf16>
    %cst_63 = arith.constant dense<0.000000e+00> : vector<8x128xf32>
    %204 = tpu.matmul %202, %203, %cst_63 {dimension_numbers = #tpu.dot_dimension_numbers<[1], [0], [0], [1], [0, 0, 1, 1], [], []>} : vector<8x32xbf16>, vector<32x128xbf16>, vector<8x128xf32> -> vector<8x128xf32>
    %205 = arith.addf %201, %204 : vector<8x128xf32>
    %206 = math.tanh %205 : vector<8x128xf32>
    %207 = vector.broadcast %20 : vector<1x128xf32> to vector<8x128xf32>
    %208 = arith.mulf %206, %207 : vector<8x128xf32>
    %209 = vector.broadcast %23 : vector<1x128xf32> to vector<8x128xf32>
    %210 = arith.addf %208, %209 : vector<8x128xf32>
    %211 = vector.extract_strided_slice %210 {offsets = [0, 0], sizes = [8, 32], strides = [1, 1]} : vector<8x128xf32> to vector<8x32xf32>
    %212 = vector.extract_strided_slice %210 {offsets = [0, 32], sizes = [8, 32], strides = [1, 1]} : vector<8x128xf32> to vector<8x32xf32>
    %213 = vector.extract_strided_slice %210 {offsets = [0, 64], sizes = [8, 32], strides = [1, 1]} : vector<8x128xf32> to vector<8x32xf32>
    %214 = vector.extract_strided_slice %210 {offsets = [0, 96], sizes = [8, 32], strides = [1, 1]} : vector<8x128xf32> to vector<8x32xf32>
    %215 = arith.mulf %212, %175 : vector<8x32xf32>
    %216 = arith.mulf %211, %213 : vector<8x32xf32>
    %217 = arith.addf %215, %216 : vector<8x32xf32>
    %218 = math.tanh %217 : vector<8x32xf32>
    %219 = arith.mulf %214, %218 : vector<8x32xf32>
    %220 = math.tanh %219 : vector<8x32xf32>
    %221 = vector.broadcast %24 : vector<1x32xf32> to vector<8x32xf32>
    %222 = arith.mulf %220, %221 : vector<8x32xf32>
    %cst_64 = arith.constant dense<0.000000e+00> : vector<8xf32>
    %223 = vector.multi_reduction <add>, %222, %cst_64 [1] : vector<8x32xf32> to vector<8xf32>
    %224 = vector.shape_cast %223 : vector<8xf32> to vector<8x1xf32>
    %225 = arith.addi %25, %c4_i32 : i32
    %c8_i32_65 = arith.constant 8 : i32
    %226 = arith.cmpi slt, %225, %c8_i32_65 : i32
    %cst_66 = arith.constant -1.000000e+30 : f32
    %227 = vector.broadcast %cst_66 : f32 to vector<8x1xf32>
    %228 = arith.select %226, %224, %227 : vector<8x1xf32>
    %229 = arith.maximumf %187, %228 : vector<8x1xf32>
    %230 = arith.subf %187, %229 : vector<8x1xf32>
    %231 = math.exp %230 : vector<8x1xf32>
    %232 = arith.subf %228, %229 : vector<8x1xf32>
    %233 = math.exp %232 : vector<8x1xf32>
    %234 = arith.mulf %231, %193 : vector<8x1xf32>
    %235 = arith.addf %234, %233 : vector<8x1xf32>
    %236 = vector.broadcast %231 : vector<8x1xf32> to vector<8x32xf32>
    %237 = arith.mulf %236, %198 : vector<8x32xf32>
    %238 = vector.broadcast %233 : vector<8x1xf32> to vector<8x32xf32>
    %239 = arith.mulf %238, %219 : vector<8x32xf32>
    %240 = arith.addf %237, %239 : vector<8x32xf32>
    %c5_i32 = arith.constant 5 : i32
    %241 = arith.index_cast %c5_i32 : i32 to index
    %c0_67 = arith.constant 0 : index
    %c0_68 = arith.constant 0 : index
    %242 = vector.load %arg15[%241, %c0_67, %c0_68] : memref<8x8x128xf32, #tpu.memory_space<vmem>>, vector<1x8x128xf32>
    %243 = vector.shape_cast %242 : vector<1x8x128xf32> to vector<8x128xf32>
    %244 = arith.truncf %219 : vector<8x32xf32> to vector<8x32xbf16>
    %c0_69 = arith.constant 0 : index
    %c0_70 = arith.constant 0 : index
    %245 = vector.load %arg4[%c0_69, %c0_70] : memref<32x128xbf16, #tpu.memory_space<vmem>>, vector<32x128xbf16>
    %cst_71 = arith.constant dense<0.000000e+00> : vector<8x128xf32>
    %246 = tpu.matmul %244, %245, %cst_71 {dimension_numbers = #tpu.dot_dimension_numbers<[1], [0], [0], [1], [0, 0, 1, 1], [], []>} : vector<8x32xbf16>, vector<32x128xbf16>, vector<8x128xf32> -> vector<8x128xf32>
    %247 = arith.addf %243, %246 : vector<8x128xf32>
    %248 = math.tanh %247 : vector<8x128xf32>
    %249 = vector.broadcast %20 : vector<1x128xf32> to vector<8x128xf32>
    %250 = arith.mulf %248, %249 : vector<8x128xf32>
    %251 = vector.broadcast %23 : vector<1x128xf32> to vector<8x128xf32>
    %252 = arith.addf %250, %251 : vector<8x128xf32>
    %253 = vector.extract_strided_slice %252 {offsets = [0, 0], sizes = [8, 32], strides = [1, 1]} : vector<8x128xf32> to vector<8x32xf32>
    %254 = vector.extract_strided_slice %252 {offsets = [0, 32], sizes = [8, 32], strides = [1, 1]} : vector<8x128xf32> to vector<8x32xf32>
    %255 = vector.extract_strided_slice %252 {offsets = [0, 64], sizes = [8, 32], strides = [1, 1]} : vector<8x128xf32> to vector<8x32xf32>
    %256 = vector.extract_strided_slice %252 {offsets = [0, 96], sizes = [8, 32], strides = [1, 1]} : vector<8x128xf32> to vector<8x32xf32>
    %257 = arith.mulf %254, %217 : vector<8x32xf32>
    %258 = arith.mulf %253, %255 : vector<8x32xf32>
    %259 = arith.addf %257, %258 : vector<8x32xf32>
    %260 = math.tanh %259 : vector<8x32xf32>
    %261 = arith.mulf %256, %260 : vector<8x32xf32>
    %262 = math.tanh %261 : vector<8x32xf32>
    %263 = vector.broadcast %24 : vector<1x32xf32> to vector<8x32xf32>
    %264 = arith.mulf %262, %263 : vector<8x32xf32>
    %cst_72 = arith.constant dense<0.000000e+00> : vector<8xf32>
    %265 = vector.multi_reduction <add>, %264, %cst_72 [1] : vector<8x32xf32> to vector<8xf32>
    %266 = vector.shape_cast %265 : vector<8xf32> to vector<8x1xf32>
    %267 = arith.addi %25, %c5_i32 : i32
    %c8_i32_73 = arith.constant 8 : i32
    %268 = arith.cmpi slt, %267, %c8_i32_73 : i32
    %cst_74 = arith.constant -1.000000e+30 : f32
    %269 = vector.broadcast %cst_74 : f32 to vector<8x1xf32>
    %270 = arith.select %268, %266, %269 : vector<8x1xf32>
    %271 = arith.maximumf %229, %270 : vector<8x1xf32>
    %272 = arith.subf %229, %271 : vector<8x1xf32>
    %273 = math.exp %272 : vector<8x1xf32>
    %274 = arith.subf %270, %271 : vector<8x1xf32>
    %275 = math.exp %274 : vector<8x1xf32>
    %276 = arith.mulf %273, %235 : vector<8x1xf32>
    %277 = arith.addf %276, %275 : vector<8x1xf32>
    %278 = vector.broadcast %273 : vector<8x1xf32> to vector<8x32xf32>
    %279 = arith.mulf %278, %240 : vector<8x32xf32>
    %280 = vector.broadcast %275 : vector<8x1xf32> to vector<8x32xf32>
    %281 = arith.mulf %280, %261 : vector<8x32xf32>
    %282 = arith.addf %279, %281 : vector<8x32xf32>
    %c6_i32 = arith.constant 6 : i32
    %283 = arith.index_cast %c6_i32 : i32 to index
    %c0_75 = arith.constant 0 : index
    %c0_76 = arith.constant 0 : index
    %284 = vector.load %arg15[%283, %c0_75, %c0_76] : memref<8x8x128xf32, #tpu.memory_space<vmem>>, vector<1x8x128xf32>
    %285 = vector.shape_cast %284 : vector<1x8x128xf32> to vector<8x128xf32>
    %286 = arith.truncf %261 : vector<8x32xf32> to vector<8x32xbf16>
    %c0_77 = arith.constant 0 : index
    %c0_78 = arith.constant 0 : index
    %287 = vector.load %arg4[%c0_77, %c0_78] : memref<32x128xbf16, #tpu.memory_space<vmem>>, vector<32x128xbf16>
    %cst_79 = arith.constant dense<0.000000e+00> : vector<8x128xf32>
    %288 = tpu.matmul %286, %287, %cst_79 {dimension_numbers = #tpu.dot_dimension_numbers<[1], [0], [0], [1], [0, 0, 1, 1], [], []>} : vector<8x32xbf16>, vector<32x128xbf16>, vector<8x128xf32> -> vector<8x128xf32>
    %289 = arith.addf %285, %288 : vector<8x128xf32>
    %290 = math.tanh %289 : vector<8x128xf32>
    %291 = vector.broadcast %20 : vector<1x128xf32> to vector<8x128xf32>
    %292 = arith.mulf %290, %291 : vector<8x128xf32>
    %293 = vector.broadcast %23 : vector<1x128xf32> to vector<8x128xf32>
    %294 = arith.addf %292, %293 : vector<8x128xf32>
    %295 = vector.extract_strided_slice %294 {offsets = [0, 0], sizes = [8, 32], strides = [1, 1]} : vector<8x128xf32> to vector<8x32xf32>
    %296 = vector.extract_strided_slice %294 {offsets = [0, 32], sizes = [8, 32], strides = [1, 1]} : vector<8x128xf32> to vector<8x32xf32>
    %297 = vector.extract_strided_slice %294 {offsets = [0, 64], sizes = [8, 32], strides = [1, 1]} : vector<8x128xf32> to vector<8x32xf32>
    %298 = vector.extract_strided_slice %294 {offsets = [0, 96], sizes = [8, 32], strides = [1, 1]} : vector<8x128xf32> to vector<8x32xf32>
    %299 = arith.mulf %296, %259 : vector<8x32xf32>
    %300 = arith.mulf %295, %297 : vector<8x32xf32>
    %301 = arith.addf %299, %300 : vector<8x32xf32>
    %302 = math.tanh %301 : vector<8x32xf32>
    %303 = arith.mulf %298, %302 : vector<8x32xf32>
    %304 = math.tanh %303 : vector<8x32xf32>
    %305 = vector.broadcast %24 : vector<1x32xf32> to vector<8x32xf32>
    %306 = arith.mulf %304, %305 : vector<8x32xf32>
    %cst_80 = arith.constant dense<0.000000e+00> : vector<8xf32>
    %307 = vector.multi_reduction <add>, %306, %cst_80 [1] : vector<8x32xf32> to vector<8xf32>
    %308 = vector.shape_cast %307 : vector<8xf32> to vector<8x1xf32>
    %309 = arith.addi %25, %c6_i32 : i32
    %c8_i32_81 = arith.constant 8 : i32
    %310 = arith.cmpi slt, %309, %c8_i32_81 : i32
    %cst_82 = arith.constant -1.000000e+30 : f32
    %311 = vector.broadcast %cst_82 : f32 to vector<8x1xf32>
    %312 = arith.select %310, %308, %311 : vector<8x1xf32>
    %313 = arith.maximumf %271, %312 : vector<8x1xf32>
    %314 = arith.subf %271, %313 : vector<8x1xf32>
    %315 = math.exp %314 : vector<8x1xf32>
    %316 = arith.subf %312, %313 : vector<8x1xf32>
    %317 = math.exp %316 : vector<8x1xf32>
    %318 = arith.mulf %315, %277 : vector<8x1xf32>
    %319 = arith.addf %318, %317 : vector<8x1xf32>
    %320 = vector.broadcast %315 : vector<8x1xf32> to vector<8x32xf32>
    %321 = arith.mulf %320, %282 : vector<8x32xf32>
    %322 = vector.broadcast %317 : vector<8x1xf32> to vector<8x32xf32>
    %323 = arith.mulf %322, %303 : vector<8x32xf32>
    %324 = arith.addf %321, %323 : vector<8x32xf32>
    %c7_i32 = arith.constant 7 : i32
    %325 = arith.index_cast %c7_i32 : i32 to index
    %c0_83 = arith.constant 0 : index
    %c0_84 = arith.constant 0 : index
    %326 = vector.load %arg15[%325, %c0_83, %c0_84] : memref<8x8x128xf32, #tpu.memory_space<vmem>>, vector<1x8x128xf32>
    %327 = vector.shape_cast %326 : vector<1x8x128xf32> to vector<8x128xf32>
    %328 = arith.truncf %303 : vector<8x32xf32> to vector<8x32xbf16>
    %c0_85 = arith.constant 0 : index
    %c0_86 = arith.constant 0 : index
    %329 = vector.load %arg4[%c0_85, %c0_86] : memref<32x128xbf16, #tpu.memory_space<vmem>>, vector<32x128xbf16>
    %cst_87 = arith.constant dense<0.000000e+00> : vector<8x128xf32>
    %330 = tpu.matmul %328, %329, %cst_87 {dimension_numbers = #tpu.dot_dimension_numbers<[1], [0], [0], [1], [0, 0, 1, 1], [], []>} : vector<8x32xbf16>, vector<32x128xbf16>, vector<8x128xf32> -> vector<8x128xf32>
    %331 = arith.addf %327, %330 : vector<8x128xf32>
    %332 = math.tanh %331 : vector<8x128xf32>
    %333 = vector.broadcast %20 : vector<1x128xf32> to vector<8x128xf32>
    %334 = arith.mulf %332, %333 : vector<8x128xf32>
    %335 = vector.broadcast %23 : vector<1x128xf32> to vector<8x128xf32>
    %336 = arith.addf %334, %335 : vector<8x128xf32>
    %337 = vector.extract_strided_slice %336 {offsets = [0, 0], sizes = [8, 32], strides = [1, 1]} : vector<8x128xf32> to vector<8x32xf32>
    %338 = vector.extract_strided_slice %336 {offsets = [0, 32], sizes = [8, 32], strides = [1, 1]} : vector<8x128xf32> to vector<8x32xf32>
    %339 = vector.extract_strided_slice %336 {offsets = [0, 64], sizes = [8, 32], strides = [1, 1]} : vector<8x128xf32> to vector<8x32xf32>
    %340 = vector.extract_strided_slice %336 {offsets = [0, 96], sizes = [8, 32], strides = [1, 1]} : vector<8x128xf32> to vector<8x32xf32>
    %341 = arith.mulf %338, %301 : vector<8x32xf32>
    %342 = arith.mulf %337, %339 : vector<8x32xf32>
    %343 = arith.addf %341, %342 : vector<8x32xf32>
    %344 = math.tanh %343 : vector<8x32xf32>
    %345 = arith.mulf %340, %344 : vector<8x32xf32>
    %346 = math.tanh %345 : vector<8x32xf32>
    %347 = vector.broadcast %24 : vector<1x32xf32> to vector<8x32xf32>
    %348 = arith.mulf %346, %347 : vector<8x32xf32>
    %cst_88 = arith.constant dense<0.000000e+00> : vector<8xf32>
    %349 = vector.multi_reduction <add>, %348, %cst_88 [1] : vector<8x32xf32> to vector<8xf32>
    %350 = vector.shape_cast %349 : vector<8xf32> to vector<8x1xf32>
    %351 = arith.addi %25, %c7_i32 : i32
    %c8_i32_89 = arith.constant 8 : i32
    %352 = arith.cmpi slt, %351, %c8_i32_89 : i32
    %cst_90 = arith.constant -1.000000e+30 : f32
    %353 = vector.broadcast %cst_90 : f32 to vector<8x1xf32>
    %354 = arith.select %352, %350, %353 : vector<8x1xf32>
    %355 = arith.maximumf %313, %354 : vector<8x1xf32>
    %356 = arith.subf %313, %355 : vector<8x1xf32>
    %357 = math.exp %356 : vector<8x1xf32>
    %358 = arith.subf %354, %355 : vector<8x1xf32>
    %359 = math.exp %358 : vector<8x1xf32>
    %360 = arith.mulf %357, %319 : vector<8x1xf32>
    %361 = arith.addf %360, %359 : vector<8x1xf32>
    %362 = vector.broadcast %357 : vector<8x1xf32> to vector<8x32xf32>
    %363 = arith.mulf %362, %324 : vector<8x32xf32>
    %364 = vector.broadcast %359 : vector<8x1xf32> to vector<8x32xf32>
    %365 = arith.mulf %364, %345 : vector<8x32xf32>
    %366 = arith.addf %363, %365 : vector<8x32xf32>
    %c8_i32_91 = arith.constant 8 : i32
    %c0_92 = arith.constant 0 : index
    %c0_93 = arith.constant 0 : index
    %367 = vector.load %arg10[%c0_92, %c0_93] : memref<8x32xf32, #tpu.memory_space<vmem>>, vector<8x32xf32>
    tpu.vector_store %arg10[%c0_92, %c0_93], %345 {strides = array<i32>} : memref<8x32xf32, #tpu.memory_space<vmem>>, vector<8x32xf32>,
    %c0_94 = arith.constant 0 : index
    %c0_95 = arith.constant 0 : index
    %368 = vector.load %arg11[%c0_94, %c0_95] : memref<8x32xf32, #tpu.memory_space<vmem>>, vector<8x32xf32>
    tpu.vector_store %arg11[%c0_94, %c0_95], %343 {strides = array<i32>} : memref<8x32xf32, #tpu.memory_space<vmem>>, vector<8x32xf32>,
    %c0_96 = arith.constant 0 : index
    %c0_97 = arith.constant 0 : index
    %369 = vector.load %arg12[%c0_96, %c0_97] : memref<8x1xf32, #tpu.memory_space<vmem>>, vector<8x1xf32>
    tpu.vector_store %arg12[%c0_96, %c0_97], %355 {strides = array<i32>} : memref<8x1xf32, #tpu.memory_space<vmem>>, vector<8x1xf32>,
    %c0_98 = arith.constant 0 : index
    %c0_99 = arith.constant 0 : index
    %370 = vector.load %arg13[%c0_98, %c0_99] : memref<8x1xf32, #tpu.memory_space<vmem>>, vector<8x1xf32>
    tpu.vector_store %arg13[%c0_98, %c0_99], %361 {strides = array<i32>} : memref<8x1xf32, #tpu.memory_space<vmem>>, vector<8x1xf32>,
    %c0_100 = arith.constant 0 : index
    %c0_101 = arith.constant 0 : index
    %371 = vector.load %arg14[%c0_100, %c0_101] : memref<8x32xf32, #tpu.memory_space<vmem>>, vector<8x32xf32>
    tpu.vector_store %arg14[%c0_100, %c0_101], %366 {strides = array<i32>} : memref<8x32xf32, #tpu.memory_space<vmem>>, vector<8x32xf32>,
    %c0_i32_102 = arith.constant 0 : i32
    %372 = arith.cmpi eq, %arg1, %c0_i32_102 : i32
    %373 = arith.extui %372 : i1 to i32
    %c0_i32_103 = arith.constant 0 : i32
    %374 = arith.cmpi ne, %373, %c0_i32_103 : i32
    scf.if %374 {
      %c0_104 = arith.constant 0 : index
      %c0_105 = arith.constant 0 : index
      %375 = vector.load %arg14[%c0_104, %c0_105] : memref<8x32xf32, #tpu.memory_space<vmem>>, vector<8x32xf32>
      %c0_106 = arith.constant 0 : index
      %c0_107 = arith.constant 0 : index
      %376 = vector.load %arg13[%c0_106, %c0_107] : memref<8x1xf32, #tpu.memory_space<vmem>>, vector<8x1xf32>
      %377 = tpu.reciprocal %376 {approx = true} : vector<8x1xf32> -> vector<8x1xf32>
      %378 = vector.broadcast %377 : vector<8x1xf32> to vector<8x32xf32>
      %379 = arith.mulf %375, %378 : vector<8x32xf32>
      %380 = math.tanh %379 : vector<8x32xf32>
      %381 = arith.truncf %380 : vector<8x32xf32> to vector<8x32xbf16>
      %c0_108 = arith.constant 0 : index
      %c0_109 = arith.constant 0 : index
      %382 = vector.load %arg7[%c0_108, %c0_109] : memref<32x16xbf16, #tpu.memory_space<vmem>>, vector<32x16xbf16>
      %cst_110 = arith.constant dense<0.000000e+00> : vector<8x16xf32>
      %383 = tpu.matmul %381, %382, %cst_110 {dimension_numbers = #tpu.dot_dimension_numbers<[1], [0], [0], [1], [0, 0, 1, 1], [], []>} : vector<8x32xbf16>, vector<32x16xbf16>, vector<8x16xf32> -> vector<8x16xf32>
      %c0_111 = arith.constant 0 : index
      %c0_112 = arith.constant 0 : index
      %384 = vector.load %arg8[%c0_111, %c0_112] : memref<1x16xf32, #tpu.memory_space<vmem>>, vector<1x16xf32>
      %385 = vector.broadcast %384 : vector<1x16xf32> to vector<8x16xf32>
      %386 = arith.addf %383, %385 : vector<8x16xf32>
      %c0_113 = arith.constant 0 : index
      %c0_114 = arith.constant 0 : index
      %387 = vector.load %arg9[%c0_113, %c0_114] : memref<8x16xf32, #tpu.memory_space<vmem>>, vector<8x16xf32>
      tpu.vector_store %arg9[%c0_113, %c0_114], %386 {strides = array<i32>} : memref<8x16xf32, #tpu.memory_space<vmem>>, vector<8x16xf32>,
    } else {
    }
    return
  }
  func.func @transform_0(%arg0: i32, %arg1: i32) -> (i32, i32, i32) {
    %c0_i32 = arith.constant 0 : i32
    %c0_i32_0 = arith.constant 0 : i32
    return %arg1, %arg0, %c0_i32 : i32, i32, i32
  }
  func.func @transform_1(%arg0: i32, %arg1: i32) -> (i32, i32) {
    %c0_i32 = arith.constant 0 : i32
    %c0_i32_0 = arith.constant 0 : i32
    %c0_i32_1 = arith.constant 0 : i32
    return %c0_i32, %c0_i32_0 : i32, i32
  }
  func.func @transform_2(%arg0: i32, %arg1: i32) -> (i32, i32) {
    %c0_i32 = arith.constant 0 : i32
    %c0_i32_0 = arith.constant 0 : i32
    %c0_i32_1 = arith.constant 0 : i32
    return %c0_i32, %c0_i32_0 : i32, i32
  }
  func.func @transform_3(%arg0: i32, %arg1: i32) -> (i32, i32) {
    %c0_i32 = arith.constant 0 : i32
    %c0_i32_0 = arith.constant 0 : i32
    %c0_i32_1 = arith.constant 0 : i32
    return %c0_i32, %c0_i32_0 : i32, i32
  }
  func.func @transform_4(%arg0: i32, %arg1: i32) -> (i32, i32) {
    %c0_i32 = arith.constant 0 : i32
    %c0_i32_0 = arith.constant 0 : i32
    %c0_i32_1 = arith.constant 0 : i32
    return %c0_i32, %c0_i32_0 : i32, i32
  }
  func.func @transform_5(%arg0: i32, %arg1: i32) -> (i32, i32) {
    %c0_i32 = arith.constant 0 : i32
    %c0_i32_0 = arith.constant 0 : i32
    %c0_i32_1 = arith.constant 0 : i32
    return %c0_i32, %c0_i32_0 : i32, i32
  }
  func.func @transform_6(%arg0: i32, %arg1: i32) -> (i32, i32) {
    %c0_i32 = arith.constant 0 : i32
    %c0_i32_0 = arith.constant 0 : i32
    %c0_i32_1 = arith.constant 0 : i32
    return %c0_i32, %c0_i32_0 : i32, i32
  }
  func.func @transform_7(%arg0: i32, %arg1: i32) -> (i32, i32) {
    %c0_i32 = arith.constant 0 : i32
    %c0_i32_0 = arith.constant 0 : i32
    return %arg0, %c0_i32 : i32, i32
  }
}

</mosaic_0001>

<llo_original>
// kernel: trainable_att_forward.2
$region0: #{trainable_att_forward.2}
  #allocation0 [shape = 'u32[]', space=smem, size = 0x4, offset = 0x4, fixed_abs, tag = 'smem constant byte address 0x4 - core index']
  #allocation1 [shape = 'u32[144,128]{1,0:T(1,128)}', space=vmem, size = 0x12000, scoped, tag = 'internal scratch']
  #allocation2 [shape = 'f32[8,32]{1,0:T(8,128)}', space=vmem, size = 0x1000, scoped, tag = 'scratch operand']
  #allocation3 [shape = 'f32[8,32]{1,0:T(8,128)}', space=vmem, size = 0x1000, scoped, tag = 'scratch operand']
  #allocation4 [shape = 'f32[8,8,128]{2,1,0:T(8,128)}', space=vmem, size = 0x8000, scoped, tag = 'scratch operand']
  %s0 = inlined_call_operand.vmem [shape: bf16[8,8,8], index: 0, kind: input, shape index: {}]
  %s1 = inlined_call_operand.vmem [shape: bf16[8,128], index: 1, kind: input, shape index: {}]
  %s2 = inlined_call_operand.vmem [shape: bf16[32,128], index: 2, kind: input, shape index: {}]
  %s3 = inlined_call_operand.vmem [shape: f32[1,128], index: 3, kind: input, shape index: {}]
  %s4 = inlined_call_operand.vmem [shape: bf16[8,8,32], index: 4, kind: output, shape index: {}]
  %s5 = sld [smem:[#allocation0]]
  $region30: #{trainable_att_forward.2} parent=0
    _
  %s7 = ssub.s32 1, %s5
  %s8 = scalar_select 0, %s7, %s5
  // Predicated region
  $region2: #{trainable_att_forward.2} parent=0 // pred_check
    _
  $region3: #{trainable_att_forward.2} parent=0 // pred_check_branch
    %10 = sbr.rel (0) target = $region5
  $region4: #{trainable_att_forward.2} parent=0 // pred_region
    _
  $region5: #{trainable_att_forward.2} parent=0 // pred_fallthru
    _
  // Predicated region
  $region6: #{trainable_att_forward.2} parent=0 // pred_check
    _
  $region7: #{trainable_att_forward.2} parent=0 // pred_check_branch
    %12 = sbr.rel (0) target = $region9
  $region8: #{trainable_att_forward.2} parent=0 // pred_region
    _
  $region9: #{trainable_att_forward.2} parent=0 // pred_fallthru
    _
  // Predicated region
  $region10: #{trainable_att_forward.2} parent=0 // pred_check
    _
  $region11: #{trainable_att_forward.2} parent=0 // pred_check_branch
    %14 = sbr.rel (0) target = $region13
  $region12: #{trainable_att_forward.2} parent=0 // pred_region
    _
  $region13: #{trainable_att_forward.2} parent=0 // pred_fallthru
    _
  // Predicated region
  $region14: #{trainable_att_forward.2} parent=0 // pred_check
    _
  $region15: #{trainable_att_forward.2} parent=0 // pred_check_branch
    %16 = sbr.rel (0) target = $region17
  $region16: #{trainable_att_forward.2} parent=0 // pred_region
    _
  $region17: #{trainable_att_forward.2} parent=0 // pred_fallthru
    _
  %p18 = scmp.eq.s32.totalorder 0, 0
  // Predicated region
  $region18: #{trainable_att_forward.2} parent=0 // pred_check
    %p19 = pneg %p18
  $region19: #{trainable_att_forward.2} parent=0 // pred_check_branch
    %21 = sbr.rel (%p19) target = $region21
  $region20: #{trainable_att_forward.2} parent=0 // pred_region
    %vm22 = vcmask 261120
    %23 = vst.msk [vmem:[#allocation2] sm:$0xff] %vm22, 0.0
    %24 = vst.msk [vmem:[#allocation3] sm:$0xff] %vm22, 0.0
  $region21: #{trainable_att_forward.2} parent=0 // pred_fallthru
    _
  %v25 = vld [vmem:[%s0] sm:$0xf]
  %v26 = vld [vmem:[%s0 + $0x4] sm:$0xf]
  %v27 = vld [vmem:[%s0 + $0x8] sm:$0xf]
  %v28 = vld [vmem:[%s0 + $0xc] sm:$0xf]
  %v29 = vld [vmem:[%s0 + $0x10] sm:$0xf]
  %v30 = vld [vmem:[%s0 + $0x14] sm:$0xf]
  %v31 = vld [vmem:[%s0 + $0x18] sm:$0xf]
  %v32 = vld [vmem:[%s0 + $0x1c] sm:$0xf]
  %v33 = vld [vmem:[%s1] sm:$0xf]
  %v34 = vld [vmem:[%s3] sm:$0x1]
  %v36 = vlaneseq
  %v37 = vshrl.u32 %v36, 7
  %v38 = vsub.s32 0, %v37
  %v39 = vrot.slane %v34, %v38
  %v49 = vunpack.c.l.b16 %v25
  %v50 = vunpack.c.l.b16 %v26
  %v51 = vunpack.c.l.b16 %v27
  %v52 = vunpack.c.l.b16 %v28
  %v53 = vunpack.c.l.b16 %v29
  %v54 = vunpack.c.l.b16 %v30
  %v55 = vunpack.c.l.b16 %v31
  %v56 = vunpack.c.l.b16 %v32
  %v57 = vpack.c.b16 %v50, %v49
  %v58 = vpack.c.b16 %v52, %v51
  %v59 = vpack.c.b16 %v54, %v53
  %v60 = vpack.c.b16 %v56, %v55
  %vm61 = vcmask 64512
  %v63 = vsel %vm61, %v57, 0
  %v66 = vsel %vm61, %v58, 0
  %v69 = vsel %vm61, %v59, 0
  %v72 = vsel %vm61, %v60, 0
  %vm74 = vcmask 1043456
  %v76 = vsel %vm74, %v33, 0
  %78 = vmatprep.subr.bf16.mxu0 0
  %79 = vmatpush1.bf16.msra.mxu0 %v76
  %80 = vmatprep.subr.bf16.mxu0 0
  %81 = vmatpush1.bf16.msra.mxu0 0
  %82 = vmatprep.subr.bf16.mxu0 0
  %83 = vmatpush1.bf16.msra.mxu0 0
  %84 = vmatprep.subr.bf16.mxu0 0
  %85 = vmatpush1.bf16.msra.mxu0 0
  %86 = vmatprep.subr.bf16.mxu0 0
  %87 = vmatpush1.bf16.msra.mxu0 0
  %88 = vmatprep.subr.bf16.mxu0 0
  %89 = vmatpush1.bf16.msra.mxu0 0
  %90 = vmatprep.subr.bf16.mxu0 0
  %91 = vmatpush1.bf16.msra.mxu0 0
  %92 = vmatprep.subr.bf16.mxu0 0
  %93 = vmatpush1.bf16.msra.mxu0 0
  %94 = vmatprep.subr.bf16.mxu0 0
  %95 = vmatpush1.bf16.msra.mxu0 0
  %96 = vmatprep.subr.bf16.mxu0 0
  %97 = vmatpush1.bf16.msra.mxu0 0
  %98 = vmatprep.subr.bf16.mxu0 0
  %99 = vmatpush1.bf16.msra.mxu0 0
  %100 = vmatprep.subr.bf16.mxu0 0
  %101 = vmatpush1.bf16.msra.mxu0 0
  %102 = vmatprep.subr.bf16.mxu0 0
  %103 = vmatpush1.bf16.msra.mxu0 0
  %104 = vmatprep.subr.bf16.mxu0 0
  %105 = vmatpush1.bf16.msra.mxu0 0
  %106 = vmatprep.subr.bf16.mxu0 0
  %107 = vmatpush1.bf16.msra.mxu0 0
  %108 = vmatprep.subr.bf16.mxu0 0
  %109 = vmatpush1.bf16.msra.mxu0 0
  %110 = vmatprep.mubr.bf16.mxu0 0
  %111 = vmatmul.mubr.bf16.gmra.mrb[0].mxu0 %v63
  %v112 = vpop.f32.mrb[0].mxu0
  %v113 = vadd.f32 %v39, %v112
  %v114 = vpop.f32.mrb[0].mxu0
  %v115 = vpop.f32.mrb[0].mxu0
  %v116 = vadd.f32 %v39, %v115
  %v117 = vpop.f32.mrb[0].mxu0
  %118 = vmatprep.mubr.bf16.mxu0 0
  %119 = vmatmul.mubr.bf16.gmra.mrb[0].mxu0 %v66
  %v120 = vpop.f32.mrb[0].mxu0
  %v121 = vadd.f32 %v39, %v120
  %v122 = vpop.f32.mrb[0].mxu0
  %v123 = vpop.f32.mrb[0].mxu0
  %v124 = vadd.f32 %v39, %v123
  %v125 = vpop.f32.mrb[0].mxu0
  %126 = vmatprep.mubr.bf16.mxu0 0
  %127 = vmatmul.mubr.bf16.gmra.mrb[0].mxu0 %v69
  %v128 = vpop.f32.mrb[0].mxu0
  %v129 = vadd.f32 %v39, %v128
  %v130 = vpop.f32.mrb[0].mxu0
  %v131 = vpop.f32.mrb[0].mxu0
  %v132 = vadd.f32 %v39, %v131
  %v133 = vpop.f32.mrb[0].mxu0
  %134 = vmatprep.mubr.bf16.mxu0 0
  %135 = vmatmul.mubr.bf16.gmra.mrb[0].mxu0 %v72
  %v136 = vpop.f32.mrb[0].mxu0
  %v137 = vadd.f32 %v39, %v136
  %v138 = vpop.f32.mrb[0].mxu0
  %v139 = vpop.f32.mrb[0].mxu0
  %v140 = vadd.f32 %v39, %v139
  %v141 = vpop.f32.mrb[0].mxu0
  %142 = vdwg.mxu0
  %143 = vst [vmem:[#allocation4] sm:$0xff] %v113
  %144 = vst [vmem:[#allocation4 + $0x8] sm:$0xff] %v116
  %145 = vst [vmem:[#allocation4 + $0x10] sm:$0xff] %v121
  %146 = vst [vmem:[#allocation4 + $0x18] sm:$0xff] %v124
  %147 = vst [vmem:[#allocation4 + $0x20] sm:$0xff] %v129
  %148 = vst [vmem:[#allocation4 + $0x28] sm:$0xff] %v132
  %149 = vst [vmem:[#allocation4 + $0x30] sm:$0xff] %v137
  %150 = vst [vmem:[#allocation4 + $0x38] sm:$0xff] %v140
  %v151 = vlaneseq
  %v152 = vand.u32 %v151, 127
  %vm153 = vcmp.ge.s32.totalorder %v152, 64
  %vm154 = vcmp.lt.s32.totalorder %v152, 96
  %vm155 = vmand %vm153, %vm154
  %v156 = vsel %vm155, 1.0, 0.5
  %v157 = vsel %vm155, 0.0, 0.5
  %v158 = vld [vmem:[#allocation2] sm:$0xff]
  %v159 = vld [vmem:[#allocation3] sm:$0xff]
  %v160 = vld [vmem:[#allocation4] sm:$0xff]
  %v161 = vpack.c.bf16 %v158, %v158
  %v162 = vld [vmem:[%s2] sm:$0xf]
  %v163 = vld [vmem:[%s2 + $0x4] sm:$0xf]
  %v164 = vld [vmem:[%s2 + $0x8] sm:$0xf]
  %v165 = vld [vmem:[%s2 + $0xc] sm:$0xf]
  %v170 = vunpack.c.l.b16 %v162
  %v171 = vunpack.c.l.b16 %v163
  %v172 = vunpack.c.l.b16 %v164
  %v173 = vunpack.c.l.b16 %v165
  %v174 = vpack.c.b16 %v171, %v170
  %v175 = vpack.c.b16 %v173, %v172
  %vm178 = vcmask 261120
  %v180 = vsel %vm178, %v161, 0
  %182 = vmatprep.subr.bf16.mxu0 0
  %183 = vmatpush1.bf16.msra.mxu0 %v174
  %184 = vmatprep.subr.bf16.mxu0 0
  %185 = vmatpush1.bf16.msra.mxu0 %v175
  %186 = vmatprep.subr.bf16.mxu0 0
  %187 = vmatpush1.bf16.msra.mxu0 0
  %188 = vmatprep.subr.bf16.mxu0 0
  %189 = vmatpush1.bf16.msra.mxu0 0
  %190 = vmatprep.subr.bf16.mxu0 0
  %191 = vmatpush1.bf16.msra.mxu0 0
  %192 = vmatprep.subr.bf16.mxu0 0
  %193 = vmatpush1.bf16.msra.mxu0 0
  %194 = vmatprep.subr.bf16.mxu0 0
  %195 = vmatpush1.bf16.msra.mxu0 0
  %196 = vmatprep.subr.bf16.mxu0 0
  %197 = vmatpush1.bf16.msra.mxu0 0
  %198 = vmatprep.subr.bf16.mxu0 0
  %199 = vmatpush1.bf16.msra.mxu0 0
  %200 = vmatprep.subr.bf16.mxu0 0
  %201 = vmatpush1.bf16.msra.mxu0 0
  %202 = vmatprep.subr.bf16.mxu0 0
  %203 = vmatpush1.bf16.msra.mxu0 0
  %204 = vmatprep.subr.bf16.mxu0 0
  %205 = vmatpush1.bf16.msra.mxu0 0
  %206 = vmatprep.subr.bf16.mxu0 0
  %207 = vmatpush1.bf16.msra.mxu0 0
  %208 = vmatprep.subr.bf16.mxu0 0
  %209 = vmatpush1.bf16.msra.mxu0 0
  %210 = vmatprep.subr.bf16.mxu0 0
  %211 = vmatpush1.bf16.msra.mxu0 0
  %212 = vmatprep.subr.bf16.mxu0 0
  %213 = vmatpush1.bf16.msra.mxu0 0
  %214 = vmatprep.mubr.bf16.mxu0 0
  %215 = vmatmul.mubr.bf16.gmra.mrb[0].mxu0 %v180
  %v216 = vpop.f32.mrb[0].mxu0
  %v217 = vadd.f32 0.0, %v216
  %v218 = vpop.f32.mrb[0].mxu0
  %v219 = vpop.f32.mrb[0].mxu0
  %v220 = vpop.f32.mrb[0].mxu0
  %221 = vdwg.mxu0
  %v222 = vadd.f32 %v160, %v217
  %v223 = vtanh.pop %v222
  %v224 = vmul.f32 %v223, %v156
  %v225 = vadd.f32 %v224, %v157
  %227 = vrot.lane.b32.xlu0 %v159, 32
  %v228 = vpop.permute.xlu0 %227
  %v230 = vmul.f32 %v225, %v228
  %232 = vrot.lane.b32.xlu0 %v225, 64
  %v233 = vpop.permute.xlu0 %232
  %v235 = vmul.f32 %v225, %v233
  %237 = vrot.lane.b32.xlu0 %v235, 32
  %v238 = vpop.permute.xlu0 %237
  %v240 = vadd.f32 %v230, %v238
  %v241 = vtanh.pop %v240
  %243 = vrot.lane.b32.xlu0 %v241, 64
  %v244 = vpop.permute.xlu0 %243
  %v246 = vmul.f32 %v225, %v244
  %v247 = vpack.c.bf16 %v246, %v246
  %v249 = vunpack.c.l.b16 %v247
  %v250 = vpack.c.b16 %v249, %v249
  %251 = vrot.lane.b32.xlu0 %v250, 32
  %v252 = vpop.permute.xlu0 %251
  %vm254 = vcmask 257024
  %255 = vst.msk [vmem:[%s4] sm:$0xf] %vm254, %v252
  %s256 = scalar_lea.vmem [#allocation4], 8
  %v257 = vld [vmem:[%s256] sm:$0xff]
  %v258 = vld [vmem:[%s2] sm:$0xf]
  %v259 = vld [vmem:[%s2 + $0x4] sm:$0xf]
  %v260 = vld [vmem:[%s2 + $0x8] sm:$0xf]
  %v261 = vld [vmem:[%s2 + $0xc] sm:$0xf]
  %262 = vrot.lane.b32.xlu0 %v247, 32
  %v263 = vpop.permute.xlu0 %262
  %v268 = vunpack.c.l.b16 %v258
  %v269 = vunpack.c.l.b16 %v259
  %v270 = vunpack.c.l.b16 %v260
  %v271 = vunpack.c.l.b16 %v261
  %v272 = vpack.c.b16 %v269, %v268
  %v273 = vpack.c.b16 %v271, %v270
  %v277 = vsel %vm178, %v263, 0
  %279 = vmatprep.subr.bf16.mxu0 0
  %280 = vmatpush1.bf16.msra.mxu0 %v272
  %281 = vmatprep.subr.bf16.mxu0 0
  %282 = vmatpush1.bf16.msra.mxu0 %v273
  %283 = vmatprep.subr.bf16.mxu0 0
  %284 = vmatpush1.bf16.msra.mxu0 0
  %285 = vmatprep.subr.bf16.mxu0 0
  %286 = vmatpush1.bf16.msra.mxu0 0
  %287 = vmatprep.subr.bf16.mxu0 0
  %288 = vmatpush1.bf16.msra.mxu0 0
  %289 = vmatprep.subr.bf16.mxu0 0
  %290 = vmatpush1.bf16.msra.mxu0 0
  %291 = vmatprep.subr.bf16.mxu0 0
  %292 = vmatpush1.bf16.msra.mxu0 0
  %293 = vmatprep.subr.bf16.mxu0 0
  %294 = vmatpush1.bf16.msra.mxu0 0
  %295 = vmatprep.subr.bf16.mxu0 0
  %296 = vmatpush1.bf16.msra.mxu0 0
  %297 = vmatprep.subr.bf16.mxu0 0
  %298 = vmatpush1.bf16.msra.mxu0 0
  %299 = vmatprep.subr.bf16.mxu0 0
  %300 = vmatpush1.bf16.msra.mxu0 0
  %301 = vmatprep.subr.bf16.mxu0 0
  %302 = vmatpush1.bf16.msra.mxu0 0
  %303 = vmatprep.subr.bf16.mxu0 0
  %304 = vmatpush1.bf16.msra.mxu0 0
  %305 = vmatprep.subr.bf16.mxu0 0
  %306 = vmatpush1.bf16.msra.mxu0 0
  %307 = vmatprep.subr.bf16.mxu0 0
  %308 = vmatpush1.bf16.msra.mxu0 0
  %309 = vmatprep.subr.bf16.mxu0 0
  %310 = vmatpush1.bf16.msra.mxu0 0
  %311 = vmatprep.mubr.bf16.mxu0 0
  %312 = vmatmul.mubr.bf16.gmra.mrb[0].mxu0 %v277
  %v313 = vpop.f32.mrb[0].mxu0
  %v314 = vadd.f32 0.0, %v313
  %v315 = vpop.f32.mrb[0].mxu0
  %v316 = vpop.f32.mrb[0].mxu0
  %v317 = vpop.f32.mrb[0].mxu0
  %318 = vdwg.mxu0
  %v319 = vadd.f32 %v257, %v314
  %v320 = vtanh.pop %v319
  %v321 = vmul.f32 %v320, %v156
  %v322 = vadd.f32 %v321, %v157
  %v323 = vmul.f32 %v322, %v240
  %325 = vrot.lane.b32.xlu0 %v322, 64
  %v326 = vpop.permute.xlu0 %325
  %v328 = vmul.f32 %v322, %v326
  %330 = vrot.lane.b32.xlu0 %v328, 32
  %v331 = vpop.permute.xlu0 %330
  %v333 = vadd.f32 %v323, %v331
  %v334 = vtanh.pop %v333
  %336 = vrot.lane.b32.xlu0 %v334, 64
  %v337 = vpop.permute.xlu0 %336
  %v339 = vmul.f32 %v322, %v337
  %v340 = vpack.c.bf16 %v339, %v339
  %v342 = vunpack.c.l.b16 %v340
  %v343 = vpack.c.b16 %v342, %v342
  %344 = vrot.lane.b32.xlu0 %v343, 32
  %v345 = vpop.permute.xlu0 %344
  %s347 = scalar_lea.vmem %s4, 4
  %348 = vst.msk [vmem:[%s347] sm:$0xf] %vm254, %v345
  %s349 = scalar_lea.vmem [#allocation4], 16
  %v350 = vld [vmem:[%s349] sm:$0xff]
  %v351 = vld [vmem:[%s2] sm:$0xf]
  %v352 = vld [vmem:[%s2 + $0x4] sm:$0xf]
  %v353 = vld [vmem:[%s2 + $0x8] sm:$0xf]
  %v354 = vld [vmem:[%s2 + $0xc] sm:$0xf]
  %355 = vrot.lane.b32.xlu0 %v340, 32
  %v356 = vpop.permute.xlu0 %355
  %v361 = vunpack.c.l.b16 %v351
  %v362 = vunpack.c.l.b16 %v352
  %v363 = vunpack.c.l.b16 %v353
  %v364 = vunpack.c.l.b16 %v354
  %v365 = vpack.c.b16 %v362, %v361
  %v366 = vpack.c.b16 %v364, %v363
  %v370 = vsel %vm178, %v356, 0
  %372 = vmatprep.subr.bf16.mxu0 0
  %373 = vmatpush1.bf16.msra.mxu0 %v365
  %374 = vmatprep.subr.bf16.mxu0 0
  %375 = vmatpush1.bf16.msra.mxu0 %v366
  %376 = vmatprep.subr.bf16.mxu0 0
  %377 = vmatpush1.bf16.msra.mxu0 0
  %378 = vmatprep.subr.bf16.mxu0 0
  %379 = vmatpush1.bf16.msra.mxu0 0
  %380 = vmatprep.subr.bf16.mxu0 0
  %381 = vmatpush1.bf16.msra.mxu0 0
  %382 = vmatprep.subr.bf16.mxu0 0
  %383 = vmatpush1.bf16.msra.mxu0 0
  %384 = vmatprep.subr.bf16.mxu0 0
  %385 = vmatpush1.bf16.msra.mxu0 0
  %386 = vmatprep.subr.bf16.mxu0 0
  %387 = vmatpush1.bf16.msra.mxu0 0
  %388 = vmatprep.subr.bf16.mxu0 0
  %389 = vmatpush1.bf16.msra.mxu0 0
  %390 = vmatprep.subr.bf16.mxu0 0
  %391 = vmatpush1.bf16.msra.mxu0 0
  %392 = vmatprep.subr.bf16.mxu0 0
  %393 = vmatpush1.bf16.msra.mxu0 0
  %394 = vmatprep.subr.bf16.mxu0 0
  %395 = vmatpush1.bf16.msra.mxu0 0
  %396 = vmatprep.subr.bf16.mxu0 0
  %397 = vmatpush1.bf16.msra.mxu0 0
  %398 = vmatprep.subr.bf16.mxu0 0
  %399 = vmatpush1.bf16.msra.mxu0 0
  %400 = vmatprep.subr.bf16.mxu0 0
  %401 = vmatpush1.bf16.msra.mxu0 0
  %402 = vmatprep.subr.bf16.mxu0 0
  %403 = vmatpush1.bf16.msra.mxu0 0
  %404 = vmatprep.mubr.bf16.mxu0 0
  %405 = vmatmul.mubr.bf16.gmra.mrb[0].mxu0 %v370
  %v406 = vpop.f32.mrb[0].mxu0
  %v407 = vadd.f32 0.0, %v406
  %v408 = vpop.f32.mrb[0].mxu0
  %v409 = vpop.f32.mrb[0].mxu0
  %v410 = vpop.f32.mrb[0].mxu0
  %411 = vdwg.mxu0
  %v412 = vadd.f32 %v350, %v407
  %v413 = vtanh.pop %v412
  %v414 = vmul.f32 %v413, %v156
  %v415 = vadd.f32 %v414, %v157
  %v416 = vmul.f32 %v415, %v333
  %418 = vrot.lane.b32.xlu0 %v415, 64
  %v419 = vpop.permute.xlu0 %418
  %v421 = vmul.f32 %v415, %v419
  %423 = vrot.lane.b32.xlu0 %v421, 32
  %v424 = vpop.permute.xlu0 %423
  %v426 = vadd.f32 %v416, %v424
  %v427 = vtanh.pop %v426
  %429 = vrot.lane.b32.xlu0 %v427, 64
  %v430 = vpop.permute.xlu0 %429
  %v432 = vmul.f32 %v415, %v430
  %v433 = vpack.c.bf16 %v432, %v432
  %v435 = vunpack.c.l.b16 %v433
  %v436 = vpack.c.b16 %v435, %v435
  %437 = vrot.lane.b32.xlu0 %v436, 32
  %v438 = vpop.permute.xlu0 %437
  %s440 = scalar_lea.vmem %s4, 8
  %441 = vst.msk [vmem:[%s440] sm:$0xf] %vm254, %v438
  %s442 = scalar_lea.vmem [#allocation4], 24
  %v443 = vld [vmem:[%s442] sm:$0xff]
  %v444 = vld [vmem:[%s2] sm:$0xf]
  %v445 = vld [vmem:[%s2 + $0x4] sm:$0xf]
  %v446 = vld [vmem:[%s2 + $0x8] sm:$0xf]
  %v447 = vld [vmem:[%s2 + $0xc] sm:$0xf]
  %448 = vrot.lane.b32.xlu0 %v433, 32
  %v449 = vpop.permute.xlu0 %448
  %v454 = vunpack.c.l.b16 %v444
  %v455 = vunpack.c.l.b16 %v445
  %v456 = vunpack.c.l.b16 %v446
  %v457 = vunpack.c.l.b16 %v447
  %v458 = vpack.c.b16 %v455, %v454
  %v459 = vpack.c.b16 %v457, %v456
  %v463 = vsel %vm178, %v449, 0
  %465 = vmatprep.subr.bf16.mxu0 0
  %466 = vmatpush1.bf16.msra.mxu0 %v458
  %467 = vmatprep.subr.bf16.mxu0 0
  %468 = vmatpush1.bf16.msra.mxu0 %v459
  %469 = vmatprep.subr.bf16.mxu0 0
  %470 = vmatpush1.bf16.msra.mxu0 0
  %471 = vmatprep.subr.bf16.mxu0 0
  %472 = vmatpush1.bf16.msra.mxu0 0
  %473 = vmatprep.subr.bf16.mxu0 0
  %474 = vmatpush1.bf16.msra.mxu0 0
  %475 = vmatprep.subr.bf16.mxu0 0
  %476 = vmatpush1.bf16.msra.mxu0 0
  %477 = vmatprep.subr.bf16.mxu0 0
  %478 = vmatpush1.bf16.msra.mxu0 0
  %479 = vmatprep.subr.bf16.mxu0 0
  %480 = vmatpush1.bf16.msra.mxu0 0
  %481 = vmatprep.subr.bf16.mxu0 0
  %482 = vmatpush1.bf16.msra.mxu0 0
  %483 = vmatprep.subr.bf16.mxu0 0
  %484 = vmatpush1.bf16.msra.mxu0 0
  %485 = vmatprep.subr.bf16.mxu0 0
  %486 = vmatpush1.bf16.msra.mxu0 0
  %487 = vmatprep.subr.bf16.mxu0 0
  %488 = vmatpush1.bf16.msra.mxu0 0
  %489 = vmatprep.subr.bf16.mxu0 0
  %490 = vmatpush1.bf16.msra.mxu0 0
  %491 = vmatprep.subr.bf16.mxu0 0
  %492 = vmatpush1.bf16.msra.mxu0 0
  %493 = vmatprep.subr.bf16.mxu0 0
  %494 = vmatpush1.bf16.msra.mxu0 0
  %495 = vmatprep.subr.bf16.mxu0 0
  %496 = vmatpush1.bf16.msra.mxu0 0
  %497 = vmatprep.mubr.bf16.mxu0 0
  %498 = vmatmul.mubr.bf16.gmra.mrb[0].mxu0 %v463
  %v499 = vpop.f32.mrb[0].mxu0
  %v500 = vadd.f32 0.0, %v499
  %v501 = vpop.f32.mrb[0].mxu0
  %v502 = vpop.f32.mrb[0].mxu0
  %v503 = vpop.f32.mrb[0].mxu0
  %504 = vdwg.mxu0
  %v505 = vadd.f32 %v443, %v500
  %v506 = vtanh.pop %v505
  %v507 = vmul.f32 %v506, %v156
  %v508 = vadd.f32 %v507, %v157
  %v509 = vmul.f32 %v508, %v426
  %511 = vrot.lane.b32.xlu0 %v508, 64
  %v512 = vpop.permute.xlu0 %511
  %v514 = vmul.f32 %v508, %v512
  %516 = vrot.lane.b32.xlu0 %v514, 32
  %v517 = vpop.permute.xlu0 %516
  %v519 = vadd.f32 %v509, %v517
  %v520 = vtanh.pop %v519
  %522 = vrot.lane.b32.xlu0 %v520, 64
  %v523 = vpop.permute.xlu0 %522
  %v525 = vmul.f32 %v508, %v523
  %v526 = vpack.c.bf16 %v525, %v525
  %v528 = vunpack.c.l.b16 %v526
  %v529 = vpack.c.b16 %v528, %v528
  %530 = vrot.lane.b32.xlu0 %v529, 32
  %v531 = vpop.permute.xlu0 %530
  %s533 = scalar_lea.vmem %s4, 12
  %534 = vst.msk [vmem:[%s533] sm:$0xf] %vm254, %v531
  %s535 = scalar_lea.vmem [#allocation4], 32
  %v536 = vld [vmem:[%s535] sm:$0xff]
  %v537 = vld [vmem:[%s2] sm:$0xf]
  %v538 = vld [vmem:[%s2 + $0x4] sm:$0xf]
  %v539 = vld [vmem:[%s2 + $0x8] sm:$0xf]
  %v540 = vld [vmem:[%s2 + $0xc] sm:$0xf]
  %541 = vrot.lane.b32.xlu0 %v526, 32
  %v542 = vpop.permute.xlu0 %541
  %v547 = vunpack.c.l.b16 %v537
  %v548 = vunpack.c.l.b16 %v538
  %v549 = vunpack.c.l.b16 %v539
  %v550 = vunpack.c.l.b16 %v540
  %v551 = vpack.c.b16 %v548, %v547
  %v552 = vpack.c.b16 %v550, %v549
  %v556 = vsel %vm178, %v542, 0
  %558 = vmatprep.subr.bf16.mxu0 0
  %559 = vmatpush1.bf16.msra.mxu0 %v551
  %560 = vmatprep.subr.bf16.mxu0 0
  %561 = vmatpush1.bf16.msra.mxu0 %v552
  %562 = vmatprep.subr.bf16.mxu0 0
  %563 = vmatpush1.bf16.msra.mxu0 0
  %564 = vmatprep.subr.bf16.mxu0 0
  %565 = vmatpush1.bf16.msra.mxu0 0
  %566 = vmatprep.subr.bf16.mxu0 0
  %567 = vmatpush1.bf16.msra.mxu0 0
  %568 = vmatprep.subr.bf16.mxu0 0
  %569 = vmatpush1.bf16.msra.mxu0 0
  %570 = vmatprep.subr.bf16.mxu0 0
  %571 = vmatpush1.bf16.msra.mxu0 0
  %572 = vmatprep.subr.bf16.mxu0 0
  %573 = vmatpush1.bf16.msra.mxu0 0
  %574 = vmatprep.subr.bf16.mxu0 0
  %575 = vmatpush1.bf16.msra.mxu0 0
  %576 = vmatprep.subr.bf16.mxu0 0
  %577 = vmatpush1.bf16.msra.mxu0 0
  %578 = vmatprep.subr.bf16.mxu0 0
  %579 = vmatpush1.bf16.msra.mxu0 0
  %580 = vmatprep.subr.bf16.mxu0 0
  %581 = vmatpush1.bf16.msra.mxu0 0
  %582 = vmatprep.subr.bf16.mxu0 0
  %583 = vmatpush1.bf16.msra.mxu0 0
  %584 = vmatprep.subr.bf16.mxu0 0
  %585 = vmatpush1.bf16.msra.mxu0 0
  %586 = vmatprep.subr.bf16.mxu0 0
  %587 = vmatpush1.bf16.msra.mxu0 0
  %588 = vmatprep.subr.bf16.mxu0 0
  %589 = vmatpush1.bf16.msra.mxu0 0
  %590 = vmatprep.mubr.bf16.mxu0 0
  %591 = vmatmul.mubr.bf16.gmra.mrb[0].mxu0 %v556
  %v592 = vpop.f32.mrb[0].mxu0
  %v593 = vadd.f32 0.0, %v592
  %v594 = vpop.f32.mrb[0].mxu0
  %v595 = vpop.f32.mrb[0].mxu0
  %v596 = vpop.f32.mrb[0].mxu0
  %597 = vdwg.mxu0
  %v598 = vadd.f32 %v536, %v593
  %v599 = vtanh.pop %v598
  %v600 = vmul.f32 %v599, %v156
  %v601 = vadd.f32 %v600, %v157
  %v602 = vmul.f32 %v601, %v519
  %604 = vrot.lane.b32.xlu0 %v601, 64
  %v605 = vpop.permute.xlu0 %604
  %v607 = vmul.f32 %v601, %v605
  %609 = vrot.lane.b32.xlu0 %v607, 32
  %v610 = vpop.permute.xlu0 %609
  %v612 = vadd.f32 %v602, %v610
  %v613 = vtanh.pop %v612
  %615 = vrot.lane.b32.xlu0 %v613, 64
  %v616 = vpop.permute.xlu0 %615
  %v618 = vmul.f32 %v601, %v616
  %v619 = vpack.c.bf16 %v618, %v618
  %v621 = vunpack.c.l.b16 %v619
  %v622 = vpack.c.b16 %v621, %v621
  %623 = vrot.lane.b32.xlu0 %v622, 32
  %v624 = vpop.permute.xlu0 %623
  %s626 = scalar_lea.vmem %s4, 16
  %627 = vst.msk [vmem:[%s626] sm:$0xf] %vm254, %v624
  %s628 = scalar_lea.vmem [#allocation4], 40
  %v629 = vld [vmem:[%s628] sm:$0xff]
  %v630 = vld [vmem:[%s2] sm:$0xf]
  %v631 = vld [vmem:[%s2 + $0x4] sm:$0xf]
  %v632 = vld [vmem:[%s2 + $0x8] sm:$0xf]
  %v633 = vld [vmem:[%s2 + $0xc] sm:$0xf]
  %634 = vrot.lane.b32.xlu0 %v619, 32
  %v635 = vpop.permute.xlu0 %634
  %v640 = vunpack.c.l.b16 %v630
  %v641 = vunpack.c.l.b16 %v631
  %v642 = vunpack.c.l.b16 %v632
  %v643 = vunpack.c.l.b16 %v633
  %v644 = vpack.c.b16 %v641, %v640
  %v645 = vpack.c.b16 %v643, %v642
  %v649 = vsel %vm178, %v635, 0
  %651 = vmatprep.subr.bf16.mxu0 0
  %652 = vmatpush1.bf16.msra.mxu0 %v644
  %653 = vmatprep.subr.bf16.mxu0 0
  %654 = vmatpush1.bf16.msra.mxu0 %v645
  %655 = vmatprep.subr.bf16.mxu0 0
  %656 = vmatpush1.bf16.msra.mxu0 0
  %657 = vmatprep.subr.bf16.mxu0 0
  %658 = vmatpush1.bf16.msra.mxu0 0
  %659 = vmatprep.subr.bf16.mxu0 0
  %660 = vmatpush1.bf16.msra.mxu0 0
  %661 = vmatprep.subr.bf16.mxu0 0
  %662 = vmatpush1.bf16.msra.mxu0 0
  %663 = vmatprep.subr.bf16.mxu0 0
  %664 = vmatpush1.bf16.msra.mxu0 0
  %665 = vmatprep.subr.bf16.mxu0 0
  %666 = vmatpush1.bf16.msra.mxu0 0
  %667 = vmatprep.subr.bf16.mxu0 0
  %668 = vmatpush1.bf16.msra.mxu0 0
  %669 = vmatprep.subr.bf16.mxu0 0
  %670 = vmatpush1.bf16.msra.mxu0 0
  %671 = vmatprep.subr.bf16.mxu0 0
  %672 = vmatpush1.bf16.msra.mxu0 0
  %673 = vmatprep.subr.bf16.mxu0 0
  %674 = vmatpush1.bf16.msra.mxu0 0
  %675 = vmatprep.subr.bf16.mxu0 0
  %676 = vmatpush1.bf16.msra.mxu0 0
  %677 = vmatprep.subr.bf16.mxu0 0
  %678 = vmatpush1.bf16.msra.mxu0 0
  %679 = vmatprep.subr.bf16.mxu0 0
  %680 = vmatpush1.bf16.msra.mxu0 0
  %681 = vmatprep.subr.bf16.mxu0 0
  %682 = vmatpush1.bf16.msra.mxu0 0
  %683 = vmatprep.mubr.bf16.mxu0 0
  %684 = vmatmul.mubr.bf16.gmra.mrb[0].mxu0 %v649
  %v685 = vpop.f32.mrb[0].mxu0
  %v686 = vadd.f32 0.0, %v685
  %v687 = vpop.f32.mrb[0].mxu0
  %v688 = vpop.f32.mrb[0].mxu0
  %v689 = vpop.f32.mrb[0].mxu0
  %690 = vdwg.mxu0
  %v691 = vadd.f32 %v629, %v686
  %v692 = vtanh.pop %v691
  %v693 = vmul.f32 %v692, %v156
  %v694 = vadd.f32 %v693, %v157
  %v695 = vmul.f32 %v694, %v612
  %697 = vrot.lane.b32.xlu0 %v694, 64
  %v698 = vpop.permute.xlu0 %697
  %v700 = vmul.f32 %v694, %v698
  %702 = vrot.lane.b32.xlu0 %v700, 32
  %v703 = vpop.permute.xlu0 %702
  %v705 = vadd.f32 %v695, %v703
  %v706 = vtanh.pop %v705
  %708 = vrot.lane.b32.xlu0 %v706, 64
  %v709 = vpop.permute.xlu0 %708
  %v711 = vmul.f32 %v694, %v709
  %v712 = vpack.c.bf16 %v711, %v711
  %v714 = vunpack.c.l.b16 %v712
  %v715 = vpack.c.b16 %v714, %v714
  %716 = vrot.lane.b32.xlu0 %v715, 32
  %v717 = vpop.permute.xlu0 %716
  %s719 = scalar_lea.vmem %s4, 20
  %720 = vst.msk [vmem:[%s719] sm:$0xf] %vm254, %v717
  %s721 = scalar_lea.vmem [#allocation4], 48
  %v722 = vld [vmem:[%s721] sm:$0xff]
  %v723 = vld [vmem:[%s2] sm:$0xf]
  %v724 = vld [vmem:[%s2 + $0x4] sm:$0xf]
  %v725 = vld [vmem:[%s2 + $0x8] sm:$0xf]
  %v726 = vld [vmem:[%s2 + $0xc] sm:$0xf]
  %727 = vrot.lane.b32.xlu0 %v712, 32
  %v728 = vpop.permute.xlu0 %727
  %v733 = vunpack.c.l.b16 %v723
  %v734 = vunpack.c.l.b16 %v724
  %v735 = vunpack.c.l.b16 %v725
  %v736 = vunpack.c.l.b16 %v726
  %v737 = vpack.c.b16 %v734, %v733
  %v738 = vpack.c.b16 %v736, %v735
  %v742 = vsel %vm178, %v728, 0
  %744 = vmatprep.subr.bf16.mxu0 0
  %745 = vmatpush1.bf16.msra.mxu0 %v737
  %746 = vmatprep.subr.bf16.mxu0 0
  %747 = vmatpush1.bf16.msra.mxu0 %v738
  %748 = vmatprep.subr.bf16.mxu0 0
  %749 = vmatpush1.bf16.msra.mxu0 0
  %750 = vmatprep.subr.bf16.mxu0 0
  %751 = vmatpush1.bf16.msra.mxu0 0
  %752 = vmatprep.subr.bf16.mxu0 0
  %753 = vmatpush1.bf16.msra.mxu0 0
  %754 = vmatprep.subr.bf16.mxu0 0
  %755 = vmatpush1.bf16.msra.mxu0 0
  %756 = vmatprep.subr.bf16.mxu0 0
  %757 = vmatpush1.bf16.msra.mxu0 0
  %758 = vmatprep.subr.bf16.mxu0 0
  %759 = vmatpush1.bf16.msra.mxu0 0
  %760 = vmatprep.subr.bf16.mxu0 0
  %761 = vmatpush1.bf16.msra.mxu0 0
  %762 = vmatprep.subr.bf16.mxu0 0
  %763 = vmatpush1.bf16.msra.mxu0 0
  %764 = vmatprep.subr.bf16.mxu0 0
  %765 = vmatpush1.bf16.msra.mxu0 0
  %766 = vmatprep.subr.bf16.mxu0 0
  %767 = vmatpush1.bf16.msra.mxu0 0
  %768 = vmatprep.subr.bf16.mxu0 0
  %769 = vmatpush1.bf16.msra.mxu0 0
  %770 = vmatprep.subr.bf16.mxu0 0
  %771 = vmatpush1.bf16.msra.mxu0 0
  %772 = vmatprep.subr.bf16.mxu0 0
  %773 = vmatpush1.bf16.msra.mxu0 0
  %774 = vmatprep.subr.bf16.mxu0 0
  %775 = vmatpush1.bf16.msra.mxu0 0
  %776 = vmatprep.mubr.bf16.mxu0 0
  %777 = vmatmul.mubr.bf16.gmra.mrb[0].mxu0 %v742
  %v778 = vpop.f32.mrb[0].mxu0
  %v779 = vadd.f32 0.0, %v778
  %v780 = vpop.f32.mrb[0].mxu0
  %v781 = vpop.f32.mrb[0].mxu0
  %v782 = vpop.f32.mrb[0].mxu0
  %783 = vdwg.mxu0
  %v784 = vadd.f32 %v722, %v779
  %v785 = vtanh.pop %v784
  %v786 = vmul.f32 %v785, %v156
  %v787 = vadd.f32 %v786, %v157
  %v788 = vmul.f32 %v787, %v705
  %790 = vrot.lane.b32.xlu0 %v787, 64
  %v791 = vpop.permute.xlu0 %790
  %v793 = vmul.f32 %v787, %v791
  %795 = vrot.lane.b32.xlu0 %v793, 32
  %v796 = vpop.permute.xlu0 %795
  %v798 = vadd.f32 %v788, %v796
  %v799 = vtanh.pop %v798
  %801 = vrot.lane.b32.xlu0 %v799, 64
  %v802 = vpop.permute.xlu0 %801
  %v804 = vmul.f32 %v787, %v802
  %v805 = vpack.c.bf16 %v804, %v804
  %v807 = vunpack.c.l.b16 %v805
  %v808 = vpack.c.b16 %v807, %v807
  %809 = vrot.lane.b32.xlu0 %v808, 32
  %v810 = vpop.permute.xlu0 %809
  %s812 = scalar_lea.vmem %s4, 24
  %813 = vst.msk [vmem:[%s812] sm:$0xf] %vm254, %v810
  %s814 = scalar_lea.vmem [#allocation4], 56
  %v815 = vld [vmem:[%s814] sm:$0xff]
  %v816 = vld [vmem:[%s2] sm:$0xf]
  %v817 = vld [vmem:[%s2 + $0x4] sm:$0xf]
  %v818 = vld [vmem:[%s2 + $0x8] sm:$0xf]
  %v819 = vld [vmem:[%s2 + $0xc] sm:$0xf]
  %820 = vrot.lane.b32.xlu0 %v805, 32
  %v821 = vpop.permute.xlu0 %820
  %v826 = vunpack.c.l.b16 %v816
  %v827 = vunpack.c.l.b16 %v817
  %v828 = vunpack.c.l.b16 %v818
  %v829 = vunpack.c.l.b16 %v819
  %v830 = vpack.c.b16 %v827, %v826
  %v831 = vpack.c.b16 %v829, %v828
  %v835 = vsel %vm178, %v821, 0
  %837 = vmatprep.subr.bf16.mxu0 0
  %838 = vmatpush1.bf16.msra.mxu0 %v830
  %839 = vmatprep.subr.bf16.mxu0 0
  %840 = vmatpush1.bf16.msra.mxu0 %v831
  %841 = vmatprep.subr.bf16.mxu0 0
  %842 = vmatpush1.bf16.msra.mxu0 0
  %843 = vmatprep.subr.bf16.mxu0 0
  %844 = vmatpush1.bf16.msra.mxu0 0
  %845 = vmatprep.subr.bf16.mxu0 0
  %846 = vmatpush1.bf16.msra.mxu0 0
  %847 = vmatprep.subr.bf16.mxu0 0
  %848 = vmatpush1.bf16.msra.mxu0 0
  %849 = vmatprep.subr.bf16.mxu0 0
  %850 = vmatpush1.bf16.msra.mxu0 0
  %851 = vmatprep.subr.bf16.mxu0 0
  %852 = vmatpush1.bf16.msra.mxu0 0
  %853 = vmatprep.subr.bf16.mxu0 0
  %854 = vmatpush1.bf16.msra.mxu0 0
  %855 = vmatprep.subr.bf16.mxu0 0
  %856 = vmatpush1.bf16.msra.mxu0 0
  %857 = vmatprep.subr.bf16.mxu0 0
  %858 = vmatpush1.bf16.msra.mxu0 0
  %859 = vmatprep.subr.bf16.mxu0 0
  %860 = vmatpush1.bf16.msra.mxu0 0
  %861 = vmatprep.subr.bf16.mxu0 0
  %862 = vmatpush1.bf16.msra.mxu0 0
  %863 = vmatprep.subr.bf16.mxu0 0
  %864 = vmatpush1.bf16.msra.mxu0 0
  %865 = vmatprep.subr.bf16.mxu0 0
  %866 = vmatpush1.bf16.msra.mxu0 0
  %867 = vmatprep.subr.bf16.mxu0 0
  %868 = vmatpush1.bf16.msra.mxu0 0
  %869 = vmatprep.mubr.bf16.mxu0 0
  %870 = vmatmul.mubr.bf16.gmra.mrb[0].mxu0 %v835
  %v871 = vpop.f32.mrb[0].mxu0
  %v872 = vadd.f32 0.0, %v871
  %v873 = vpop.f32.mrb[0].mxu0
  %v874 = vpop.f32.mrb[0].mxu0
  %v875 = vpop.f32.mrb[0].mxu0
  %876 = vdwg.mxu0
  %v877 = vadd.f32 %v815, %v872
  %v878 = vtanh.pop %v877
  %v879 = vmul.f32 %v878, %v156
  %v880 = vadd.f32 %v879, %v157
  %v881 = vmul.f32 %v880, %v798
  %883 = vrot.lane.b32.xlu0 %v880, 64
  %v884 = vpop.permute.xlu0 %883
  %v886 = vmul.f32 %v880, %v884
  %888 = vrot.lane.b32.xlu0 %v886, 32
  %v889 = vpop.permute.xlu0 %888
  %v891 = vadd.f32 %v881, %v889
  %v892 = vtanh.pop %v891
  %894 = vrot.lane.b32.xlu0 %v892, 64
  %v895 = vpop.permute.xlu0 %894
  %v897 = vmul.f32 %v880, %v895
  %v898 = vpack.c.bf16 %v897, %v897
  %v900 = vunpack.c.l.b16 %v898
  %v901 = vpack.c.b16 %v900, %v900
  %902 = vrot.lane.b32.xlu0 %v901, 32
  %v903 = vpop.permute.xlu0 %902
  %s905 = scalar_lea.vmem %s4, 28
  %906 = vst.msk [vmem:[%s905] sm:$0xf] %vm254, %v903
  %908 = vrot.lane.b32.xlu0 %v897, 32
  %v909 = vpop.permute.xlu0 %908
  %911 = vst.msk [vmem:[#allocation2] sm:$0xff] %vm178, %v909
  %913 = vrot.lane.b32.xlu0 %v891, 96
  %v914 = vpop.permute.xlu0 %913
  %916 = vst.msk [vmem:[#allocation3] sm:$0xff] %vm178, %v914
  // Predicated region
  $region22: #{trainable_att_forward.2} parent=0 // pred_check
    _
  $region23: #{trainable_att_forward.2} parent=0 // pred_check_branch
    %918 = sbr.rel (0) target = $region25
  $region24: #{trainable_att_forward.2} parent=0 // pred_region
    _
  $region25: #{trainable_att_forward.2} parent=0 // pred_fallthru
    _
  // Predicated region
  $region26: #{trainable_att_forward.2} parent=0 // pred_check
    _
  $region27: #{trainable_att_forward.2} parent=0 // pred_check_branch
    %920 = sbr.rel (0) target = $region29
  $region28: #{trainable_att_forward.2} parent=0 // pred_region
    _
  $region29: #{trainable_att_forward.2} parent=0 // pred_fallthru
    _

// kernel: trainable_att_forward.3
$region0: #{trainable_att_forward.3}
  #allocation0 [shape = 'u32[]', space=smem, size = 0x4, offset = 0x4, fixed_abs, tag = 'smem constant byte address 0x4 - core index']
  #allocation1 [shape = 'u32[144,128]{1,0:T(1,128)}', space=vmem, size = 0x12000, scoped, tag = 'internal scratch']
  #allocation2 [shape = 'f32[8,32]{1,0:T(8,128)}', space=vmem, size = 0x1000, scoped, tag = 'scratch operand']
  #allocation3 [shape = 'f32[8,32]{1,0:T(8,128)}', space=vmem, size = 0x1000, scoped, tag = 'scratch operand']
  #allocation4 [shape = 'f32[8,1]{1,0:T(8,128)}', space=vmem, size = 0x1000, scoped, tag = 'scratch operand']
  #allocation5 [shape = 'f32[8,1]{1,0:T(8,128)}', space=vmem, size = 0x1000, scoped, tag = 'scratch operand']
  #allocation6 [shape = 'f32[8,32]{1,0:T(8,128)}', space=vmem, size = 0x1000, scoped, tag = 'scratch operand']
  #allocation7 [shape = 'f32[8,8,128]{2,1,0:T(8,128)}', space=vmem, size = 0x8000, scoped, tag = 'scratch operand']
  %s0 = inlined_call_operand.vmem [shape: bf16[8,8,32], index: 0, kind: input, shape index: {}]
  %s1 = inlined_call_operand.vmem [shape: bf16[32,128], index: 1, kind: input, shape index: {}]
  %s2 = inlined_call_operand.vmem [shape: bf16[32,128], index: 2, kind: input, shape index: {}]
  %s3 = inlined_call_operand.vmem [shape: f32[1,128], index: 3, kind: input, shape index: {}]
  %s4 = inlined_call_operand.vmem [shape: f32[1,32], index: 4, kind: input, shape index: {}]
  %s5 = inlined_call_operand.vmem [shape: bf16[32,16], index: 5, kind: input, shape index: {}]
  %s6 = inlined_call_operand.vmem [shape: f32[1,16], index: 6, kind: input, shape index: {}]
  %s7 = inlined_call_operand.vmem [shape: f32[8,16], index: 7, kind: output, shape index: {}]
  %s8 = sld [smem:[#allocation0]]
  $region46: #{trainable_att_forward.3} parent=0
    _
  %s10 = ssub.s32 1, %s8
  %s11 = scalar_select 0, %s10, %s8
  // Predicated region
  $region2: #{trainable_att_forward.3} parent=0 // pred_check
    _
  $region3: #{trainable_att_forward.3} parent=0 // pred_check_branch
    %13 = sbr.rel (0) target = $region5
  $region4: #{trainable_att_forward.3} parent=0 // pred_region
    _
  $region5: #{trainable_att_forward.3} parent=0 // pred_fallthru
    _
  // Predicated region
  $region6: #{trainable_att_forward.3} parent=0 // pred_check
    _
  $region7: #{trainable_att_forward.3} parent=0 // pred_check_branch
    %15 = sbr.rel (0) target = $region9
  $region8: #{trainable_att_forward.3} parent=0 // pred_region
    _
  $region9: #{trainable_att_forward.3} parent=0 // pred_fallthru
    _
  // Predicated region
  $region10: #{trainable_att_forward.3} parent=0 // pred_check
    _
  $region11: #{trainable_att_forward.3} parent=0 // pred_check_branch
    %17 = sbr.rel (0) target = $region13
  $region12: #{trainable_att_forward.3} parent=0 // pred_region
    _
  $region13: #{trainable_att_forward.3} parent=0 // pred_fallthru
    _
  // Predicated region
  $region14: #{trainable_att_forward.3} parent=0 // pred_check
    _
  $region15: #{trainable_att_forward.3} parent=0 // pred_check_branch
    %19 = sbr.rel (0) target = $region17
  $region16: #{trainable_att_forward.3} parent=0 // pred_region
    _
  $region17: #{trainable_att_forward.3} parent=0 // pred_fallthru
    _
  // Predicated region
  $region18: #{trainable_att_forward.3} parent=0 // pred_check
    _
  $region19: #{trainable_att_forward.3} parent=0 // pred_check_branch
    %21 = sbr.rel (0) target = $region21
  $region20: #{trainable_att_forward.3} parent=0 // pred_region
    _
  $region21: #{trainable_att_forward.3} parent=0 // pred_fallthru
    _
  // Predicated region
  $region22: #{trainable_att_forward.3} parent=0 // pred_check
    _
  $region23: #{trainable_att_forward.3} parent=0 // pred_check_branch
    %23 = sbr.rel (0) target = $region25
  $region24: #{trainable_att_forward.3} parent=0 // pred_region
    _
  $region25: #{trainable_att_forward.3} parent=0 // pred_fallthru
    _
  // Predicated region
  $region26: #{trainable_att_forward.3} parent=0 // pred_check
    _
  $region27: #{trainable_att_forward.3} parent=0 // pred_check_branch
    %25 = sbr.rel (0) target = $region29
  $region28: #{trainable_att_forward.3} parent=0 // pred_region
    _
  $region29: #{trainable_att_forward.3} parent=0 // pred_fallthru
    _
  %p27 = scmp.eq.s32.totalorder 0, 0
  // Predicated region
  $region30: #{trainable_att_forward.3} parent=0 // pred_check
    %p28 = pneg %p27
  $region31: #{trainable_att_forward.3} parent=0 // pred_check_branch
    %30 = sbr.rel (%p28) target = $region33
  $region32: #{trainable_att_forward.3} parent=0 // pred_region
    %vm31 = vcmask 261120
    %32 = vst.msk [vmem:[#allocation2] sm:$0xff] %vm31, 0.0
    %33 = vst.msk [vmem:[#allocation3] sm:$0xff] %vm31, 0.0
    %vm34 = vcmask 7168
    %35 = vst.msk [vmem:[#allocation4] sm:$0xff] %vm34, -1e+30
    %36 = vst.msk [vmem:[#allocation5] sm:$0xff] %vm34, 0.0
    %37 = vst.msk [vmem:[#allocation6] sm:$0xff] %vm31, 0.0
  $region33: #{trainable_att_forward.3} parent=0 // pred_fallthru
    _
  %v38 = vld [vmem:[%s0] sm:$0xf]
  %v39 = vld [vmem:[%s0 + $0x4] sm:$0xf]
  %v40 = vld [vmem:[%s0 + $0x8] sm:$0xf]
  %v41 = vld [vmem:[%s0 + $0xc] sm:$0xf]
  %v42 = vld [vmem:[%s0 + $0x10] sm:$0xf]
  %v43 = vld [vmem:[%s0 + $0x14] sm:$0xf]
  %v44 = vld [vmem:[%s0 + $0x18] sm:$0xf]
  %v45 = vld [vmem:[%s0 + $0x1c] sm:$0xf]
  %v46 = vld [vmem:[%s1] sm:$0xf]
  %v47 = vld [vmem:[%s1 + $0x4] sm:$0xf]
  %v48 = vld [vmem:[%s1 + $0x8] sm:$0xf]
  %v49 = vld [vmem:[%s1 + $0xc] sm:$0xf]
  %v50 = vld [vmem:[%s3] sm:$0x1]
  %v52 = vlaneseq
  %v53 = vshrl.u32 %v52, 7
  %v54 = vsub.s32 0, %v53
  %v55 = vrot.slane %v50, %v54
  %v65 = vunpack.c.l.b16 %v38
  %v66 = vunpack.c.l.b16 %v39
  %v67 = vunpack.c.l.b16 %v40
  %v68 = vunpack.c.l.b16 %v41
  %v69 = vunpack.c.l.b16 %v42
  %v70 = vunpack.c.l.b16 %v43
  %v71 = vunpack.c.l.b16 %v44
  %v72 = vunpack.c.l.b16 %v45
  %v73 = vpack.c.b16 %v66, %v65
  %v74 = vpack.c.b16 %v68, %v67
  %v75 = vpack.c.b16 %v70, %v69
  %v76 = vpack.c.b16 %v72, %v71
  %v81 = vunpack.c.l.b16 %v46
  %v82 = vunpack.c.l.b16 %v47
  %v83 = vunpack.c.l.b16 %v48
  %v84 = vunpack.c.l.b16 %v49
  %v85 = vpack.c.b16 %v82, %v81
  %v86 = vpack.c.b16 %v84, %v83
  %vm89 = vcmask 261120
  %v91 = vsel %vm89, %v73, 0
  %v94 = vsel %vm89, %v74, 0
  %v97 = vsel %vm89, %v75, 0
  %v100 = vsel %vm89, %v76, 0
  %102 = vmatprep.subr.bf16.mxu0 0
  %103 = vmatpush1.bf16.msra.mxu0 %v85
  %104 = vmatprep.subr.bf16.mxu0 0
  %105 = vmatpush1.bf16.msra.mxu0 %v86
  %106 = vmatprep.subr.bf16.mxu0 0
  %107 = vmatpush1.bf16.msra.mxu0 0
  %108 = vmatprep.subr.bf16.mxu0 0
  %109 = vmatpush1.bf16.msra.mxu0 0
  %110 = vmatprep.subr.bf16.mxu0 0
  %111 = vmatpush1.bf16.msra.mxu0 0
  %112 = vmatprep.subr.bf16.mxu0 0
  %113 = vmatpush1.bf16.msra.mxu0 0
  %114 = vmatprep.subr.bf16.mxu0 0
  %115 = vmatpush1.bf16.msra.mxu0 0
  %116 = vmatprep.subr.bf16.mxu0 0
  %117 = vmatpush1.bf16.msra.mxu0 0
  %118 = vmatprep.subr.bf16.mxu0 0
  %119 = vmatpush1.bf16.msra.mxu0 0
  %120 = vmatprep.subr.bf16.mxu0 0
  %121 = vmatpush1.bf16.msra.mxu0 0
  %122 = vmatprep.subr.bf16.mxu0 0
  %123 = vmatpush1.bf16.msra.mxu0 0
  %124 = vmatprep.subr.bf16.mxu0 0
  %125 = vmatpush1.bf16.msra.mxu0 0
  %126 = vmatprep.subr.bf16.mxu0 0
  %127 = vmatpush1.bf16.msra.mxu0 0
  %128 = vmatprep.subr.bf16.mxu0 0
  %129 = vmatpush1.bf16.msra.mxu0 0
  %130 = vmatprep.subr.bf16.mxu0 0
  %131 = vmatpush1.bf16.msra.mxu0 0
  %132 = vmatprep.subr.bf16.mxu0 0
  %133 = vmatpush1.bf16.msra.mxu0 0
  %134 = vmatprep.mubr.bf16.mxu0 0
  %135 = vmatmul.mubr.bf16.gmra.mrb[0].mxu0 %v91
  %v136 = vpop.f32.mrb[0].mxu0
  %v137 = vadd.f32 %v55, %v136
  %v138 = vpop.f32.mrb[0].mxu0
  %v139 = vpop.f32.mrb[0].mxu0
  %v140 = vadd.f32 %v55, %v139
  %v141 = vpop.f32.mrb[0].mxu0
  %142 = vmatprep.mubr.bf16.mxu0 0
  %143 = vmatmul.mubr.bf16.gmra.mrb[0].mxu0 %v94
  %v144 = vpop.f32.mrb[0].mxu0
  %v145 = vadd.f32 %v55, %v144
  %v146 = vpop.f32.mrb[0].mxu0
  %v147 = vpop.f32.mrb[0].mxu0
  %v148 = vadd.f32 %v55, %v147
  %v149 = vpop.f32.mrb[0].mxu0
  %150 = vmatprep.mubr.bf16.mxu0 0
  %151 = vmatmul.mubr.bf16.gmra.mrb[0].mxu0 %v97
  %v152 = vpop.f32.mrb[0].mxu0
  %v153 = vadd.f32 %v55, %v152
  %v154 = vpop.f32.mrb[0].mxu0
  %v155 = vpop.f32.mrb[0].mxu0
  %v156 = vadd.f32 %v55, %v155
  %v157 = vpop.f32.mrb[0].mxu0
  %158 = vmatprep.mubr.bf16.mxu0 0
  %159 = vmatmul.mubr.bf16.gmra.mrb[0].mxu0 %v100
  %v160 = vpop.f32.mrb[0].mxu0
  %v161 = vadd.f32 %v55, %v160
  %v162 = vpop.f32.mrb[0].mxu0
  %v163 = vpop.f32.mrb[0].mxu0
  %v164 = vadd.f32 %v55, %v163
  %v165 = vpop.f32.mrb[0].mxu0
  %166 = vdwg.mxu0
  %167 = vst [vmem:[#allocation7] sm:$0xff] %v137
  %168 = vst [vmem:[#allocation7 + $0x8] sm:$0xff] %v140
  %169 = vst [vmem:[#allocation7 + $0x10] sm:$0xff] %v145
  %170 = vst [vmem:[#allocation7 + $0x18] sm:$0xff] %v148
  %171 = vst [vmem:[#allocation7 + $0x20] sm:$0xff] %v153
  %172 = vst [vmem:[#allocation7 + $0x28] sm:$0xff] %v156
  %173 = vst [vmem:[#allocation7 + $0x30] sm:$0xff] %v161
  %174 = vst [vmem:[#allocation7 + $0x38] sm:$0xff] %v164
  %v175 = vlaneseq
  %v176 = vand.u32 %v175, 127
  %vm177 = vcmp.ge.s32.totalorder %v176, 64
  %vm178 = vcmp.lt.s32.totalorder %v176, 96
  %vm179 = vmand %vm177, %vm178
  %v180 = vsel %vm179, 1.0, 0.5
  %v181 = vsel %vm179, 0.0, 0.5
  %v182 = vld [vmem:[%s4] sm:$0x1]
  %s183 = smul.u32 0, 8
  %v184 = vld [vmem:[#allocation2] sm:$0xff]
  %v185 = vld [vmem:[#allocation3] sm:$0xff]
  %v186 = vld [vmem:[#allocation4] sm:$0xff]
  %v187 = vld [vmem:[#allocation5] sm:$0xff]
  %v188 = vld [vmem:[#allocation6] sm:$0xff]
  %v189 = vld [vmem:[#allocation7] sm:$0xff]
  %v190 = vpack.c.bf16 %v184, %v184
  %v191 = vld [vmem:[%s2] sm:$0xf]
  %v192 = vld [vmem:[%s2 + $0x4] sm:$0xf]
  %v193 = vld [vmem:[%s2 + $0x8] sm:$0xf]
  %v194 = vld [vmem:[%s2 + $0xc] sm:$0xf]
  %v199 = vunpack.c.l.b16 %v191
  %v200 = vunpack.c.l.b16 %v192
  %v201 = vunpack.c.l.b16 %v193
  %v202 = vunpack.c.l.b16 %v194
  %v203 = vpack.c.b16 %v200, %v199
  %v204 = vpack.c.b16 %v202, %v201
  %v208 = vsel %vm89, %v190, 0
  %210 = vmatprep.subr.bf16.mxu0 0
  %211 = vmatpush1.bf16.msra.mxu0 %v203
  %212 = vmatprep.subr.bf16.mxu0 0
  %213 = vmatpush1.bf16.msra.mxu0 %v204
  %214 = vmatprep.subr.bf16.mxu0 0
  %215 = vmatpush1.bf16.msra.mxu0 0
  %216 = vmatprep.subr.bf16.mxu0 0
  %217 = vmatpush1.bf16.msra.mxu0 0
  %218 = vmatprep.subr.bf16.mxu0 0
  %219 = vmatpush1.bf16.msra.mxu0 0
  %220 = vmatprep.subr.bf16.mxu0 0
  %221 = vmatpush1.bf16.msra.mxu0 0
  %222 = vmatprep.subr.bf16.mxu0 0
  %223 = vmatpush1.bf16.msra.mxu0 0
  %224 = vmatprep.subr.bf16.mxu0 0
  %225 = vmatpush1.bf16.msra.mxu0 0
  %226 = vmatprep.subr.bf16.mxu0 0
  %227 = vmatpush1.bf16.msra.mxu0 0
  %228 = vmatprep.subr.bf16.mxu0 0
  %229 = vmatpush1.bf16.msra.mxu0 0
  %230 = vmatprep.subr.bf16.mxu0 0
  %231 = vmatpush1.bf16.msra.mxu0 0
  %232 = vmatprep.subr.bf16.mxu0 0
  %233 = vmatpush1.bf16.msra.mxu0 0
  %234 = vmatprep.subr.bf16.mxu0 0
  %235 = vmatpush1.bf16.msra.mxu0 0
  %236 = vmatprep.subr.bf16.mxu0 0
  %237 = vmatpush1.bf16.msra.mxu0 0
  %238 = vmatprep.subr.bf16.mxu0 0
  %239 = vmatpush1.bf16.msra.mxu0 0
  %240 = vmatprep.subr.bf16.mxu0 0
  %241 = vmatpush1.bf16.msra.mxu0 0
  %242 = vmatprep.mubr.bf16.mxu0 0
  %243 = vmatmul.mubr.bf16.gmra.mrb[0].mxu0 %v208
  %v244 = vpop.f32.mrb[0].mxu0
  %v245 = vadd.f32 0.0, %v244
  %v246 = vpop.f32.mrb[0].mxu0
  %v247 = vpop.f32.mrb[0].mxu0
  %v248 = vpop.f32.mrb[0].mxu0
  %249 = vdwg.mxu0
  %v250 = vadd.f32 %v189, %v245
  %v251 = vtanh.pop %v250
  %v252 = vmul.f32 %v251, %v180
  %v253 = vadd.f32 %v252, %v181
  %255 = vrot.lane.b32.xlu0 %v185, 32
  %v256 = vpop.permute.xlu0 %255
  %v258 = vmul.f32 %v253, %v256
  %260 = vrot.lane.b32.xlu0 %v253, 64
  %v261 = vpop.permute.xlu0 %260
  %v263 = vmul.f32 %v253, %v261
  %265 = vrot.lane.b32.xlu0 %v263, 32
  %v266 = vpop.permute.xlu0 %265
  %v268 = vadd.f32 %v258, %v266
  %v269 = vtanh.pop %v268
  %271 = vrot.lane.b32.xlu0 %v269, 64
  %v272 = vpop.permute.xlu0 %271
  %v274 = vmul.f32 %v253, %v272
  %v275 = vtanh.pop %v274
  %v277 = vlaneseq
  %v278 = vshrl.u32 %v277, 7
  %v279 = vsub.s32 0, %v278
  %v280 = vrot.slane %v182, %v279
  %281 = vrot.lane.b32.xlu0 %v280, 96
  %v282 = vpop.permute.xlu0 %281
  %v284 = vmul.f32 %v275, %v282
  %286 = vrot.lane.b32.xlu0 %v284, 32
  %v287 = vpop.permute.xlu0 %286
  %v289 = vsel %vm89, %v287, 0.0
  %290 = vadd.xlane.f32.xlu0 %v289
  %v291 = vpop.xlane.xlu0 %290
  %p292 = scmp.lt.s32.totalorder %s183, 8
  %s293 = scalar_select %p292, 1, 0
  %v294 = vstv %s293
  %vm295 = vcmp.eq.s32.totalorder %v294, 1
  %v296 = vsel %vm295, %v291, -1e+30
  %v297 = vmax.f32 %v186, %v296
  %v298 = vsub.f32 %v186, %v297
  %v299 = vmul.f32 %v298, 1.442695
  %v300 = vpow.pop %v299
  %v301 = vsub.f32 %v296, %v297
  %v302 = vmul.f32 %v301, 1.442695
  %v303 = vpow.pop %v302
  %v304 = vmul.f32 %v300, %v187
  %v305 = vadd.f32 %v304, %v303
  %307 = vset.pattern.permute.xlu0 0
  %308 = vperm.xlu0 %307, %v300
  %v309 = vpop.permute.xlu0 %308
  %v311 = vmul.f32 %v309, %v188
  %313 = vset.pattern.permute.xlu0 0
  %314 = vperm.xlu0 %313, %v303
  %v315 = vpop.permute.xlu0 %314
  %v317 = vmul.f32 %v315, %v274
  %319 = vrot.lane.b32.xlu0 %v317, 32
  %v320 = vpop.permute.xlu0 %319
  %v322 = vadd.f32 %v311, %v320
  %s323 = scalar_lea.vmem [#allocation7], 8
  %v324 = vld [vmem:[%s323] sm:$0xff]
  %v325 = vpack.c.bf16 %v274, %v274
  %327 = vrot.lane.b32.xlu0 %v325, 32
  %v328 = vpop.permute.xlu0 %327
  %v330 = vsel %vm89, %v328, 0
  %332 = vmatprep.subr.bf16.mxu0 0
  %333 = vmatpush1.bf16.msra.mxu0 %v203
  %334 = vmatprep.subr.bf16.mxu0 0
  %335 = vmatpush1.bf16.msra.mxu0 %v204
  %336 = vmatprep.subr.bf16.mxu0 0
  %337 = vmatpush1.bf16.msra.mxu0 0
  %338 = vmatprep.subr.bf16.mxu0 0
  %339 = vmatpush1.bf16.msra.mxu0 0
  %340 = vmatprep.subr.bf16.mxu0 0
  %341 = vmatpush1.bf16.msra.mxu0 0
  %342 = vmatprep.subr.bf16.mxu0 0
  %343 = vmatpush1.bf16.msra.mxu0 0
  %344 = vmatprep.subr.bf16.mxu0 0
  %345 = vmatpush1.bf16.msra.mxu0 0
  %346 = vmatprep.subr.bf16.mxu0 0
  %347 = vmatpush1.bf16.msra.mxu0 0
  %348 = vmatprep.subr.bf16.mxu0 0
  %349 = vmatpush1.bf16.msra.mxu0 0
  %350 = vmatprep.subr.bf16.mxu0 0
  %351 = vmatpush1.bf16.msra.mxu0 0
  %352 = vmatprep.subr.bf16.mxu0 0
  %353 = vmatpush1.bf16.msra.mxu0 0
  %354 = vmatprep.subr.bf16.mxu0 0
  %355 = vmatpush1.bf16.msra.mxu0 0
  %356 = vmatprep.subr.bf16.mxu0 0
  %357 = vmatpush1.bf16.msra.mxu0 0
  %358 = vmatprep.subr.bf16.mxu0 0
  %359 = vmatpush1.bf16.msra.mxu0 0
  %360 = vmatprep.subr.bf16.mxu0 0
  %361 = vmatpush1.bf16.msra.mxu0 0
  %362 = vmatprep.subr.bf16.mxu0 0
  %363 = vmatpush1.bf16.msra.mxu0 0
  %364 = vmatprep.mubr.bf16.mxu0 0
  %365 = vmatmul.mubr.bf16.gmra.mrb[0].mxu0 %v330
  %v366 = vpop.f32.mrb[0].mxu0
  %v367 = vadd.f32 0.0, %v366
  %v368 = vpop.f32.mrb[0].mxu0
  %v369 = vpop.f32.mrb[0].mxu0
  %v370 = vpop.f32.mrb[0].mxu0
  %371 = vdwg.mxu0
  %v372 = vadd.f32 %v324, %v367
  %v373 = vtanh.pop %v372
  %v374 = vmul.f32 %v373, %v180
  %v375 = vadd.f32 %v374, %v181
  %v376 = vmul.f32 %v375, %v268
  %378 = vrot.lane.b32.xlu0 %v375, 64
  %v379 = vpop.permute.xlu0 %378
  %v381 = vmul.f32 %v375, %v379
  %383 = vrot.lane.b32.xlu0 %v381, 32
  %v384 = vpop.permute.xlu0 %383
  %v386 = vadd.f32 %v376, %v384
  %v387 = vtanh.pop %v386
  %389 = vrot.lane.b32.xlu0 %v387, 64
  %v390 = vpop.permute.xlu0 %389
  %v392 = vmul.f32 %v375, %v390
  %v393 = vtanh.pop %v392
  %v394 = vmul.f32 %v393, %v282
  %396 = vrot.lane.b32.xlu0 %v394, 32
  %v397 = vpop.permute.xlu0 %396
  %v399 = vsel %vm89, %v397, 0.0
  %400 = vadd.xlane.f32.xlu0 %v399
  %v401 = vpop.xlane.xlu0 %400
  %s402 = sadd.s32 %s183, 1
  %p403 = scmp.lt.s32.totalorder %s402, 8
  %s404 = scalar_select %p403, 1, 0
  %v405 = vstv %s404
  %vm406 = vcmp.eq.s32.totalorder %v405, 1
  %v407 = vsel %vm406, %v401, -1e+30
  %v408 = vmax.f32 %v297, %v407
  %v409 = vsub.f32 %v297, %v408
  %v410 = vmul.f32 %v409, 1.442695
  %v411 = vpow.pop %v410
  %v412 = vsub.f32 %v407, %v408
  %v413 = vmul.f32 %v412, 1.442695
  %v414 = vpow.pop %v413
  %v415 = vmul.f32 %v411, %v305
  %v416 = vadd.f32 %v415, %v414
  %418 = vset.pattern.permute.xlu0 0
  %419 = vperm.xlu0 %418, %v411
  %v420 = vpop.permute.xlu0 %419
  %v422 = vmul.f32 %v420, %v322
  %424 = vset.pattern.permute.xlu0 0
  %425 = vperm.xlu0 %424, %v414
  %v426 = vpop.permute.xlu0 %425
  %v428 = vmul.f32 %v426, %v392
  %430 = vrot.lane.b32.xlu0 %v428, 32
  %v431 = vpop.permute.xlu0 %430
  %v433 = vadd.f32 %v422, %v431
  %s434 = scalar_lea.vmem [#allocation7], 16
  %v435 = vld [vmem:[%s434] sm:$0xff]
  %v436 = vpack.c.bf16 %v392, %v392
  %438 = vrot.lane.b32.xlu0 %v436, 32
  %v439 = vpop.permute.xlu0 %438
  %v441 = vsel %vm89, %v439, 0
  %443 = vmatprep.subr.bf16.mxu0 0
  %444 = vmatpush1.bf16.msra.mxu0 %v203
  %445 = vmatprep.subr.bf16.mxu0 0
  %446 = vmatpush1.bf16.msra.mxu0 %v204
  %447 = vmatprep.subr.bf16.mxu0 0
  %448 = vmatpush1.bf16.msra.mxu0 0
  %449 = vmatprep.subr.bf16.mxu0 0
  %450 = vmatpush1.bf16.msra.mxu0 0
  %451 = vmatprep.subr.bf16.mxu0 0
  %452 = vmatpush1.bf16.msra.mxu0 0
  %453 = vmatprep.subr.bf16.mxu0 0
  %454 = vmatpush1.bf16.msra.mxu0 0
  %455 = vmatprep.subr.bf16.mxu0 0
  %456 = vmatpush1.bf16.msra.mxu0 0
  %457 = vmatprep.subr.bf16.mxu0 0
  %458 = vmatpush1.bf16.msra.mxu0 0
  %459 = vmatprep.subr.bf16.mxu0 0
  %460 = vmatpush1.bf16.msra.mxu0 0
  %461 = vmatprep.subr.bf16.mxu0 0
  %462 = vmatpush1.bf16.msra.mxu0 0
  %463 = vmatprep.subr.bf16.mxu0 0
  %464 = vmatpush1.bf16.msra.mxu0 0
  %465 = vmatprep.subr.bf16.mxu0 0
  %466 = vmatpush1.bf16.msra.mxu0 0
  %467 = vmatprep.subr.bf16.mxu0 0
  %468 = vmatpush1.bf16.msra.mxu0 0
  %469 = vmatprep.subr.bf16.mxu0 0
  %470 = vmatpush1.bf16.msra.mxu0 0
  %471 = vmatprep.subr.bf16.mxu0 0
  %472 = vmatpush1.bf16.msra.mxu0 0
  %473 = vmatprep.subr.bf16.mxu0 0
  %474 = vmatpush1.bf16.msra.mxu0 0
  %475 = vmatprep.mubr.bf16.mxu0 0
  %476 = vmatmul.mubr.bf16.gmra.mrb[0].mxu0 %v441
  %v477 = vpop.f32.mrb[0].mxu0
  %v478 = vadd.f32 0.0, %v477
  %v479 = vpop.f32.mrb[0].mxu0
  %v480 = vpop.f32.mrb[0].mxu0
  %v481 = vpop.f32.mrb[0].mxu0
  %482 = vdwg.mxu0
  %v483 = vadd.f32 %v435, %v478
  %v484 = vtanh.pop %v483
  %v485 = vmul.f32 %v484, %v180
  %v486 = vadd.f32 %v485, %v181
  %v487 = vmul.f32 %v486, %v386
  %489 = vrot.lane.b32.xlu0 %v486, 64
  %v490 = vpop.permute.xlu0 %489
  %v492 = vmul.f32 %v486, %v490
  %494 = vrot.lane.b32.xlu0 %v492, 32
  %v495 = vpop.permute.xlu0 %494
  %v497 = vadd.f32 %v487, %v495
  %v498 = vtanh.pop %v497
  %500 = vrot.lane.b32.xlu0 %v498, 64
  %v501 = vpop.permute.xlu0 %500
  %v503 = vmul.f32 %v486, %v501
  %v504 = vtanh.pop %v503
  %v505 = vmul.f32 %v504, %v282
  %507 = vrot.lane.b32.xlu0 %v505, 32
  %v508 = vpop.permute.xlu0 %507
  %v510 = vsel %vm89, %v508, 0.0
  %511 = vadd.xlane.f32.xlu0 %v510
  %v512 = vpop.xlane.xlu0 %511
  %s513 = sadd.s32 %s183, 2
  %p514 = scmp.lt.s32.totalorder %s513, 8
  %s515 = scalar_select %p514, 1, 0
  %v516 = vstv %s515
  %vm517 = vcmp.eq.s32.totalorder %v516, 1
  %v518 = vsel %vm517, %v512, -1e+30
  %v519 = vmax.f32 %v408, %v518
  %v520 = vsub.f32 %v408, %v519
  %v521 = vmul.f32 %v520, 1.442695
  %v522 = vpow.pop %v521
  %v523 = vsub.f32 %v518, %v519
  %v524 = vmul.f32 %v523, 1.442695
  %v525 = vpow.pop %v524
  %v526 = vmul.f32 %v522, %v416
  %v527 = vadd.f32 %v526, %v525
  %529 = vset.pattern.permute.xlu0 0
  %530 = vperm.xlu0 %529, %v522
  %v531 = vpop.permute.xlu0 %530
  %v533 = vmul.f32 %v531, %v433
  %535 = vset.pattern.permute.xlu0 0
  %536 = vperm.xlu0 %535, %v525
  %v537 = vpop.permute.xlu0 %536
  %v539 = vmul.f32 %v537, %v503
  %541 = vrot.lane.b32.xlu0 %v539, 32
  %v542 = vpop.permute.xlu0 %541
  %v544 = vadd.f32 %v533, %v542
  %s545 = scalar_lea.vmem [#allocation7], 24
  %v546 = vld [vmem:[%s545] sm:$0xff]
  %v547 = vpack.c.bf16 %v503, %v503
  %549 = vrot.lane.b32.xlu0 %v547, 32
  %v550 = vpop.permute.xlu0 %549
  %v552 = vsel %vm89, %v550, 0
  %554 = vmatprep.subr.bf16.mxu0 0
  %555 = vmatpush1.bf16.msra.mxu0 %v203
  %556 = vmatprep.subr.bf16.mxu0 0
  %557 = vmatpush1.bf16.msra.mxu0 %v204
  %558 = vmatprep.subr.bf16.mxu0 0
  %559 = vmatpush1.bf16.msra.mxu0 0
  %560 = vmatprep.subr.bf16.mxu0 0
  %561 = vmatpush1.bf16.msra.mxu0 0
  %562 = vmatprep.subr.bf16.mxu0 0
  %563 = vmatpush1.bf16.msra.mxu0 0
  %564 = vmatprep.subr.bf16.mxu0 0
  %565 = vmatpush1.bf16.msra.mxu0 0
  %566 = vmatprep.subr.bf16.mxu0 0
  %567 = vmatpush1.bf16.msra.mxu0 0
  %568 = vmatprep.subr.bf16.mxu0 0
  %569 = vmatpush1.bf16.msra.mxu0 0
  %570 = vmatprep.subr.bf16.mxu0 0
  %571 = vmatpush1.bf16.msra.mxu0 0
  %572 = vmatprep.subr.bf16.mxu0 0
  %573 = vmatpush1.bf16.msra.mxu0 0
  %574 = vmatprep.subr.bf16.mxu0 0
  %575 = vmatpush1.bf16.msra.mxu0 0
  %576 = vmatprep.subr.bf16.mxu0 0
  %577 = vmatpush1.bf16.msra.mxu0 0
  %578 = vmatprep.subr.bf16.mxu0 0
  %579 = vmatpush1.bf16.msra.mxu0 0
  %580 = vmatprep.subr.bf16.mxu0 0
  %581 = vmatpush1.bf16.msra.mxu0 0
  %582 = vmatprep.subr.bf16.mxu0 0
  %583 = vmatpush1.bf16.msra.mxu0 0
  %584 = vmatprep.subr.bf16.mxu0 0
  %585 = vmatpush1.bf16.msra.mxu0 0
  %586 = vmatprep.mubr.bf16.mxu0 0
  %587 = vmatmul.mubr.bf16.gmra.mrb[0].mxu0 %v552
  %v588 = vpop.f32.mrb[0].mxu0
  %v589 = vadd.f32 0.0, %v588
  %v590 = vpop.f32.mrb[0].mxu0
  %v591 = vpop.f32.mrb[0].mxu0
  %v592 = vpop.f32.mrb[0].mxu0
  %593 = vdwg.mxu0
  %v594 = vadd.f32 %v546, %v589
  %v595 = vtanh.pop %v594
  %v596 = vmul.f32 %v595, %v180
  %v597 = vadd.f32 %v596, %v181
  %v598 = vmul.f32 %v597, %v497
  %600 = vrot.lane.b32.xlu0 %v597, 64
  %v601 = vpop.permute.xlu0 %600
  %v603 = vmul.f32 %v597, %v601
  %605 = vrot.lane.b32.xlu0 %v603, 32
  %v606 = vpop.permute.xlu0 %605
  %v608 = vadd.f32 %v598, %v606
  %v609 = vtanh.pop %v608
  %611 = vrot.lane.b32.xlu0 %v609, 64
  %v612 = vpop.permute.xlu0 %611
  %v614 = vmul.f32 %v597, %v612
  %v615 = vtanh.pop %v614
  %v616 = vmul.f32 %v615, %v282
  %618 = vrot.lane.b32.xlu0 %v616, 32
  %v619 = vpop.permute.xlu0 %618
  %v621 = vsel %vm89, %v619, 0.0
  %622 = vadd.xlane.f32.xlu0 %v621
  %v623 = vpop.xlane.xlu0 %622
  %s624 = sadd.s32 %s183, 3
  %p625 = scmp.lt.s32.totalorder %s624, 8
  %s626 = scalar_select %p625, 1, 0
  %v627 = vstv %s626
  %vm628 = vcmp.eq.s32.totalorder %v627, 1
  %v629 = vsel %vm628, %v623, -1e+30
  %v630 = vmax.f32 %v519, %v629
  %v631 = vsub.f32 %v519, %v630
  %v632 = vmul.f32 %v631, 1.442695
  %v633 = vpow.pop %v632
  %v634 = vsub.f32 %v629, %v630
  %v635 = vmul.f32 %v634, 1.442695
  %v636 = vpow.pop %v635
  %v637 = vmul.f32 %v633, %v527
  %v638 = vadd.f32 %v637, %v636
  %640 = vset.pattern.permute.xlu0 0
  %641 = vperm.xlu0 %640, %v633
  %v642 = vpop.permute.xlu0 %641
  %v644 = vmul.f32 %v642, %v544
  %646 = vset.pattern.permute.xlu0 0
  %647 = vperm.xlu0 %646, %v636
  %v648 = vpop.permute.xlu0 %647
  %v650 = vmul.f32 %v648, %v614
  %652 = vrot.lane.b32.xlu0 %v650, 32
  %v653 = vpop.permute.xlu0 %652
  %v655 = vadd.f32 %v644, %v653
  %s656 = scalar_lea.vmem [#allocation7], 32
  %v657 = vld [vmem:[%s656] sm:$0xff]
  %v658 = vpack.c.bf16 %v614, %v614
  %660 = vrot.lane.b32.xlu0 %v658, 32
  %v661 = vpop.permute.xlu0 %660
  %v663 = vsel %vm89, %v661, 0
  %665 = vmatprep.subr.bf16.mxu0 0
  %666 = vmatpush1.bf16.msra.mxu0 %v203
  %667 = vmatprep.subr.bf16.mxu0 0
  %668 = vmatpush1.bf16.msra.mxu0 %v204
  %669 = vmatprep.subr.bf16.mxu0 0
  %670 = vmatpush1.bf16.msra.mxu0 0
  %671 = vmatprep.subr.bf16.mxu0 0
  %672 = vmatpush1.bf16.msra.mxu0 0
  %673 = vmatprep.subr.bf16.mxu0 0
  %674 = vmatpush1.bf16.msra.mxu0 0
  %675 = vmatprep.subr.bf16.mxu0 0
  %676 = vmatpush1.bf16.msra.mxu0 0
  %677 = vmatprep.subr.bf16.mxu0 0
  %678 = vmatpush1.bf16.msra.mxu0 0
  %679 = vmatprep.subr.bf16.mxu0 0
  %680 = vmatpush1.bf16.msra.mxu0 0
  %681 = vmatprep.subr.bf16.mxu0 0
  %682 = vmatpush1.bf16.msra.mxu0 0
  %683 = vmatprep.subr.bf16.mxu0 0
  %684 = vmatpush1.bf16.msra.mxu0 0
  %685 = vmatprep.subr.bf16.mxu0 0
  %686 = vmatpush1.bf16.msra.mxu0 0
  %687 = vmatprep.subr.bf16.mxu0 0
  %688 = vmatpush1.bf16.msra.mxu0 0
  %689 = vmatprep.subr.bf16.mxu0 0
  %690 = vmatpush1.bf16.msra.mxu0 0
  %691 = vmatprep.subr.bf16.mxu0 0
  %692 = vmatpush1.bf16.msra.mxu0 0
  %693 = vmatprep.subr.bf16.mxu0 0
  %694 = vmatpush1.bf16.msra.mxu0 0
  %695 = vmatprep.subr.bf16.mxu0 0
  %696 = vmatpush1.bf16.msra.mxu0 0
  %697 = vmatprep.mubr.bf16.mxu0 0
  %698 = vmatmul.mubr.bf16.gmra.mrb[0].mxu0 %v663
  %v699 = vpop.f32.mrb[0].mxu0
  %v700 = vadd.f32 0.0, %v699
  %v701 = vpop.f32.mrb[0].mxu0
  %v702 = vpop.f32.mrb[0].mxu0
  %v703 = vpop.f32.mrb[0].mxu0
  %704 = vdwg.mxu0
  %v705 = vadd.f32 %v657, %v700
  %v706 = vtanh.pop %v705
  %v707 = vmul.f32 %v706, %v180
  %v708 = vadd.f32 %v707, %v181
  %v709 = vmul.f32 %v708, %v608
  %711 = vrot.lane.b32.xlu0 %v708, 64
  %v712 = vpop.permute.xlu0 %711
  %v714 = vmul.f32 %v708, %v712
  %716 = vrot.lane.b32.xlu0 %v714, 32
  %v717 = vpop.permute.xlu0 %716
  %v719 = vadd.f32 %v709, %v717
  %v720 = vtanh.pop %v719
  %722 = vrot.lane.b32.xlu0 %v720, 64
  %v723 = vpop.permute.xlu0 %722
  %v725 = vmul.f32 %v708, %v723
  %v726 = vtanh.pop %v725
  %v727 = vmul.f32 %v726, %v282
  %729 = vrot.lane.b32.xlu0 %v727, 32
  %v730 = vpop.permute.xlu0 %729
  %v732 = vsel %vm89, %v730, 0.0
  %733 = vadd.xlane.f32.xlu0 %v732
  %v734 = vpop.xlane.xlu0 %733
  %s735 = sadd.s32 %s183, 4
  %p736 = scmp.lt.s32.totalorder %s735, 8
  %s737 = scalar_select %p736, 1, 0
  %v738 = vstv %s737
  %vm739 = vcmp.eq.s32.totalorder %v738, 1
  %v740 = vsel %vm739, %v734, -1e+30
  %v741 = vmax.f32 %v630, %v740
  %v742 = vsub.f32 %v630, %v741
  %v743 = vmul.f32 %v742, 1.442695
  %v744 = vpow.pop %v743
  %v745 = vsub.f32 %v740, %v741
  %v746 = vmul.f32 %v745, 1.442695
  %v747 = vpow.pop %v746
  %v748 = vmul.f32 %v744, %v638
  %v749 = vadd.f32 %v748, %v747
  %751 = vset.pattern.permute.xlu0 0
  %752 = vperm.xlu0 %751, %v744
  %v753 = vpop.permute.xlu0 %752
  %v755 = vmul.f32 %v753, %v655
  %757 = vset.pattern.permute.xlu0 0
  %758 = vperm.xlu0 %757, %v747
  %v759 = vpop.permute.xlu0 %758
  %v761 = vmul.f32 %v759, %v725
  %763 = vrot.lane.b32.xlu0 %v761, 32
  %v764 = vpop.permute.xlu0 %763
  %v766 = vadd.f32 %v755, %v764
  %s767 = scalar_lea.vmem [#allocation7], 40
  %v768 = vld [vmem:[%s767] sm:$0xff]
  %v769 = vpack.c.bf16 %v725, %v725
  %771 = vrot.lane.b32.xlu0 %v769, 32
  %v772 = vpop.permute.xlu0 %771
  %v774 = vsel %vm89, %v772, 0
  %776 = vmatprep.subr.bf16.mxu0 0
  %777 = vmatpush1.bf16.msra.mxu0 %v203
  %778 = vmatprep.subr.bf16.mxu0 0
  %779 = vmatpush1.bf16.msra.mxu0 %v204
  %780 = vmatprep.subr.bf16.mxu0 0
  %781 = vmatpush1.bf16.msra.mxu0 0
  %782 = vmatprep.subr.bf16.mxu0 0
  %783 = vmatpush1.bf16.msra.mxu0 0
  %784 = vmatprep.subr.bf16.mxu0 0
  %785 = vmatpush1.bf16.msra.mxu0 0
  %786 = vmatprep.subr.bf16.mxu0 0
  %787 = vmatpush1.bf16.msra.mxu0 0
  %788 = vmatprep.subr.bf16.mxu0 0
  %789 = vmatpush1.bf16.msra.mxu0 0
  %790 = vmatprep.subr.bf16.mxu0 0
  %791 = vmatpush1.bf16.msra.mxu0 0
  %792 = vmatprep.subr.bf16.mxu0 0
  %793 = vmatpush1.bf16.msra.mxu0 0
  %794 = vmatprep.subr.bf16.mxu0 0
  %795 = vmatpush1.bf16.msra.mxu0 0
  %796 = vmatprep.subr.bf16.mxu0 0
  %797 = vmatpush1.bf16.msra.mxu0 0
  %798 = vmatprep.subr.bf16.mxu0 0
  %799 = vmatpush1.bf16.msra.mxu0 0
  %800 = vmatprep.subr.bf16.mxu0 0
  %801 = vmatpush1.bf16.msra.mxu0 0
  %802 = vmatprep.subr.bf16.mxu0 0
  %803 = vmatpush1.bf16.msra.mxu0 0
  %804 = vmatprep.subr.bf16.mxu0 0
  %805 = vmatpush1.bf16.msra.mxu0 0
  %806 = vmatprep.subr.bf16.mxu0 0
  %807 = vmatpush1.bf16.msra.mxu0 0
  %808 = vmatprep.mubr.bf16.mxu0 0
  %809 = vmatmul.mubr.bf16.gmra.mrb[0].mxu0 %v774
  %v810 = vpop.f32.mrb[0].mxu0
  %v811 = vadd.f32 0.0, %v810
  %v812 = vpop.f32.mrb[0].mxu0
  %v813 = vpop.f32.mrb[0].mxu0
  %v814 = vpop.f32.mrb[0].mxu0
  %815 = vdwg.mxu0
  %v816 = vadd.f32 %v768, %v811
  %v817 = vtanh.pop %v816
  %v818 = vmul.f32 %v817, %v180
  %v819 = vadd.f32 %v818, %v181
  %v820 = vmul.f32 %v819, %v719
  %822 = vrot.lane.b32.xlu0 %v819, 64
  %v823 = vpop.permute.xlu0 %822
  %v825 = vmul.f32 %v819, %v823
  %827 = vrot.lane.b32.xlu0 %v825, 32
  %v828 = vpop.permute.xlu0 %827
  %v830 = vadd.f32 %v820, %v828
  %v831 = vtanh.pop %v830
  %833 = vrot.lane.b32.xlu0 %v831, 64
  %v834 = vpop.permute.xlu0 %833
  %v836 = vmul.f32 %v819, %v834
  %v837 = vtanh.pop %v836
  %v838 = vmul.f32 %v837, %v282
  %840 = vrot.lane.b32.xlu0 %v838, 32
  %v841 = vpop.permute.xlu0 %840
  %v843 = vsel %vm89, %v841, 0.0
  %844 = vadd.xlane.f32.xlu0 %v843
  %v845 = vpop.xlane.xlu0 %844
  %s846 = sadd.s32 %s183, 5
  %p847 = scmp.lt.s32.totalorder %s846, 8
  %s848 = scalar_select %p847, 1, 0
  %v849 = vstv %s848
  %vm850 = vcmp.eq.s32.totalorder %v849, 1
  %v851 = vsel %vm850, %v845, -1e+30
  %v852 = vmax.f32 %v741, %v851
  %v853 = vsub.f32 %v741, %v852
  %v854 = vmul.f32 %v853, 1.442695
  %v855 = vpow.pop %v854
  %v856 = vsub.f32 %v851, %v852
  %v857 = vmul.f32 %v856, 1.442695
  %v858 = vpow.pop %v857
  %v859 = vmul.f32 %v855, %v749
  %v860 = vadd.f32 %v859, %v858
  %862 = vset.pattern.permute.xlu0 0
  %863 = vperm.xlu0 %862, %v855
  %v864 = vpop.permute.xlu0 %863
  %v866 = vmul.f32 %v864, %v766
  %868 = vset.pattern.permute.xlu0 0
  %869 = vperm.xlu0 %868, %v858
  %v870 = vpop.permute.xlu0 %869
  %v872 = vmul.f32 %v870, %v836
  %874 = vrot.lane.b32.xlu0 %v872, 32
  %v875 = vpop.permute.xlu0 %874
  %v877 = vadd.f32 %v866, %v875
  %s878 = scalar_lea.vmem [#allocation7], 48
  %v879 = vld [vmem:[%s878] sm:$0xff]
  %v880 = vpack.c.bf16 %v836, %v836
  %882 = vrot.lane.b32.xlu0 %v880, 32
  %v883 = vpop.permute.xlu0 %882
  %v885 = vsel %vm89, %v883, 0
  %887 = vmatprep.subr.bf16.mxu0 0
  %888 = vmatpush1.bf16.msra.mxu0 %v203
  %889 = vmatprep.subr.bf16.mxu0 0
  %890 = vmatpush1.bf16.msra.mxu0 %v204
  %891 = vmatprep.subr.bf16.mxu0 0
  %892 = vmatpush1.bf16.msra.mxu0 0
  %893 = vmatprep.subr.bf16.mxu0 0
  %894 = vmatpush1.bf16.msra.mxu0 0
  %895 = vmatprep.subr.bf16.mxu0 0
  %896 = vmatpush1.bf16.msra.mxu0 0
  %897 = vmatprep.subr.bf16.mxu0 0
  %898 = vmatpush1.bf16.msra.mxu0 0
  %899 = vmatprep.subr.bf16.mxu0 0
  %900 = vmatpush1.bf16.msra.mxu0 0
  %901 = vmatprep.subr.bf16.mxu0 0
  %902 = vmatpush1.bf16.msra.mxu0 0
  %903 = vmatprep.subr.bf16.mxu0 0
  %904 = vmatpush1.bf16.msra.mxu0 0
  %905 = vmatprep.subr.bf16.mxu0 0
  %906 = vmatpush1.bf16.msra.mxu0 0
  %907 = vmatprep.subr.bf16.mxu0 0
  %908 = vmatpush1.bf16.msra.mxu0 0
  %909 = vmatprep.subr.bf16.mxu0 0
  %910 = vmatpush1.bf16.msra.mxu0 0
  %911 = vmatprep.subr.bf16.mxu0 0
  %912 = vmatpush1.bf16.msra.mxu0 0
  %913 = vmatprep.subr.bf16.mxu0 0
  %914 = vmatpush1.bf16.msra.mxu0 0
  %915 = vmatprep.subr.bf16.mxu0 0
  %916 = vmatpush1.bf16.msra.mxu0 0
  %917 = vmatprep.subr.bf16.mxu0 0
  %918 = vmatpush1.bf16.msra.mxu0 0
  %919 = vmatprep.mubr.bf16.mxu0 0
  %920 = vmatmul.mubr.bf16.gmra.mrb[0].mxu0 %v885
  %v921 = vpop.f32.mrb[0].mxu0
  %v922 = vadd.f32 0.0, %v921
  %v923 = vpop.f32.mrb[0].mxu0
  %v924 = vpop.f32.mrb[0].mxu0
  %v925 = vpop.f32.mrb[0].mxu0
  %926 = vdwg.mxu0
  %v927 = vadd.f32 %v879, %v922
  %v928 = vtanh.pop %v927
  %v929 = vmul.f32 %v928, %v180
  %v930 = vadd.f32 %v929, %v181
  %v931 = vmul.f32 %v930, %v830
  %933 = vrot.lane.b32.xlu0 %v930, 64
  %v934 = vpop.permute.xlu0 %933
  %v936 = vmul.f32 %v930, %v934
  %938 = vrot.lane.b32.xlu0 %v936, 32
  %v939 = vpop.permute.xlu0 %938
  %v941 = vadd.f32 %v931, %v939
  %v942 = vtanh.pop %v941
  %944 = vrot.lane.b32.xlu0 %v942, 64
  %v945 = vpop.permute.xlu0 %944
  %v947 = vmul.f32 %v930, %v945
  %v948 = vtanh.pop %v947
  %v949 = vmul.f32 %v948, %v282
  %951 = vrot.lane.b32.xlu0 %v949, 32
  %v952 = vpop.permute.xlu0 %951
  %v954 = vsel %vm89, %v952, 0.0
  %955 = vadd.xlane.f32.xlu0 %v954
  %v956 = vpop.xlane.xlu0 %955
  %s957 = sadd.s32 %s183, 6
  %p958 = scmp.lt.s32.totalorder %s957, 8
  %s959 = scalar_select %p958, 1, 0
  %v960 = vstv %s959
  %vm961 = vcmp.eq.s32.totalorder %v960, 1
  %v962 = vsel %vm961, %v956, -1e+30
  %v963 = vmax.f32 %v852, %v962
  %v964 = vsub.f32 %v852, %v963
  %v965 = vmul.f32 %v964, 1.442695
  %v966 = vpow.pop %v965
  %v967 = vsub.f32 %v962, %v963
  %v968 = vmul.f32 %v967, 1.442695
  %v969 = vpow.pop %v968
  %v970 = vmul.f32 %v966, %v860
  %v971 = vadd.f32 %v970, %v969
  %973 = vset.pattern.permute.xlu0 0
  %974 = vperm.xlu0 %973, %v966
  %v975 = vpop.permute.xlu0 %974
  %v977 = vmul.f32 %v975, %v877
  %979 = vset.pattern.permute.xlu0 0
  %980 = vperm.xlu0 %979, %v969
  %v981 = vpop.permute.xlu0 %980
  %v983 = vmul.f32 %v981, %v947
  %985 = vrot.lane.b32.xlu0 %v983, 32
  %v986 = vpop.permute.xlu0 %985
  %v988 = vadd.f32 %v977, %v986
  %s989 = scalar_lea.vmem [#allocation7], 56
  %v990 = vld [vmem:[%s989] sm:$0xff]
  %v991 = vpack.c.bf16 %v947, %v947
  %993 = vrot.lane.b32.xlu0 %v991, 32
  %v994 = vpop.permute.xlu0 %993
  %v996 = vsel %vm89, %v994, 0
  %998 = vmatprep.subr.bf16.mxu0 0
  %999 = vmatpush1.bf16.msra.mxu0 %v203
  %1000 = vmatprep.subr.bf16.mxu0 0
  %1001 = vmatpush1.bf16.msra.mxu0 %v204
  %1002 = vmatprep.subr.bf16.mxu0 0
  %1003 = vmatpush1.bf16.msra.mxu0 0
  %1004 = vmatprep.subr.bf16.mxu0 0
  %1005 = vmatpush1.bf16.msra.mxu0 0
  %1006 = vmatprep.subr.bf16.mxu0 0
  %1007 = vmatpush1.bf16.msra.mxu0 0
  %1008 = vmatprep.subr.bf16.mxu0 0
  %1009 = vmatpush1.bf16.msra.mxu0 0
  %1010 = vmatprep.subr.bf16.mxu0 0
  %1011 = vmatpush1.bf16.msra.mxu0 0
  %1012 = vmatprep.subr.bf16.mxu0 0
  %1013 = vmatpush1.bf16.msra.mxu0 0
  %1014 = vmatprep.subr.bf16.mxu0 0
  %1015 = vmatpush1.bf16.msra.mxu0 0
  %1016 = vmatprep.subr.bf16.mxu0 0
  %1017 = vmatpush1.bf16.msra.mxu0 0
  %1018 = vmatprep.subr.bf16.mxu0 0
  %1019 = vmatpush1.bf16.msra.mxu0 0
  %1020 = vmatprep.subr.bf16.mxu0 0
  %1021 = vmatpush1.bf16.msra.mxu0 0
  %1022 = vmatprep.subr.bf16.mxu0 0
  %1023 = vmatpush1.bf16.msra.mxu0 0
  %1024 = vmatprep.subr.bf16.mxu0 0
  %1025 = vmatpush1.bf16.msra.mxu0 0
  %1026 = vmatprep.subr.bf16.mxu0 0
  %1027 = vmatpush1.bf16.msra.mxu0 0
  %1028 = vmatprep.subr.bf16.mxu0 0
  %1029 = vmatpush1.bf16.msra.mxu0 0
  %1030 = vmatprep.mubr.bf16.mxu0 0
  %1031 = vmatmul.mubr.bf16.gmra.mrb[0].mxu0 %v996
  %v1032 = vpop.f32.mrb[0].mxu0
  %v1033 = vadd.f32 0.0, %v1032
  %v1034 = vpop.f32.mrb[0].mxu0
  %v1035 = vpop.f32.mrb[0].mxu0
  %v1036 = vpop.f32.mrb[0].mxu0
  %1037 = vdwg.mxu0
  %v1038 = vadd.f32 %v990, %v1033
  %v1039 = vtanh.pop %v1038
  %v1040 = vmul.f32 %v1039, %v180
  %v1041 = vadd.f32 %v1040, %v181
  %v1042 = vmul.f32 %v1041, %v941
  %1044 = vrot.lane.b32.xlu0 %v1041, 64
  %v1045 = vpop.permute.xlu0 %1044
  %v1047 = vmul.f32 %v1041, %v1045
  %1049 = vrot.lane.b32.xlu0 %v1047, 32
  %v1050 = vpop.permute.xlu0 %1049
  %v1052 = vadd.f32 %v1042, %v1050
  %v1053 = vtanh.pop %v1052
  %1055 = vrot.lane.b32.xlu0 %v1053, 64
  %v1056 = vpop.permute.xlu0 %1055
  %v1058 = vmul.f32 %v1041, %v1056
  %v1059 = vtanh.pop %v1058
  %v1060 = vmul.f32 %v1059, %v282
  %1062 = vrot.lane.b32.xlu0 %v1060, 32
  %v1063 = vpop.permute.xlu0 %1062
  %v1065 = vsel %vm89, %v1063, 0.0
  %1066 = vadd.xlane.f32.xlu0 %v1065
  %v1067 = vpop.xlane.xlu0 %1066
  %s1068 = sadd.s32 %s183, 7
  %p1069 = scmp.lt.s32.totalorder %s1068, 8
  %s1070 = scalar_select %p1069, 1, 0
  %v1071 = vstv %s1070
  %vm1072 = vcmp.eq.s32.totalorder %v1071, 1
  %v1073 = vsel %vm1072, %v1067, -1e+30
  %v1074 = vmax.f32 %v963, %v1073
  %v1075 = vsub.f32 %v963, %v1074
  %v1076 = vmul.f32 %v1075, 1.442695
  %v1077 = vpow.pop %v1076
  %v1078 = vsub.f32 %v1073, %v1074
  %v1079 = vmul.f32 %v1078, 1.442695
  %v1080 = vpow.pop %v1079
  %v1081 = vmul.f32 %v1077, %v971
  %v1082 = vadd.f32 %v1081, %v1080
  %1084 = vset.pattern.permute.xlu0 0
  %1085 = vperm.xlu0 %1084, %v1077
  %v1086 = vpop.permute.xlu0 %1085
  %v1088 = vmul.f32 %v1086, %v988
  %1090 = vset.pattern.permute.xlu0 0
  %1091 = vperm.xlu0 %1090, %v1080
  %v1092 = vpop.permute.xlu0 %1091
  %v1094 = vmul.f32 %v1092, %v1058
  %1096 = vrot.lane.b32.xlu0 %v1094, 32
  %v1097 = vpop.permute.xlu0 %1096
  %v1099 = vadd.f32 %v1088, %v1097
  %1101 = vrot.lane.b32.xlu0 %v1058, 32
  %v1102 = vpop.permute.xlu0 %1101
  %1104 = vst.msk [vmem:[#allocation2] sm:$0xff] %vm89, %v1102
  %1106 = vrot.lane.b32.xlu0 %v1052, 96
  %v1107 = vpop.permute.xlu0 %1106
  %1109 = vst.msk [vmem:[#allocation3] sm:$0xff] %vm89, %v1107
  %vm1110 = vcmask 7168
  %1111 = vst.msk [vmem:[#allocation4] sm:$0xff] %vm1110, %v1074
  %1112 = vst.msk [vmem:[#allocation5] sm:$0xff] %vm1110, %v1082
  %1113 = vst.msk [vmem:[#allocation6] sm:$0xff] %vm89, %v1099
  // Predicated region
  $region34: #{trainable_att_forward.3} parent=0 // pred_check
    %p1114 = pneg %p27
  $region35: #{trainable_att_forward.3} parent=0 // pred_check_branch
    %1116 = sbr.rel (%p1114) target = $region37
  $region36: #{trainable_att_forward.3} parent=0 // pred_region
    %v1117 = vld [vmem:[#allocation6] sm:$0xff]
    %v1118 = vld [vmem:[#allocation5] sm:$0xff]
    %v1119 = vrcp.pop %v1118
    %1121 = vset.pattern.permute.xlu0 0
    %1122 = vperm.xlu0 %1121, %v1119
    %v1123 = vpop.permute.xlu0 %1122
    %v1125 = vmul.f32 %v1117, %v1123
    %v1126 = vtanh.pop %v1125
    %v1127 = vpack.c.bf16 %v1126, %v1126
    %v1128 = vld [vmem:[%s5] sm:$0xf]
    %v1129 = vld [vmem:[%s5 + $0x4] sm:$0xf]
    %v1130 = vld [vmem:[%s5 + $0x8] sm:$0xf]
    %v1131 = vld [vmem:[%s5 + $0xc] sm:$0xf]
    %v1132 = vld [vmem:[%s6] sm:$0x1]
    %v1134 = vlaneseq
    %v1135 = vshrl.u32 %v1134, 7
    %v1136 = vsub.s32 0, %v1135
    %v1137 = vrot.slane %v1132, %v1136
    %v1143 = vunpack.c.l.b16 %v1128
    %v1144 = vunpack.c.l.b16 %v1129
    %v1145 = vunpack.c.l.b16 %v1130
    %v1146 = vunpack.c.l.b16 %v1131
    %v1147 = vpack.c.b16 %v1144, %v1143
    %v1148 = vpack.c.b16 %v1146, %v1145
    %v1152 = vsel %vm89, %v1127, 0
    %1154 = vmatprep.subr.bf16.mxu0 0
    %1155 = vmatpush1.bf16.msra.mxu0 %v1147
    %1156 = vmatprep.subr.bf16.mxu0 0
    %1157 = vmatpush1.bf16.msra.mxu0 %v1148
    %1158 = vmatprep.subr.bf16.mxu0 0
    %1159 = vmatpush1.bf16.msra.mxu0 0
    %1160 = vmatprep.subr.bf16.mxu0 0
    %1161 = vmatpush1.bf16.msra.mxu0 0
    %1162 = vmatprep.subr.bf16.mxu0 0
    %1163 = vmatpush1.bf16.msra.mxu0 0
    %1164 = vmatprep.subr.bf16.mxu0 0
    %1165 = vmatpush1.bf16.msra.mxu0 0
    %1166 = vmatprep.subr.bf16.mxu0 0
    %1167 = vmatpush1.bf16.msra.mxu0 0
    %1168 = vmatprep.subr.bf16.mxu0 0
    %1169 = vmatpush1.bf16.msra.mxu0 0
    %1170 = vmatprep.subr.bf16.mxu0 0
    %1171 = vmatpush1.bf16.msra.mxu0 0
    %1172 = vmatprep.subr.bf16.mxu0 0
    %1173 = vmatpush1.bf16.msra.mxu0 0
    %1174 = vmatprep.subr.bf16.mxu0 0
    %1175 = vmatpush1.bf16.msra.mxu0 0
    %1176 = vmatprep.subr.bf16.mxu0 0
    %1177 = vmatpush1.bf16.msra.mxu0 0
    %1178 = vmatprep.subr.bf16.mxu0 0
    %1179 = vmatpush1.bf16.msra.mxu0 0
    %1180 = vmatprep.subr.bf16.mxu0 0
    %1181 = vmatpush1.bf16.msra.mxu0 0
    %1182 = vmatprep.subr.bf16.mxu0 0
    %1183 = vmatpush1.bf16.msra.mxu0 0
    %1184 = vmatprep.subr.bf16.mxu0 0
    %1185 = vmatpush1.bf16.msra.mxu0 0
    %1186 = vmatprep.mubr.bf16.mxu0 0
    %1187 = vmatmul.mubr.bf16.gmra.mrb[0].mxu0 %v1152
    %v1188 = vpop.f32.mrb[0].mxu0
    %v1189 = vadd.f32 %v1137, %v1188
    %v1190 = vpop.f32.mrb[0].mxu0
    %v1191 = vpop.f32.mrb[0].mxu0
    %v1192 = vpop.f32.mrb[0].mxu0
    %1193 = vdwg.mxu0
    %vm1194 = vcmask 130048
    %1195 = vst.msk [vmem:[%s7] sm:$0xff] %vm1194, %v1189
  $region37: #{trainable_att_forward.3} parent=0 // pred_fallthru
    _
  // Predicated region
  $region38: #{trainable_att_forward.3} parent=0 // pred_check
    _
  $region39: #{trainable_att_forward.3} parent=0 // pred_check_branch
    %1197 = sbr.rel (0) target = $region41
  $region40: #{trainable_att_forward.3} parent=0 // pred_region
    _
  $region41: #{trainable_att_forward.3} parent=0 // pred_fallthru
    _
  // Predicated region
  $region42: #{trainable_att_forward.3} parent=0 // pred_check
    _
  $region43: #{trainable_att_forward.3} parent=0 // pred_check_branch
    %1199 = sbr.rel (0) target = $region45
  $region44: #{trainable_att_forward.3} parent=0 // pred_region
    _
  $region45: #{trainable_att_forward.3} parent=0 // pred_fallthru
    _

</llo_original>
